<compile_context>
chip_gen: v7x
topology: tpu7x:2x2x1
jax: 0.10.0
libtpu: 0.0.40
codegen_flags: <defaults>
</compile_context>

<pallas_src>
import functools
import math

import jax
import jax.numpy as jnp
from jax.experimental import pallas as pl
from jax.experimental.pallas import tpu as pltpu

# ----------------------------- model config (small) -------------------------
B = 2           # batch
S = 16          # sequence length
H = 64          # hidden size
NH = 4          # num attention heads
D = H // NH     # head dim
I = 128         # intermediate (FFN) size
L = 2           # num transformer layers
VOCAB = 50
NUM_LABELS = 3
PAD_IDX = 1
LN_EPS = 1e-5

_SQRT_HALF = 0.7071067811865476


def _gelu_erf(x):
    # Exact (erf-based) GELU as used by HF XLM-RoBERTa.  erf is evaluated with the
    # Abramowitz–Stegun 7.1.26 rational approximation (max abs err ~1.5e-7), which
    # lowers to abs/mul/add/exp/div only (no erf primitive needed in Mosaic).
    z = x * _SQRT_HALF
    az = jnp.abs(z)
    t = 1.0 / (1.0 + 0.3275911 * az)
    poly = ((((1.061405429 * t - 1.453152027) * t + 1.421413741) * t
             - 0.284496736) * t + 0.254829592) * t
    erf_abs = 1.0 - poly * jnp.exp(-az * az)
    erf_z = jnp.where(z >= 0.0, erf_abs, -erf_abs)
    return 0.5 * x * (1.0 + erf_z)


# ----------------------------- Pallas kernel --------------------------------
def _fused_xlmr_kernel(emb_ref, mask_ref,
                       emb_ln_g_ref, emb_ln_b_ref,
                       wq_ref, wk_ref, wv_ref, qb_ref, kb_ref, vb_ref,
                       wo_ref, ob_ref, ln1_g_ref, ln1_b_ref,
                       wi_ref, ib_ref, wfo_ref, fob_ref, ln2_g_ref, ln2_b_ref,
                       cls_w_ref, cls_b_ref, out_w_ref, out_b_ref,
                       logits_ref, *, n_heads, n_layers, head_dim, eps):
    scale = 1.0 / math.sqrt(head_dim)
    bf16 = jnp.bfloat16

    def layernorm(x, g, b):
        mu = jnp.mean(x, axis=-1, keepdims=True)
        var = jnp.mean(jnp.square(x - mu), axis=-1, keepdims=True)
        return (x - mu) * jax.lax.rsqrt(var + eps) * g + b

    # additive key-padding bias built in-kernel from the (1, S) key mask (f32).
    bias = (mask_ref[0] - 1.0) * 1e9                          # (1, S)

    h = layernorm(emb_ref[0].astype(jnp.float32),
                  emb_ln_g_ref[...], emb_ln_b_ref[...])        # (S, H) f32
    seq = h.shape[0]

    for l in range(n_layers):                                  # static unroll (L=2)
        hb = h.astype(bf16)                                    # MXU operand dtype
        scores = []
        values = []
        for hd in range(n_heads):                              # static unroll (NH=4)
            # per-head projections from pre-split weights -> no lane slicing
            q = jnp.dot(hb, wq_ref[l, hd],
                        preferred_element_type=jnp.float32) + qb_ref[l, hd]
            k = jnp.dot(hb, wk_ref[l, hd],
                        preferred_element_type=jnp.float32) + kb_ref[l, hd]
            v = jnp.dot(hb, wv_ref[l, hd],
                        preferred_element_type=jnp.float32) + vb_ref[l, hd]
            s = jnp.einsum('qd,kd->qk',
                           (q * scale).astype(bf16), k.astype(bf16),
                           preferred_element_type=jnp.float32)  # (S, S)
            scores.append(s)
            values.append(v.astype(bf16))

        # one softmax for all heads (sublane-stacked scores), f32 statistics.
        s_all = jnp.concatenate(scores, axis=0) + bias          # (NH*S, S)
        m = jnp.max(s_all, axis=-1, keepdims=True)
        p_all = jnp.exp(s_all - m)
        p_all = p_all / jnp.sum(p_all, axis=-1, keepdims=True)  # exact division

        # context per head, lane-concat once, single fused output projection.
        ctx = jnp.concatenate(
            [jnp.dot(p_all[hd * seq:(hd + 1) * seq].astype(bf16), values[hd],
                     preferred_element_type=jnp.float32)
             for hd in range(n_heads)], axis=-1)                # (S, H)
        attn = jnp.dot(ctx.astype(bf16), wo_ref[l],
                       preferred_element_type=jnp.float32) + ob_ref[l]

        # add & LayerNorm (f32)
        h1 = layernorm(attn + h, ln1_g_ref[l], ln1_b_ref[l])

        # FFN: dense -> exact GELU -> dense, residual + LayerNorm
        inter = jnp.dot(h1.astype(bf16), wi_ref[l],
                        preferred_element_type=jnp.float32) + ib_ref[l]
        inter = _gelu_erf(inter)
        ffn = jnp.dot(inter.astype(bf16), wfo_ref[l],
                      preferred_element_type=jnp.float32) + fob_ref[l]
        h = layernorm(ffn + h1, ln2_g_ref[l], ln2_b_ref[l])

    # ---- classification head on the <s> token (static sublane slice) -------
    cls = h[0:1, :]                                            # (1, H)
    dense = jnp.tanh(jnp.dot(cls.astype(bf16), cls_w_ref[...],
                             preferred_element_type=jnp.float32) + cls_b_ref[...])
    logits = jnp.dot(dense.astype(bf16), out_w_ref[...],
                     preferred_element_type=jnp.float32) + out_b_ref[...]
    logits_ref[0] = logits.astype(logits_ref.dtype)


# ----------------------------- parameter init -------------------------------
def init_params(key):
    ks = jax.random.split(key, 11)
    bf = jnp.bfloat16

    def nrm(k, shape, dtype=jnp.float32):
        return (0.02 * jax.random.normal(k, shape, jnp.float32)).astype(dtype)

    return {
        "word_emb": nrm(ks[0], (VOCAB, H)),
        "pos_emb": nrm(ks[1], (S + PAD_IDX + 2, H)),
        "type_emb": nrm(ks[2], (1, H)),
        "emb_ln_g": jnp.ones((1, H), jnp.float32),
        "emb_ln_b": jnp.zeros((1, H), jnp.float32),
        # attention weights pre-split per head (review item: no lane slicing);
        # matmul weights stored bf16 (MXU-native), biases / LN params f32.
        "wq": nrm(ks[3], (L, NH, H, D), bf),
        "wk": nrm(ks[4], (L, NH, H, D), bf),
        "wv": nrm(ks[5], (L, NH, H, D), bf),
        "qb": jnp.zeros((L, NH, 1, D), jnp.float32),
        "kb": jnp.zeros((L, NH, 1, D), jnp.float32),
        "vb": jnp.zeros((L, NH, 1, D), jnp.float32),
        "wo": nrm(ks[6], (L, H, H), bf),
        "ob": jnp.zeros((L, 1, H), jnp.float32),
        "ln1_g": jnp.ones((L, 1, H), jnp.float32),
        "ln1_b": jnp.zeros((L, 1, H), jnp.float32),
        "wi": nrm(ks[7], (L, H, I), bf),
        "ib": jnp.zeros((L, 1, I), jnp.float32),
        "wfo": nrm(ks[8], (L, I, H), bf),
        "fob": jnp.zeros((L, 1, H), jnp.float32),
        "ln2_g": jnp.ones((L, 1, H), jnp.float32),
        "ln2_b": jnp.zeros((L, 1, H), jnp.float32),
        "cls_w": nrm(ks[9], (H, H), bf),
        "cls_b": jnp.zeros((1, H), jnp.float32),
        "out_w": nrm(ks[10], (H, NUM_LABELS), bf),
        "out_b": jnp.zeros((1, NUM_LABELS), jnp.float32),
    }


# ----------------------------- forward pass ----------------------------------
def xlmr_forward(params, input_ids, attention_mask):
    Bq, Sq = input_ids.shape

    # RoBERTa-style position ids (padding_idx offset; pads keep padding_idx).
    not_pad = (input_ids != PAD_IDX).astype(jnp.int32)
    position_ids = jnp.cumsum(not_pad, axis=1) * not_pad + PAD_IDX

    # Embedding gathers stay in XLA (no clean small-Pallas gather); sum here.
    emb = (params["word_emb"][input_ids]
           + params["pos_emb"][position_ids]
           + params["type_emb"][0]).astype(jnp.float32)        # (B, S, H)

    key_mask = attention_mask.astype(jnp.float32).reshape(Bq, 1, Sq)

    weights = (params["emb_ln_g"], params["emb_ln_b"],
               params["wq"], params["wk"], params["wv"],
               params["qb"], params["kb"], params["vb"],
               params["wo"], params["ob"], params["ln1_g"], params["ln1_b"],
               params["wi"], params["ib"], params["wfo"], params["fob"],
               params["ln2_g"], params["ln2_b"],
               params["cls_w"], params["cls_b"],
               params["out_w"], params["out_b"])

    def resident(a):                       # whole-array block, constant index map
        nd = a.ndim
        return pl.BlockSpec(a.shape, lambda b, _nd=nd: (0,) * _nd)

    kernel = functools.partial(_fused_xlmr_kernel, n_heads=NH, n_layers=L,
                               head_dim=D, eps=LN_EPS)

    logits = pl.pallas_call(
        kernel,
        out_shape=jax.ShapeDtypeStruct((Bq, 1, NUM_LABELS), jnp.float32),
        grid=(Bq,),
        in_specs=[pl.BlockSpec((1, Sq, H), lambda b: (b, 0, 0)),
                  pl.BlockSpec((1, 1, Sq), lambda b: (b, 0, 0))]
                 + [resident(w) for w in weights],
        out_specs=pl.BlockSpec((1, 1, NUM_LABELS), lambda b: (b, 0, 0)),
        compiler_params=pltpu.CompilerParams(
            dimension_semantics=("parallel",)),
    )(emb, key_mask, *weights)
    return logits.reshape(Bq, NUM_LABELS)


# ----------------------------- main ------------------------------------------
if __name__ == "__main__":
    key = jax.random.PRNGKey(0)
    k_ids, k_params = jax.random.split(key)

    input_ids = jax.random.randint(k_ids, (B, S), 2, VOCAB, dtype=jnp.int32)
    attention_mask = jnp.ones((B, S), jnp.int32)
    # pad the tail of the second example
    attention_mask = attention_mask.at[1, S - 4:].set(0)
    input_ids = input_ids.at[1, S - 4:].set(PAD_IDX)

    params = init_params(k_params)

    forward = jax.jit(xlmr_forward)
    logits = forward(params, input_ids, attention_mask)
    jax.block_until_ready(logits)

    assert logits.shape == (B, NUM_LABELS)
    assert bool(jnp.all(jnp.isfinite(logits)))
    print("KERNEL_OK")
</pallas_src>

<mosaic_0001>
module attributes {stable_mosaic.version = 11 : i64} {
  func.func @_fused_xlmr_kernel(%arg0: i32, %arg1: memref<1x16x64xf32, #tpu.memory_space<vmem>>, %arg2: memref<1x1x16xf32, #tpu.memory_space<vmem>>, %arg3: memref<1x64xf32, #tpu.memory_space<vmem>>, %arg4: memref<1x64xf32, #tpu.memory_space<vmem>>, %arg5: memref<2x4x64x16xbf16, #tpu.memory_space<vmem>>, %arg6: memref<2x4x64x16xbf16, #tpu.memory_space<vmem>>, %arg7: memref<2x4x64x16xbf16, #tpu.memory_space<vmem>>, %arg8: memref<2x4x1x16xf32, #tpu.memory_space<vmem>>, %arg9: memref<2x4x1x16xf32, #tpu.memory_space<vmem>>, %arg10: memref<2x4x1x16xf32, #tpu.memory_space<vmem>>, %arg11: memref<2x64x64xbf16, #tpu.memory_space<vmem>>, %arg12: memref<2x1x64xf32, #tpu.memory_space<vmem>>, %arg13: memref<2x1x64xf32, #tpu.memory_space<vmem>>, %arg14: memref<2x1x64xf32, #tpu.memory_space<vmem>>, %arg15: memref<2x64x128xbf16, #tpu.memory_space<vmem>>, %arg16: memref<2x1x128xf32, #tpu.memory_space<vmem>>, %arg17: memref<2x128x64xbf16, #tpu.memory_space<vmem>>, %arg18: memref<2x1x64xf32, #tpu.memory_space<vmem>>, %arg19: memref<2x1x64xf32, #tpu.memory_space<vmem>>, %arg20: memref<2x1x64xf32, #tpu.memory_space<vmem>>, %arg21: memref<64x64xbf16, #tpu.memory_space<vmem>>, %arg22: memref<1x64xf32, #tpu.memory_space<vmem>>, %arg23: memref<64x3xbf16, #tpu.memory_space<vmem>>, %arg24: memref<1x3xf32, #tpu.memory_space<vmem>>, %arg25: memref<1x1x3xf32, #tpu.memory_space<vmem>>) attributes {dimension_semantics = [#tpu.dimension_semantics<parallel>], iteration_bounds = array<i64: 2>, scalar_prefetch = 0 : i64, scratch_operands = 0 : i64, tpu.core_type = #tpu.core_type<tc>, window_params = [{transform_indices = @transform_0, window_bounds = array<i64: 1, 16, 64>}, {transform_indices = @transform_1, window_bounds = array<i64: 1, 1, 16>}, {pipeline_mode = #tpu.pipeline_mode<synchronous>, transform_indices = @transform_2, window_bounds = array<i64: 1, 64>}, {pipeline_mode = #tpu.pipeline_mode<synchronous>, transform_indices = @transform_3, window_bounds = array<i64: 1, 64>}, {pipeline_mode = #tpu.pipeline_mode<synchronous>, transform_indices = @transform_4, window_bounds = array<i64: 2, 4, 64, 16>}, {pipeline_mode = #tpu.pipeline_mode<synchronous>, transform_indices = @transform_5, window_bounds = array<i64: 2, 4, 64, 16>}, {pipeline_mode = #tpu.pipeline_mode<synchronous>, transform_indices = @transform_6, window_bounds = array<i64: 2, 4, 64, 16>}, {pipeline_mode = #tpu.pipeline_mode<synchronous>, transform_indices = @transform_7, window_bounds = array<i64: 2, 4, 1, 16>}, {pipeline_mode = #tpu.pipeline_mode<synchronous>, transform_indices = @transform_8, window_bounds = array<i64: 2, 4, 1, 16>}, {pipeline_mode = #tpu.pipeline_mode<synchronous>, transform_indices = @transform_9, window_bounds = array<i64: 2, 4, 1, 16>}, {pipeline_mode = #tpu.pipeline_mode<synchronous>, transform_indices = @transform_10, window_bounds = array<i64: 2, 64, 64>}, {pipeline_mode = #tpu.pipeline_mode<synchronous>, transform_indices = @transform_11, window_bounds = array<i64: 2, 1, 64>}, {pipeline_mode = #tpu.pipeline_mode<synchronous>, transform_indices = @transform_12, window_bounds = array<i64: 2, 1, 64>}, {pipeline_mode = #tpu.pipeline_mode<synchronous>, transform_indices = @transform_13, window_bounds = array<i64: 2, 1, 64>}, {pipeline_mode = #tpu.pipeline_mode<synchronous>, transform_indices = @transform_14, window_bounds = array<i64: 2, 64, 128>}, {pipeline_mode = #tpu.pipeline_mode<synchronous>, transform_indices = @transform_15, window_bounds = array<i64: 2, 1, 128>}, {pipeline_mode = #tpu.pipeline_mode<synchronous>, transform_indices = @transform_16, window_bounds = array<i64: 2, 128, 64>}, {pipeline_mode = #tpu.pipeline_mode<synchronous>, transform_indices = @transform_17, window_bounds = array<i64: 2, 1, 64>}, {pipeline_mode = #tpu.pipeline_mode<synchronous>, transform_indices = @transform_18, window_bounds = array<i64: 2, 1, 64>}, {pipeline_mode = #tpu.pipeline_mode<synchronous>, transform_indices = @transform_19, window_bounds = array<i64: 2, 1, 64>}, {pipeline_mode = #tpu.pipeline_mode<synchronous>, transform_indices = @transform_20, window_bounds = array<i64: 64, 64>}, {pipeline_mode = #tpu.pipeline_mode<synchronous>, transform_indices = @transform_21, window_bounds = array<i64: 1, 64>}, {pipeline_mode = #tpu.pipeline_mode<synchronous>, transform_indices = @transform_22, window_bounds = array<i64: 64, 3>}, {pipeline_mode = #tpu.pipeline_mode<synchronous>, transform_indices = @transform_23, window_bounds = array<i64: 1, 3>}, {transform_indices = @transform_24, window_bounds = array<i64: 1, 1, 3>}]} {
    %c0 = arith.constant 0 : index
    %c0_0 = arith.constant 0 : index
    %c0_1 = arith.constant 0 : index
    %0 = vector.load %arg2[%c0, %c0_0, %c0_1] : memref<1x1x16xf32, #tpu.memory_space<vmem>>, vector<1x1x16xf32>
    %1 = vector.shape_cast %0 : vector<1x1x16xf32> to vector<1x16xf32>
    %cst = arith.constant 1.000000e+00 : f32
    %2 = vector.broadcast %cst : f32 to vector<1x16xf32>
    %3 = arith.subf %1, %2 : vector<1x16xf32>
    %cst_2 = arith.constant 1.000000e+09 : f32
    %4 = vector.broadcast %cst_2 : f32 to vector<1x16xf32>
    %5 = arith.mulf %3, %4 : vector<1x16xf32>
    %c0_3 = arith.constant 0 : index
    %c0_4 = arith.constant 0 : index
    %c0_5 = arith.constant 0 : index
    %6 = vector.load %arg1[%c0_3, %c0_4, %c0_5] : memref<1x16x64xf32, #tpu.memory_space<vmem>>, vector<1x16x64xf32>
    %7 = vector.shape_cast %6 : vector<1x16x64xf32> to vector<16x64xf32>
    %c0_6 = arith.constant 0 : index
    %c0_7 = arith.constant 0 : index
    %8 = vector.load %arg3[%c0_6, %c0_7] : memref<1x64xf32, #tpu.memory_space<vmem>>, vector<1x64xf32>
    %c0_8 = arith.constant 0 : index
    %c0_9 = arith.constant 0 : index
    %9 = vector.load %arg4[%c0_8, %c0_9] : memref<1x64xf32, #tpu.memory_space<vmem>>, vector<1x64xf32>
    %cst_10 = arith.constant dense<0.000000e+00> : vector<16xf32>
    %10 = vector.multi_reduction <add>, %7, %cst_10 [1] : vector<16x64xf32> to vector<16xf32>
    %11 = vector.shape_cast %10 : vector<16xf32> to vector<16x1xf32>
    %cst_11 = arith.constant 6.400000e+01 : f32
    %12 = vector.broadcast %cst_11 : f32 to vector<16x1xf32>
    %13 = arith.divf %11, %12 : vector<16x1xf32>
    %14 = vector.broadcast %13 : vector<16x1xf32> to vector<16x64xf32>
    %15 = arith.subf %7, %14 : vector<16x64xf32>
    %16 = arith.mulf %15, %15 : vector<16x64xf32>
    %cst_12 = arith.constant dense<0.000000e+00> : vector<16xf32>
    %17 = vector.multi_reduction <add>, %16, %cst_12 [1] : vector<16x64xf32> to vector<16xf32>
    %18 = vector.shape_cast %17 : vector<16xf32> to vector<16x1xf32>
    %cst_13 = arith.constant 6.400000e+01 : f32
    %19 = vector.broadcast %cst_13 : f32 to vector<16x1xf32>
    %20 = arith.divf %18, %19 : vector<16x1xf32>
    %21 = vector.broadcast %13 : vector<16x1xf32> to vector<16x64xf32>
    %22 = arith.subf %7, %21 : vector<16x64xf32>
    %cst_14 = arith.constant 9.99999974E-6 : f32
    %23 = vector.broadcast %cst_14 : f32 to vector<16x1xf32>
    %24 = arith.addf %20, %23 : vector<16x1xf32>
    %25 = math.rsqrt %24 : vector<16x1xf32>
    %26 = vector.broadcast %25 : vector<16x1xf32> to vector<16x64xf32>
    %27 = arith.mulf %22, %26 : vector<16x64xf32>
    %28 = vector.broadcast %8 : vector<1x64xf32> to vector<16x64xf32>
    %29 = arith.mulf %27, %28 : vector<16x64xf32>
    %30 = vector.broadcast %9 : vector<1x64xf32> to vector<16x64xf32>
    %31 = arith.addf %29, %30 : vector<16x64xf32>
    %32 = arith.truncf %31 : vector<16x64xf32> to vector<16x64xbf16>
    %c0_15 = arith.constant 0 : index
    %c0_16 = arith.constant 0 : index
    %c0_17 = arith.constant 0 : index
    %c0_18 = arith.constant 0 : index
    %33 = vector.load %arg5[%c0_15, %c0_16, %c0_17, %c0_18] : memref<2x4x64x16xbf16, #tpu.memory_space<vmem>>, vector<1x1x64x16xbf16>
    %34 = vector.shape_cast %33 : vector<1x1x64x16xbf16> to vector<64x16xbf16>
    %cst_19 = arith.constant dense<0.000000e+00> : vector<16x16xf32>
    %35 = tpu.matmul %32, %34, %cst_19 {dimension_numbers = #tpu.dot_dimension_numbers<[1], [0], [0], [1], [0, 0, 1, 1], [], []>} : vector<16x64xbf16>, vector<64x16xbf16>, vector<16x16xf32> -> vector<16x16xf32>
    %c0_20 = arith.constant 0 : index
    %c0_21 = arith.constant 0 : index
    %c0_22 = arith.constant 0 : index
    %c0_23 = arith.constant 0 : index
    %36 = vector.load %arg8[%c0_20, %c0_21, %c0_22, %c0_23] : memref<2x4x1x16xf32, #tpu.memory_space<vmem>>, vector<1x1x1x16xf32>
    %37 = vector.shape_cast %36 : vector<1x1x1x16xf32> to vector<1x16xf32>
    %38 = vector.broadcast %37 : vector<1x16xf32> to vector<16x16xf32>
    %39 = arith.addf %35, %38 : vector<16x16xf32>
    %c0_24 = arith.constant 0 : index
    %c0_25 = arith.constant 0 : index
    %c0_26 = arith.constant 0 : index
    %c0_27 = arith.constant 0 : index
    %40 = vector.load %arg6[%c0_24, %c0_25, %c0_26, %c0_27] : memref<2x4x64x16xbf16, #tpu.memory_space<vmem>>, vector<1x1x64x16xbf16>
    %41 = vector.shape_cast %40 : vector<1x1x64x16xbf16> to vector<64x16xbf16>
    %cst_28 = arith.constant dense<0.000000e+00> : vector<16x16xf32>
    %42 = tpu.matmul %32, %41, %cst_28 {dimension_numbers = #tpu.dot_dimension_numbers<[1], [0], [0], [1], [0, 0, 1, 1], [], []>} : vector<16x64xbf16>, vector<64x16xbf16>, vector<16x16xf32> -> vector<16x16xf32>
    %c0_29 = arith.constant 0 : index
    %c0_30 = arith.constant 0 : index
    %c0_31 = arith.constant 0 : index
    %c0_32 = arith.constant 0 : index
    %43 = vector.load %arg9[%c0_29, %c0_30, %c0_31, %c0_32] : memref<2x4x1x16xf32, #tpu.memory_space<vmem>>, vector<1x1x1x16xf32>
    %44 = vector.shape_cast %43 : vector<1x1x1x16xf32> to vector<1x16xf32>
    %45 = vector.broadcast %44 : vector<1x16xf32> to vector<16x16xf32>
    %46 = arith.addf %42, %45 : vector<16x16xf32>
    %c0_33 = arith.constant 0 : index
    %c0_34 = arith.constant 0 : index
    %c0_35 = arith.constant 0 : index
    %c0_36 = arith.constant 0 : index
    %47 = vector.load %arg7[%c0_33, %c0_34, %c0_35, %c0_36] : memref<2x4x64x16xbf16, #tpu.memory_space<vmem>>, vector<1x1x64x16xbf16>
    %48 = vector.shape_cast %47 : vector<1x1x64x16xbf16> to vector<64x16xbf16>
    %cst_37 = arith.constant dense<0.000000e+00> : vector<16x16xf32>
    %49 = tpu.matmul %32, %48, %cst_37 {dimension_numbers = #tpu.dot_dimension_numbers<[1], [0], [0], [1], [0, 0, 1, 1], [], []>} : vector<16x64xbf16>, vector<64x16xbf16>, vector<16x16xf32> -> vector<16x16xf32>
    %c0_38 = arith.constant 0 : index
    %c0_39 = arith.constant 0 : index
    %c0_40 = arith.constant 0 : index
    %c0_41 = arith.constant 0 : index
    %50 = vector.load %arg10[%c0_38, %c0_39, %c0_40, %c0_41] : memref<2x4x1x16xf32, #tpu.memory_space<vmem>>, vector<1x1x1x16xf32>
    %51 = vector.shape_cast %50 : vector<1x1x1x16xf32> to vector<1x16xf32>
    %52 = vector.broadcast %51 : vector<1x16xf32> to vector<16x16xf32>
    %53 = arith.addf %49, %52 : vector<16x16xf32>
    %cst_42 = arith.constant 2.500000e-01 : f32
    %54 = vector.broadcast %cst_42 : f32 to vector<16x16xf32>
    %55 = arith.mulf %39, %54 : vector<16x16xf32>
    %56 = arith.truncf %55 : vector<16x16xf32> to vector<16x16xbf16>
    %57 = arith.truncf %46 : vector<16x16xf32> to vector<16x16xbf16>
    "tpu.trace_start"() <{level = 10 : i32, message = "qd,kd->qk"}> : () -> ()
    %cst_43 = arith.constant dense<0.000000e+00> : vector<16x16xf32>
    %58 = tpu.matmul %56, %57, %cst_43 {dimension_numbers = #tpu.dot_dimension_numbers<[1], [1], [0], [0], [0, 0, 1, 0], [], []>} : vector<16x16xbf16>, vector<16x16xbf16>, vector<16x16xf32> -> vector<16x16xf32>
    "tpu.trace_stop"() : () -> ()
    %59 = arith.truncf %53 : vector<16x16xf32> to vector<16x16xbf16>
    %c0_44 = arith.constant 0 : index
    %c1 = arith.constant 1 : index
    %c0_45 = arith.constant 0 : index
    %c0_46 = arith.constant 0 : index
    %60 = vector.load %arg5[%c0_44, %c1, %c0_45, %c0_46] : memref<2x4x64x16xbf16, #tpu.memory_space<vmem>>, vector<1x1x64x16xbf16>
    %61 = vector.shape_cast %60 : vector<1x1x64x16xbf16> to vector<64x16xbf16>
    %cst_47 = arith.constant dense<0.000000e+00> : vector<16x16xf32>
    %62 = tpu.matmul %32, %61, %cst_47 {dimension_numbers = #tpu.dot_dimension_numbers<[1], [0], [0], [1], [0, 0, 1, 1], [], []>} : vector<16x64xbf16>, vector<64x16xbf16>, vector<16x16xf32> -> vector<16x16xf32>
    %c0_48 = arith.constant 0 : index
    %c1_49 = arith.constant 1 : index
    %c0_50 = arith.constant 0 : index
    %c0_51 = arith.constant 0 : index
    %63 = vector.load %arg8[%c0_48, %c1_49, %c0_50, %c0_51] : memref<2x4x1x16xf32, #tpu.memory_space<vmem>>, vector<1x1x1x16xf32>
    %64 = vector.shape_cast %63 : vector<1x1x1x16xf32> to vector<1x16xf32>
    %65 = vector.broadcast %64 : vector<1x16xf32> to vector<16x16xf32>
    %66 = arith.addf %62, %65 : vector<16x16xf32>
    %c0_52 = arith.constant 0 : index
    %c1_53 = arith.constant 1 : index
    %c0_54 = arith.constant 0 : index
    %c0_55 = arith.constant 0 : index
    %67 = vector.load %arg6[%c0_52, %c1_53, %c0_54, %c0_55] : memref<2x4x64x16xbf16, #tpu.memory_space<vmem>>, vector<1x1x64x16xbf16>
    %68 = vector.shape_cast %67 : vector<1x1x64x16xbf16> to vector<64x16xbf16>
    %cst_56 = arith.constant dense<0.000000e+00> : vector<16x16xf32>
    %69 = tpu.matmul %32, %68, %cst_56 {dimension_numbers = #tpu.dot_dimension_numbers<[1], [0], [0], [1], [0, 0, 1, 1], [], []>} : vector<16x64xbf16>, vector<64x16xbf16>, vector<16x16xf32> -> vector<16x16xf32>
    %c0_57 = arith.constant 0 : index
    %c1_58 = arith.constant 1 : index
    %c0_59 = arith.constant 0 : index
    %c0_60 = arith.constant 0 : index
    %70 = vector.load %arg9[%c0_57, %c1_58, %c0_59, %c0_60] : memref<2x4x1x16xf32, #tpu.memory_space<vmem>>, vector<1x1x1x16xf32>
    %71 = vector.shape_cast %70 : vector<1x1x1x16xf32> to vector<1x16xf32>
    %72 = vector.broadcast %71 : vector<1x16xf32> to vector<16x16xf32>
    %73 = arith.addf %69, %72 : vector<16x16xf32>
    %c0_61 = arith.constant 0 : index
    %c1_62 = arith.constant 1 : index
    %c0_63 = arith.constant 0 : index
    %c0_64 = arith.constant 0 : index
    %74 = vector.load %arg7[%c0_61, %c1_62, %c0_63, %c0_64] : memref<2x4x64x16xbf16, #tpu.memory_space<vmem>>, vector<1x1x64x16xbf16>
    %75 = vector.shape_cast %74 : vector<1x1x64x16xbf16> to vector<64x16xbf16>
    %cst_65 = arith.constant dense<0.000000e+00> : vector<16x16xf32>
    %76 = tpu.matmul %32, %75, %cst_65 {dimension_numbers = #tpu.dot_dimension_numbers<[1], [0], [0], [1], [0, 0, 1, 1], [], []>} : vector<16x64xbf16>, vector<64x16xbf16>, vector<16x16xf32> -> vector<16x16xf32>
    %c0_66 = arith.constant 0 : index
    %c1_67 = arith.constant 1 : index
    %c0_68 = arith.constant 0 : index
    %c0_69 = arith.constant 0 : index
    %77 = vector.load %arg10[%c0_66, %c1_67, %c0_68, %c0_69] : memref<2x4x1x16xf32, #tpu.memory_space<vmem>>, vector<1x1x1x16xf32>
    %78 = vector.shape_cast %77 : vector<1x1x1x16xf32> to vector<1x16xf32>
    %79 = vector.broadcast %78 : vector<1x16xf32> to vector<16x16xf32>
    %80 = arith.addf %76, %79 : vector<16x16xf32>
    %cst_70 = arith.constant 2.500000e-01 : f32
    %81 = vector.broadcast %cst_70 : f32 to vector<16x16xf32>
    %82 = arith.mulf %66, %81 : vector<16x16xf32>
    %83 = arith.truncf %82 : vector<16x16xf32> to vector<16x16xbf16>
    %84 = arith.truncf %73 : vector<16x16xf32> to vector<16x16xbf16>
    "tpu.trace_start"() <{level = 10 : i32, message = "qd,kd->qk"}> : () -> ()
    %cst_71 = arith.constant dense<0.000000e+00> : vector<16x16xf32>
    %85 = tpu.matmul %83, %84, %cst_71 {dimension_numbers = #tpu.dot_dimension_numbers<[1], [1], [0], [0], [0, 0, 1, 0], [], []>} : vector<16x16xbf16>, vector<16x16xbf16>, vector<16x16xf32> -> vector<16x16xf32>
    "tpu.trace_stop"() : () -> ()
    %86 = arith.truncf %80 : vector<16x16xf32> to vector<16x16xbf16>
    %c0_72 = arith.constant 0 : index
    %c2 = arith.constant 2 : index
    %c0_73 = arith.constant 0 : index
    %c0_74 = arith.constant 0 : index
    %87 = vector.load %arg5[%c0_72, %c2, %c0_73, %c0_74] : memref<2x4x64x16xbf16, #tpu.memory_space<vmem>>, vector<1x1x64x16xbf16>
    %88 = vector.shape_cast %87 : vector<1x1x64x16xbf16> to vector<64x16xbf16>
    %cst_75 = arith.constant dense<0.000000e+00> : vector<16x16xf32>
    %89 = tpu.matmul %32, %88, %cst_75 {dimension_numbers = #tpu.dot_dimension_numbers<[1], [0], [0], [1], [0, 0, 1, 1], [], []>} : vector<16x64xbf16>, vector<64x16xbf16>, vector<16x16xf32> -> vector<16x16xf32>
    %c0_76 = arith.constant 0 : index
    %c2_77 = arith.constant 2 : index
    %c0_78 = arith.constant 0 : index
    %c0_79 = arith.constant 0 : index
    %90 = vector.load %arg8[%c0_76, %c2_77, %c0_78, %c0_79] : memref<2x4x1x16xf32, #tpu.memory_space<vmem>>, vector<1x1x1x16xf32>
    %91 = vector.shape_cast %90 : vector<1x1x1x16xf32> to vector<1x16xf32>
    %92 = vector.broadcast %91 : vector<1x16xf32> to vector<16x16xf32>
    %93 = arith.addf %89, %92 : vector<16x16xf32>
    %c0_80 = arith.constant 0 : index
    %c2_81 = arith.constant 2 : index
    %c0_82 = arith.constant 0 : index
    %c0_83 = arith.constant 0 : index
    %94 = vector.load %arg6[%c0_80, %c2_81, %c0_82, %c0_83] : memref<2x4x64x16xbf16, #tpu.memory_space<vmem>>, vector<1x1x64x16xbf16>
    %95 = vector.shape_cast %94 : vector<1x1x64x16xbf16> to vector<64x16xbf16>
    %cst_84 = arith.constant dense<0.000000e+00> : vector<16x16xf32>
    %96 = tpu.matmul %32, %95, %cst_84 {dimension_numbers = #tpu.dot_dimension_numbers<[1], [0], [0], [1], [0, 0, 1, 1], [], []>} : vector<16x64xbf16>, vector<64x16xbf16>, vector<16x16xf32> -> vector<16x16xf32>
    %c0_85 = arith.constant 0 : index
    %c2_86 = arith.constant 2 : index
    %c0_87 = arith.constant 0 : index
    %c0_88 = arith.constant 0 : index
    %97 = vector.load %arg9[%c0_85, %c2_86, %c0_87, %c0_88] : memref<2x4x1x16xf32, #tpu.memory_space<vmem>>, vector<1x1x1x16xf32>
    %98 = vector.shape_cast %97 : vector<1x1x1x16xf32> to vector<1x16xf32>
    %99 = vector.broadcast %98 : vector<1x16xf32> to vector<16x16xf32>
    %100 = arith.addf %96, %99 : vector<16x16xf32>
    %c0_89 = arith.constant 0 : index
    %c2_90 = arith.constant 2 : index
    %c0_91 = arith.constant 0 : index
    %c0_92 = arith.constant 0 : index
    %101 = vector.load %arg7[%c0_89, %c2_90, %c0_91, %c0_92] : memref<2x4x64x16xbf16, #tpu.memory_space<vmem>>, vector<1x1x64x16xbf16>
    %102 = vector.shape_cast %101 : vector<1x1x64x16xbf16> to vector<64x16xbf16>
    %cst_93 = arith.constant dense<0.000000e+00> : vector<16x16xf32>
    %103 = tpu.matmul %32, %102, %cst_93 {dimension_numbers = #tpu.dot_dimension_numbers<[1], [0], [0], [1], [0, 0, 1, 1], [], []>} : vector<16x64xbf16>, vector<64x16xbf16>, vector<16x16xf32> -> vector<16x16xf32>
    %c0_94 = arith.constant 0 : index
    %c2_95 = arith.constant 2 : index
    %c0_96 = arith.constant 0 : index
    %c0_97 = arith.constant 0 : index
    %104 = vector.load %arg10[%c0_94, %c2_95, %c0_96, %c0_97] : memref<2x4x1x16xf32, #tpu.memory_space<vmem>>, vector<1x1x1x16xf32>
    %105 = vector.shape_cast %104 : vector<1x1x1x16xf32> to vector<1x16xf32>
    %106 = vector.broadcast %105 : vector<1x16xf32> to vector<16x16xf32>
    %107 = arith.addf %103, %106 : vector<16x16xf32>
    %cst_98 = arith.constant 2.500000e-01 : f32
    %108 = vector.broadcast %cst_98 : f32 to vector<16x16xf32>
    %109 = arith.mulf %93, %108 : vector<16x16xf32>
    %110 = arith.truncf %109 : vector<16x16xf32> to vector<16x16xbf16>
    %111 = arith.truncf %100 : vector<16x16xf32> to vector<16x16xbf16>
    "tpu.trace_start"() <{level = 10 : i32, message = "qd,kd->qk"}> : () -> ()
    %cst_99 = arith.constant dense<0.000000e+00> : vector<16x16xf32>
    %112 = tpu.matmul %110, %111, %cst_99 {dimension_numbers = #tpu.dot_dimension_numbers<[1], [1], [0], [0], [0, 0, 1, 0], [], []>} : vector<16x16xbf16>, vector<16x16xbf16>, vector<16x16xf32> -> vector<16x16xf32>
    "tpu.trace_stop"() : () -> ()
    %113 = arith.truncf %107 : vector<16x16xf32> to vector<16x16xbf16>
    %c0_100 = arith.constant 0 : index
    %c3 = arith.constant 3 : index
    %c0_101 = arith.constant 0 : index
    %c0_102 = arith.constant 0 : index
    %114 = vector.load %arg5[%c0_100, %c3, %c0_101, %c0_102] : memref<2x4x64x16xbf16, #tpu.memory_space<vmem>>, vector<1x1x64x16xbf16>
    %115 = vector.shape_cast %114 : vector<1x1x64x16xbf16> to vector<64x16xbf16>
    %cst_103 = arith.constant dense<0.000000e+00> : vector<16x16xf32>
    %116 = tpu.matmul %32, %115, %cst_103 {dimension_numbers = #tpu.dot_dimension_numbers<[1], [0], [0], [1], [0, 0, 1, 1], [], []>} : vector<16x64xbf16>, vector<64x16xbf16>, vector<16x16xf32> -> vector<16x16xf32>
    %c0_104 = arith.constant 0 : index
    %c3_105 = arith.constant 3 : index
    %c0_106 = arith.constant 0 : index
    %c0_107 = arith.constant 0 : index
    %117 = vector.load %arg8[%c0_104, %c3_105, %c0_106, %c0_107] : memref<2x4x1x16xf32, #tpu.memory_space<vmem>>, vector<1x1x1x16xf32>
    %118 = vector.shape_cast %117 : vector<1x1x1x16xf32> to vector<1x16xf32>
    %119 = vector.broadcast %118 : vector<1x16xf32> to vector<16x16xf32>
    %120 = arith.addf %116, %119 : vector<16x16xf32>
    %c0_108 = arith.constant 0 : index
    %c3_109 = arith.constant 3 : index
    %c0_110 = arith.constant 0 : index
    %c0_111 = arith.constant 0 : index
    %121 = vector.load %arg6[%c0_108, %c3_109, %c0_110, %c0_111] : memref<2x4x64x16xbf16, #tpu.memory_space<vmem>>, vector<1x1x64x16xbf16>
    %122 = vector.shape_cast %121 : vector<1x1x64x16xbf16> to vector<64x16xbf16>
    %cst_112 = arith.constant dense<0.000000e+00> : vector<16x16xf32>
    %123 = tpu.matmul %32, %122, %cst_112 {dimension_numbers = #tpu.dot_dimension_numbers<[1], [0], [0], [1], [0, 0, 1, 1], [], []>} : vector<16x64xbf16>, vector<64x16xbf16>, vector<16x16xf32> -> vector<16x16xf32>
    %c0_113 = arith.constant 0 : index
    %c3_114 = arith.constant 3 : index
    %c0_115 = arith.constant 0 : index
    %c0_116 = arith.constant 0 : index
    %124 = vector.load %arg9[%c0_113, %c3_114, %c0_115, %c0_116] : memref<2x4x1x16xf32, #tpu.memory_space<vmem>>, vector<1x1x1x16xf32>
    %125 = vector.shape_cast %124 : vector<1x1x1x16xf32> to vector<1x16xf32>
    %126 = vector.broadcast %125 : vector<1x16xf32> to vector<16x16xf32>
    %127 = arith.addf %123, %126 : vector<16x16xf32>
    %c0_117 = arith.constant 0 : index
    %c3_118 = arith.constant 3 : index
    %c0_119 = arith.constant 0 : index
    %c0_120 = arith.constant 0 : index
    %128 = vector.load %arg7[%c0_117, %c3_118, %c0_119, %c0_120] : memref<2x4x64x16xbf16, #tpu.memory_space<vmem>>, vector<1x1x64x16xbf16>
    %129 = vector.shape_cast %128 : vector<1x1x64x16xbf16> to vector<64x16xbf16>
    %cst_121 = arith.constant dense<0.000000e+00> : vector<16x16xf32>
    %130 = tpu.matmul %32, %129, %cst_121 {dimension_numbers = #tpu.dot_dimension_numbers<[1], [0], [0], [1], [0, 0, 1, 1], [], []>} : vector<16x64xbf16>, vector<64x16xbf16>, vector<16x16xf32> -> vector<16x16xf32>
    %c0_122 = arith.constant 0 : index
    %c3_123 = arith.constant 3 : index
    %c0_124 = arith.constant 0 : index
    %c0_125 = arith.constant 0 : index
    %131 = vector.load %arg10[%c0_122, %c3_123, %c0_124, %c0_125] : memref<2x4x1x16xf32, #tpu.memory_space<vmem>>, vector<1x1x1x16xf32>
    %132 = vector.shape_cast %131 : vector<1x1x1x16xf32> to vector<1x16xf32>
    %133 = vector.broadcast %132 : vector<1x16xf32> to vector<16x16xf32>
    %134 = arith.addf %130, %133 : vector<16x16xf32>
    %cst_126 = arith.constant 2.500000e-01 : f32
    %135 = vector.broadcast %cst_126 : f32 to vector<16x16xf32>
    %136 = arith.mulf %120, %135 : vector<16x16xf32>
    %137 = arith.truncf %136 : vector<16x16xf32> to vector<16x16xbf16>
    %138 = arith.truncf %127 : vector<16x16xf32> to vector<16x16xbf16>
    "tpu.trace_start"() <{level = 10 : i32, message = "qd,kd->qk"}> : () -> ()
    %cst_127 = arith.constant dense<0.000000e+00> : vector<16x16xf32>
    %139 = tpu.matmul %137, %138, %cst_127 {dimension_numbers = #tpu.dot_dimension_numbers<[1], [1], [0], [0], [0, 0, 1, 0], [], []>} : vector<16x16xbf16>, vector<16x16xbf16>, vector<16x16xf32> -> vector<16x16xf32>
    "tpu.trace_stop"() : () -> ()
    %140 = arith.truncf %134 : vector<16x16xf32> to vector<16x16xbf16>
    %141 = tpu.concatenate %58, %85, %112, %139 in 0 : vector<16x16xf32>, vector<16x16xf32>, vector<16x16xf32>, vector<16x16xf32> -> vector<64x16xf32>
    %142 = vector.broadcast %5 : vector<1x16xf32> to vector<64x16xf32>
    %143 = arith.addf %141, %142 : vector<64x16xf32>
    %cst_128 = arith.constant dense<0xFF800000> : vector<64xf32>
    %144 = vector.multi_reduction <maximumf>, %143, %cst_128 [1] : vector<64x16xf32> to vector<64xf32>
    %145 = vector.shape_cast %144 : vector<64xf32> to vector<64x1xf32>
    %146 = vector.broadcast %145 : vector<64x1xf32> to vector<64x16xf32>
    %147 = arith.subf %143, %146 : vector<64x16xf32>
    %148 = math.exp %147 : vector<64x16xf32>
    %cst_129 = arith.constant dense<0.000000e+00> : vector<64xf32>
    %149 = vector.multi_reduction <add>, %148, %cst_129 [1] : vector<64x16xf32> to vector<64xf32>
    %150 = vector.shape_cast %149 : vector<64xf32> to vector<64x1xf32>
    %151 = vector.broadcast %150 : vector<64x1xf32> to vector<64x16xf32>
    %152 = arith.divf %148, %151 : vector<64x16xf32>
    %153 = vector.extract_strided_slice %152 {offsets = [0, 0], sizes = [16, 16], strides = [1, 1]} : vector<64x16xf32> to vector<16x16xf32>
    %154 = arith.truncf %153 : vector<16x16xf32> to vector<16x16xbf16>
    %cst_130 = arith.constant dense<0.000000e+00> : vector<16x16xf32>
    %155 = tpu.matmul %154, %59, %cst_130 {dimension_numbers = #tpu.dot_dimension_numbers<[1], [0], [0], [1], [0, 0, 1, 1], [], []>} : vector<16x16xbf16>, vector<16x16xbf16>, vector<16x16xf32> -> vector<16x16xf32>
    %156 = vector.extract_strided_slice %152 {offsets = [16, 0], sizes = [16, 16], strides = [1, 1]} : vector<64x16xf32> to vector<16x16xf32>
    %157 = arith.truncf %156 : vector<16x16xf32> to vector<16x16xbf16>
    %cst_131 = arith.constant dense<0.000000e+00> : vector<16x16xf32>
    %158 = tpu.matmul %157, %86, %cst_131 {dimension_numbers = #tpu.dot_dimension_numbers<[1], [0], [0], [1], [0, 0, 1, 1], [], []>} : vector<16x16xbf16>, vector<16x16xbf16>, vector<16x16xf32> -> vector<16x16xf32>
    %159 = vector.extract_strided_slice %152 {offsets = [32, 0], sizes = [16, 16], strides = [1, 1]} : vector<64x16xf32> to vector<16x16xf32>
    %160 = arith.truncf %159 : vector<16x16xf32> to vector<16x16xbf16>
    %cst_132 = arith.constant dense<0.000000e+00> : vector<16x16xf32>
    %161 = tpu.matmul %160, %113, %cst_132 {dimension_numbers = #tpu.dot_dimension_numbers<[1], [0], [0], [1], [0, 0, 1, 1], [], []>} : vector<16x16xbf16>, vector<16x16xbf16>, vector<16x16xf32> -> vector<16x16xf32>
    %162 = vector.extract_strided_slice %152 {offsets = [48, 0], sizes = [16, 16], strides = [1, 1]} : vector<64x16xf32> to vector<16x16xf32>
    %163 = arith.truncf %162 : vector<16x16xf32> to vector<16x16xbf16>
    %cst_133 = arith.constant dense<0.000000e+00> : vector<16x16xf32>
    %164 = tpu.matmul %163, %140, %cst_133 {dimension_numbers = #tpu.dot_dimension_numbers<[1], [0], [0], [1], [0, 0, 1, 1], [], []>} : vector<16x16xbf16>, vector<16x16xbf16>, vector<16x16xf32> -> vector<16x16xf32>
    %165 = tpu.concatenate %155, %158, %161, %164 in 1 : vector<16x16xf32>, vector<16x16xf32>, vector<16x16xf32>, vector<16x16xf32> -> vector<16x64xf32>
    %166 = arith.truncf %165 : vector<16x64xf32> to vector<16x64xbf16>
    %c0_134 = arith.constant 0 : index
    %c0_135 = arith.constant 0 : index
    %c0_136 = arith.constant 0 : index
    %167 = vector.load %arg11[%c0_134, %c0_135, %c0_136] : memref<2x64x64xbf16, #tpu.memory_space<vmem>>, vector<1x64x64xbf16>
    %168 = vector.shape_cast %167 : vector<1x64x64xbf16> to vector<64x64xbf16>
    %cst_137 = arith.constant dense<0.000000e+00> : vector<16x64xf32>
    %169 = tpu.matmul %166, %168, %cst_137 {dimension_numbers = #tpu.dot_dimension_numbers<[1], [0], [0], [1], [0, 0, 1, 1], [], []>} : vector<16x64xbf16>, vector<64x64xbf16>, vector<16x64xf32> -> vector<16x64xf32>
    %c0_138 = arith.constant 0 : index
    %c0_139 = arith.constant 0 : index
    %c0_140 = arith.constant 0 : index
    %170 = vector.load %arg12[%c0_138, %c0_139, %c0_140] : memref<2x1x64xf32, #tpu.memory_space<vmem>>, vector<1x1x64xf32>
    %171 = vector.shape_cast %170 : vector<1x1x64xf32> to vector<1x64xf32>
    %172 = vector.broadcast %171 : vector<1x64xf32> to vector<16x64xf32>
    %173 = arith.addf %169, %172 : vector<16x64xf32>
    %174 = arith.addf %173, %31 : vector<16x64xf32>
    %c0_141 = arith.constant 0 : index
    %c0_142 = arith.constant 0 : index
    %c0_143 = arith.constant 0 : index
    %175 = vector.load %arg13[%c0_141, %c0_142, %c0_143] : memref<2x1x64xf32, #tpu.memory_space<vmem>>, vector<1x1x64xf32>
    %176 = vector.shape_cast %175 : vector<1x1x64xf32> to vector<1x64xf32>
    %c0_144 = arith.constant 0 : index
    %c0_145 = arith.constant 0 : index
    %c0_146 = arith.constant 0 : index
    %177 = vector.load %arg14[%c0_144, %c0_145, %c0_146] : memref<2x1x64xf32, #tpu.memory_space<vmem>>, vector<1x1x64xf32>
    %178 = vector.shape_cast %177 : vector<1x1x64xf32> to vector<1x64xf32>
    %cst_147 = arith.constant dense<0.000000e+00> : vector<16xf32>
    %179 = vector.multi_reduction <add>, %174, %cst_147 [1] : vector<16x64xf32> to vector<16xf32>
    %180 = vector.shape_cast %179 : vector<16xf32> to vector<16x1xf32>
    %cst_148 = arith.constant 6.400000e+01 : f32
    %181 = vector.broadcast %cst_148 : f32 to vector<16x1xf32>
    %182 = arith.divf %180, %181 : vector<16x1xf32>
    %183 = vector.broadcast %182 : vector<16x1xf32> to vector<16x64xf32>
    %184 = arith.subf %174, %183 : vector<16x64xf32>
    %185 = arith.mulf %184, %184 : vector<16x64xf32>
    %cst_149 = arith.constant dense<0.000000e+00> : vector<16xf32>
    %186 = vector.multi_reduction <add>, %185, %cst_149 [1] : vector<16x64xf32> to vector<16xf32>
    %187 = vector.shape_cast %186 : vector<16xf32> to vector<16x1xf32>
    %cst_150 = arith.constant 6.400000e+01 : f32
    %188 = vector.broadcast %cst_150 : f32 to vector<16x1xf32>
    %189 = arith.divf %187, %188 : vector<16x1xf32>
    %190 = vector.broadcast %182 : vector<16x1xf32> to vector<16x64xf32>
    %191 = arith.subf %174, %190 : vector<16x64xf32>
    %cst_151 = arith.constant 9.99999974E-6 : f32
    %192 = vector.broadcast %cst_151 : f32 to vector<16x1xf32>
    %193 = arith.addf %189, %192 : vector<16x1xf32>
    %194 = math.rsqrt %193 : vector<16x1xf32>
    %195 = vector.broadcast %194 : vector<16x1xf32> to vector<16x64xf32>
    %196 = arith.mulf %191, %195 : vector<16x64xf32>
    %197 = vector.broadcast %176 : vector<1x64xf32> to vector<16x64xf32>
    %198 = arith.mulf %196, %197 : vector<16x64xf32>
    %199 = vector.broadcast %178 : vector<1x64xf32> to vector<16x64xf32>
    %200 = arith.addf %198, %199 : vector<16x64xf32>
    %201 = arith.truncf %200 : vector<16x64xf32> to vector<16x64xbf16>
    %c0_152 = arith.constant 0 : index
    %c0_153 = arith.constant 0 : index
    %c0_154 = arith.constant 0 : index
    %202 = vector.load %arg15[%c0_152, %c0_153, %c0_154] : memref<2x64x128xbf16, #tpu.memory_space<vmem>>, vector<1x64x128xbf16>
    %203 = vector.shape_cast %202 : vector<1x64x128xbf16> to vector<64x128xbf16>
    %cst_155 = arith.constant dense<0.000000e+00> : vector<16x128xf32>
    %204 = tpu.matmul %201, %203, %cst_155 {dimension_numbers = #tpu.dot_dimension_numbers<[1], [0], [0], [1], [0, 0, 1, 1], [], []>} : vector<16x64xbf16>, vector<64x128xbf16>, vector<16x128xf32> -> vector<16x128xf32>
    %c0_156 = arith.constant 0 : index
    %c0_157 = arith.constant 0 : index
    %c0_158 = arith.constant 0 : index
    %205 = vector.load %arg16[%c0_156, %c0_157, %c0_158] : memref<2x1x128xf32, #tpu.memory_space<vmem>>, vector<1x1x128xf32>
    %206 = vector.shape_cast %205 : vector<1x1x128xf32> to vector<1x128xf32>
    %207 = vector.broadcast %206 : vector<1x128xf32> to vector<16x128xf32>
    %208 = arith.addf %204, %207 : vector<16x128xf32>
    %cst_159 = arith.constant 0.707106769 : f32
    %209 = vector.broadcast %cst_159 : f32 to vector<16x128xf32>
    %210 = arith.mulf %208, %209 : vector<16x128xf32>
    %211 = math.absf %210 : vector<16x128xf32>
    %cst_160 = arith.constant 0.327591091 : f32
    %212 = vector.broadcast %cst_160 : f32 to vector<16x128xf32>
    %213 = arith.mulf %212, %211 : vector<16x128xf32>
    %cst_161 = arith.constant 1.000000e+00 : f32
    %214 = vector.broadcast %cst_161 : f32 to vector<16x128xf32>
    %215 = arith.addf %214, %213 : vector<16x128xf32>
    %cst_162 = arith.constant 1.000000e+00 : f32
    %216 = vector.broadcast %cst_162 : f32 to vector<16x128xf32>
    %217 = arith.divf %216, %215 : vector<16x128xf32>
    %cst_163 = arith.constant 1.06140542 : f32
    %218 = vector.broadcast %cst_163 : f32 to vector<16x128xf32>
    %219 = arith.mulf %218, %217 : vector<16x128xf32>
    %cst_164 = arith.constant 1.45315206 : f32
    %220 = vector.broadcast %cst_164 : f32 to vector<16x128xf32>
    %221 = arith.subf %219, %220 : vector<16x128xf32>
    %222 = arith.mulf %221, %217 : vector<16x128xf32>
    %cst_165 = arith.constant 1.42141378 : f32
    %223 = vector.broadcast %cst_165 : f32 to vector<16x128xf32>
    %224 = arith.addf %222, %223 : vector<16x128xf32>
    %225 = arith.mulf %224, %217 : vector<16x128xf32>
    %cst_166 = arith.constant 0.284496725 : f32
    %226 = vector.broadcast %cst_166 : f32 to vector<16x128xf32>
    %227 = arith.subf %225, %226 : vector<16x128xf32>
    %228 = arith.mulf %227, %217 : vector<16x128xf32>
    %cst_167 = arith.constant 0.254829586 : f32
    %229 = vector.broadcast %cst_167 : f32 to vector<16x128xf32>
    %230 = arith.addf %228, %229 : vector<16x128xf32>
    %231 = arith.mulf %230, %217 : vector<16x128xf32>
    %cst_168 = arith.constant 0.000000e+00 : f32
    %232 = vector.broadcast %cst_168 : f32 to vector<16x128xf32>
    %233 = arith.subf %232, %211 : vector<16x128xf32>
    %234 = arith.mulf %233, %211 : vector<16x128xf32>
    %235 = math.exp %234 : vector<16x128xf32>
    %236 = arith.mulf %231, %235 : vector<16x128xf32>
    %cst_169 = arith.constant 1.000000e+00 : f32
    %237 = vector.broadcast %cst_169 : f32 to vector<16x128xf32>
    %238 = arith.subf %237, %236 : vector<16x128xf32>
    %cst_170 = arith.constant 0.000000e+00 : f32
    %239 = vector.broadcast %cst_170 : f32 to vector<16x128xf32>
    %240 = arith.cmpf oge, %210, %239 : vector<16x128xf32>
    %cst_171 = arith.constant 0.000000e+00 : f32
    %241 = vector.broadcast %cst_171 : f32 to vector<16x128xf32>
    %242 = arith.subf %241, %238 : vector<16x128xf32>
    %243 = arith.select %240, %238, %242 : vector<16x128xi1>, vector<16x128xf32>
    %cst_172 = arith.constant 5.000000e-01 : f32
    %244 = vector.broadcast %cst_172 : f32 to vector<16x128xf32>
    %245 = arith.mulf %244, %208 : vector<16x128xf32>
    %cst_173 = arith.constant 1.000000e+00 : f32
    %246 = vector.broadcast %cst_173 : f32 to vector<16x128xf32>
    %247 = arith.addf %246, %243 : vector<16x128xf32>
    %248 = arith.mulf %245, %247 : vector<16x128xf32>
    %249 = arith.truncf %248 : vector<16x128xf32> to vector<16x128xbf16>
    %c0_174 = arith.constant 0 : index
    %c0_175 = arith.constant 0 : index
    %c0_176 = arith.constant 0 : index
    %250 = vector.load %arg17[%c0_174, %c0_175, %c0_176] : memref<2x128x64xbf16, #tpu.memory_space<vmem>>, vector<1x128x64xbf16>
    %251 = vector.shape_cast %250 : vector<1x128x64xbf16> to vector<128x64xbf16>
    %cst_177 = arith.constant dense<0.000000e+00> : vector<16x64xf32>
    %252 = tpu.matmul %249, %251, %cst_177 {dimension_numbers = #tpu.dot_dimension_numbers<[1], [0], [0], [1], [0, 0, 1, 1], [], []>} : vector<16x128xbf16>, vector<128x64xbf16>, vector<16x64xf32> -> vector<16x64xf32>
    %c0_178 = arith.constant 0 : index
    %c0_179 = arith.constant 0 : index
    %c0_180 = arith.constant 0 : index
    %253 = vector.load %arg18[%c0_178, %c0_179, %c0_180] : memref<2x1x64xf32, #tpu.memory_space<vmem>>, vector<1x1x64xf32>
    %254 = vector.shape_cast %253 : vector<1x1x64xf32> to vector<1x64xf32>
    %255 = vector.broadcast %254 : vector<1x64xf32> to vector<16x64xf32>
    %256 = arith.addf %252, %255 : vector<16x64xf32>
    %257 = arith.addf %256, %200 : vector<16x64xf32>
    %c0_181 = arith.constant 0 : index
    %c0_182 = arith.constant 0 : index
    %c0_183 = arith.constant 0 : index
    %258 = vector.load %arg19[%c0_181, %c0_182, %c0_183] : memref<2x1x64xf32, #tpu.memory_space<vmem>>, vector<1x1x64xf32>
    %259 = vector.shape_cast %258 : vector<1x1x64xf32> to vector<1x64xf32>
    %c0_184 = arith.constant 0 : index
    %c0_185 = arith.constant 0 : index
    %c0_186 = arith.constant 0 : index
    %260 = vector.load %arg20[%c0_184, %c0_185, %c0_186] : memref<2x1x64xf32, #tpu.memory_space<vmem>>, vector<1x1x64xf32>
    %261 = vector.shape_cast %260 : vector<1x1x64xf32> to vector<1x64xf32>
    %cst_187 = arith.constant dense<0.000000e+00> : vector<16xf32>
    %262 = vector.multi_reduction <add>, %257, %cst_187 [1] : vector<16x64xf32> to vector<16xf32>
    %263 = vector.shape_cast %262 : vector<16xf32> to vector<16x1xf32>
    %cst_188 = arith.constant 6.400000e+01 : f32
    %264 = vector.broadcast %cst_188 : f32 to vector<16x1xf32>
    %265 = arith.divf %263, %264 : vector<16x1xf32>
    %266 = vector.broadcast %265 : vector<16x1xf32> to vector<16x64xf32>
    %267 = arith.subf %257, %266 : vector<16x64xf32>
    %268 = arith.mulf %267, %267 : vector<16x64xf32>
    %cst_189 = arith.constant dense<0.000000e+00> : vector<16xf32>
    %269 = vector.multi_reduction <add>, %268, %cst_189 [1] : vector<16x64xf32> to vector<16xf32>
    %270 = vector.shape_cast %269 : vector<16xf32> to vector<16x1xf32>
    %cst_190 = arith.constant 6.400000e+01 : f32
    %271 = vector.broadcast %cst_190 : f32 to vector<16x1xf32>
    %272 = arith.divf %270, %271 : vector<16x1xf32>
    %273 = vector.broadcast %265 : vector<16x1xf32> to vector<16x64xf32>
    %274 = arith.subf %257, %273 : vector<16x64xf32>
    %cst_191 = arith.constant 9.99999974E-6 : f32
    %275 = vector.broadcast %cst_191 : f32 to vector<16x1xf32>
    %276 = arith.addf %272, %275 : vector<16x1xf32>
    %277 = math.rsqrt %276 : vector<16x1xf32>
    %278 = vector.broadcast %277 : vector<16x1xf32> to vector<16x64xf32>
    %279 = arith.mulf %274, %278 : vector<16x64xf32>
    %280 = vector.broadcast %259 : vector<1x64xf32> to vector<16x64xf32>
    %281 = arith.mulf %279, %280 : vector<16x64xf32>
    %282 = vector.broadcast %261 : vector<1x64xf32> to vector<16x64xf32>
    %283 = arith.addf %281, %282 : vector<16x64xf32>
    %284 = arith.truncf %283 : vector<16x64xf32> to vector<16x64xbf16>
    %c1_192 = arith.constant 1 : index
    %c0_193 = arith.constant 0 : index
    %c0_194 = arith.constant 0 : index
    %c0_195 = arith.constant 0 : index
    %285 = vector.load %arg5[%c1_192, %c0_193, %c0_194, %c0_195] : memref<2x4x64x16xbf16, #tpu.memory_space<vmem>>, vector<1x1x64x16xbf16>
    %286 = vector.shape_cast %285 : vector<1x1x64x16xbf16> to vector<64x16xbf16>
    %cst_196 = arith.constant dense<0.000000e+00> : vector<16x16xf32>
    %287 = tpu.matmul %284, %286, %cst_196 {dimension_numbers = #tpu.dot_dimension_numbers<[1], [0], [0], [1], [0, 0, 1, 1], [], []>} : vector<16x64xbf16>, vector<64x16xbf16>, vector<16x16xf32> -> vector<16x16xf32>
    %c1_197 = arith.constant 1 : index
    %c0_198 = arith.constant 0 : index
    %c0_199 = arith.constant 0 : index
    %c0_200 = arith.constant 0 : index
    %288 = vector.load %arg8[%c1_197, %c0_198, %c0_199, %c0_200] : memref<2x4x1x16xf32, #tpu.memory_space<vmem>>, vector<1x1x1x16xf32>
    %289 = vector.shape_cast %288 : vector<1x1x1x16xf32> to vector<1x16xf32>
    %290 = vector.broadcast %289 : vector<1x16xf32> to vector<16x16xf32>
    %291 = arith.addf %287, %290 : vector<16x16xf32>
    %c1_201 = arith.constant 1 : index
    %c0_202 = arith.constant 0 : index
    %c0_203 = arith.constant 0 : index
    %c0_204 = arith.constant 0 : index
    %292 = vector.load %arg6[%c1_201, %c0_202, %c0_203, %c0_204] : memref<2x4x64x16xbf16, #tpu.memory_space<vmem>>, vector<1x1x64x16xbf16>
    %293 = vector.shape_cast %292 : vector<1x1x64x16xbf16> to vector<64x16xbf16>
    %cst_205 = arith.constant dense<0.000000e+00> : vector<16x16xf32>
    %294 = tpu.matmul %284, %293, %cst_205 {dimension_numbers = #tpu.dot_dimension_numbers<[1], [0], [0], [1], [0, 0, 1, 1], [], []>} : vector<16x64xbf16>, vector<64x16xbf16>, vector<16x16xf32> -> vector<16x16xf32>
    %c1_206 = arith.constant 1 : index
    %c0_207 = arith.constant 0 : index
    %c0_208 = arith.constant 0 : index
    %c0_209 = arith.constant 0 : index
    %295 = vector.load %arg9[%c1_206, %c0_207, %c0_208, %c0_209] : memref<2x4x1x16xf32, #tpu.memory_space<vmem>>, vector<1x1x1x16xf32>
    %296 = vector.shape_cast %295 : vector<1x1x1x16xf32> to vector<1x16xf32>
    %297 = vector.broadcast %296 : vector<1x16xf32> to vector<16x16xf32>
    %298 = arith.addf %294, %297 : vector<16x16xf32>
    %c1_210 = arith.constant 1 : index
    %c0_211 = arith.constant 0 : index
    %c0_212 = arith.constant 0 : index
    %c0_213 = arith.constant 0 : index
    %299 = vector.load %arg7[%c1_210, %c0_211, %c0_212, %c0_213] : memref<2x4x64x16xbf16, #tpu.memory_space<vmem>>, vector<1x1x64x16xbf16>
    %300 = vector.shape_cast %299 : vector<1x1x64x16xbf16> to vector<64x16xbf16>
    %cst_214 = arith.constant dense<0.000000e+00> : vector<16x16xf32>
    %301 = tpu.matmul %284, %300, %cst_214 {dimension_numbers = #tpu.dot_dimension_numbers<[1], [0], [0], [1], [0, 0, 1, 1], [], []>} : vector<16x64xbf16>, vector<64x16xbf16>, vector<16x16xf32> -> vector<16x16xf32>
    %c1_215 = arith.constant 1 : index
    %c0_216 = arith.constant 0 : index
    %c0_217 = arith.constant 0 : index
    %c0_218 = arith.constant 0 : index
    %302 = vector.load %arg10[%c1_215, %c0_216, %c0_217, %c0_218] : memref<2x4x1x16xf32, #tpu.memory_space<vmem>>, vector<1x1x1x16xf32>
    %303 = vector.shape_cast %302 : vector<1x1x1x16xf32> to vector<1x16xf32>
    %304 = vector.broadcast %303 : vector<1x16xf32> to vector<16x16xf32>
    %305 = arith.addf %301, %304 : vector<16x16xf32>
    %cst_219 = arith.constant 2.500000e-01 : f32
    %306 = vector.broadcast %cst_219 : f32 to vector<16x16xf32>
    %307 = arith.mulf %291, %306 : vector<16x16xf32>
    %308 = arith.truncf %307 : vector<16x16xf32> to vector<16x16xbf16>
    %309 = arith.truncf %298 : vector<16x16xf32> to vector<16x16xbf16>
    "tpu.trace_start"() <{level = 10 : i32, message = "qd,kd->qk"}> : () -> ()
    %cst_220 = arith.constant dense<0.000000e+00> : vector<16x16xf32>
    %310 = tpu.matmul %308, %309, %cst_220 {dimension_numbers = #tpu.dot_dimension_numbers<[1], [1], [0], [0], [0, 0, 1, 0], [], []>} : vector<16x16xbf16>, vector<16x16xbf16>, vector<16x16xf32> -> vector<16x16xf32>
    "tpu.trace_stop"() : () -> ()
    %311 = arith.truncf %305 : vector<16x16xf32> to vector<16x16xbf16>
    %c1_221 = arith.constant 1 : index
    %c1_222 = arith.constant 1 : index
    %c0_223 = arith.constant 0 : index
    %c0_224 = arith.constant 0 : index
    %312 = vector.load %arg5[%c1_221, %c1_222, %c0_223, %c0_224] : memref<2x4x64x16xbf16, #tpu.memory_space<vmem>>, vector<1x1x64x16xbf16>
    %313 = vector.shape_cast %312 : vector<1x1x64x16xbf16> to vector<64x16xbf16>
    %cst_225 = arith.constant dense<0.000000e+00> : vector<16x16xf32>
    %314 = tpu.matmul %284, %313, %cst_225 {dimension_numbers = #tpu.dot_dimension_numbers<[1], [0], [0], [1], [0, 0, 1, 1], [], []>} : vector<16x64xbf16>, vector<64x16xbf16>, vector<16x16xf32> -> vector<16x16xf32>
    %c1_226 = arith.constant 1 : index
    %c1_227 = arith.constant 1 : index
    %c0_228 = arith.constant 0 : index
    %c0_229 = arith.constant 0 : index
    %315 = vector.load %arg8[%c1_226, %c1_227, %c0_228, %c0_229] : memref<2x4x1x16xf32, #tpu.memory_space<vmem>>, vector<1x1x1x16xf32>
    %316 = vector.shape_cast %315 : vector<1x1x1x16xf32> to vector<1x16xf32>
    %317 = vector.broadcast %316 : vector<1x16xf32> to vector<16x16xf32>
    %318 = arith.addf %314, %317 : vector<16x16xf32>
    %c1_230 = arith.constant 1 : index
    %c1_231 = arith.constant 1 : index
    %c0_232 = arith.constant 0 : index
    %c0_233 = arith.constant 0 : index
    %319 = vector.load %arg6[%c1_230, %c1_231, %c0_232, %c0_233] : memref<2x4x64x16xbf16, #tpu.memory_space<vmem>>, vector<1x1x64x16xbf16>
    %320 = vector.shape_cast %319 : vector<1x1x64x16xbf16> to vector<64x16xbf16>
    %cst_234 = arith.constant dense<0.000000e+00> : vector<16x16xf32>
    %321 = tpu.matmul %284, %320, %cst_234 {dimension_numbers = #tpu.dot_dimension_numbers<[1], [0], [0], [1], [0, 0, 1, 1], [], []>} : vector<16x64xbf16>, vector<64x16xbf16>, vector<16x16xf32> -> vector<16x16xf32>
    %c1_235 = arith.constant 1 : index
    %c1_236 = arith.constant 1 : index
    %c0_237 = arith.constant 0 : index
    %c0_238 = arith.constant 0 : index
    %322 = vector.load %arg9[%c1_235, %c1_236, %c0_237, %c0_238] : memref<2x4x1x16xf32, #tpu.memory_space<vmem>>, vector<1x1x1x16xf32>
    %323 = vector.shape_cast %322 : vector<1x1x1x16xf32> to vector<1x16xf32>
    %324 = vector.broadcast %323 : vector<1x16xf32> to vector<16x16xf32>
    %325 = arith.addf %321, %324 : vector<16x16xf32>
    %c1_239 = arith.constant 1 : index
    %c1_240 = arith.constant 1 : index
    %c0_241 = arith.constant 0 : index
    %c0_242 = arith.constant 0 : index
    %326 = vector.load %arg7[%c1_239, %c1_240, %c0_241, %c0_242] : memref<2x4x64x16xbf16, #tpu.memory_space<vmem>>, vector<1x1x64x16xbf16>
    %327 = vector.shape_cast %326 : vector<1x1x64x16xbf16> to vector<64x16xbf16>
    %cst_243 = arith.constant dense<0.000000e+00> : vector<16x16xf32>
    %328 = tpu.matmul %284, %327, %cst_243 {dimension_numbers = #tpu.dot_dimension_numbers<[1], [0], [0], [1], [0, 0, 1, 1], [], []>} : vector<16x64xbf16>, vector<64x16xbf16>, vector<16x16xf32> -> vector<16x16xf32>
    %c1_244 = arith.constant 1 : index
    %c1_245 = arith.constant 1 : index
    %c0_246 = arith.constant 0 : index
    %c0_247 = arith.constant 0 : index
    %329 = vector.load %arg10[%c1_244, %c1_245, %c0_246, %c0_247] : memref<2x4x1x16xf32, #tpu.memory_space<vmem>>, vector<1x1x1x16xf32>
    %330 = vector.shape_cast %329 : vector<1x1x1x16xf32> to vector<1x16xf32>
    %331 = vector.broadcast %330 : vector<1x16xf32> to vector<16x16xf32>
    %332 = arith.addf %328, %331 : vector<16x16xf32>
    %cst_248 = arith.constant 2.500000e-01 : f32
    %333 = vector.broadcast %cst_248 : f32 to vector<16x16xf32>
    %334 = arith.mulf %318, %333 : vector<16x16xf32>
    %335 = arith.truncf %334 : vector<16x16xf32> to vector<16x16xbf16>
    %336 = arith.truncf %325 : vector<16x16xf32> to vector<16x16xbf16>
    "tpu.trace_start"() <{level = 10 : i32, message = "qd,kd->qk"}> : () -> ()
    %cst_249 = arith.constant dense<0.000000e+00> : vector<16x16xf32>
    %337 = tpu.matmul %335, %336, %cst_249 {dimension_numbers = #tpu.dot_dimension_numbers<[1], [1], [0], [0], [0, 0, 1, 0], [], []>} : vector<16x16xbf16>, vector<16x16xbf16>, vector<16x16xf32> -> vector<16x16xf32>
    "tpu.trace_stop"() : () -> ()
    %338 = arith.truncf %332 : vector<16x16xf32> to vector<16x16xbf16>
    %c1_250 = arith.constant 1 : index
    %c2_251 = arith.constant 2 : index
    %c0_252 = arith.constant 0 : index
    %c0_253 = arith.constant 0 : index
    %339 = vector.load %arg5[%c1_250, %c2_251, %c0_252, %c0_253] : memref<2x4x64x16xbf16, #tpu.memory_space<vmem>>, vector<1x1x64x16xbf16>
    %340 = vector.shape_cast %339 : vector<1x1x64x16xbf16> to vector<64x16xbf16>
    %cst_254 = arith.constant dense<0.000000e+00> : vector<16x16xf32>
    %341 = tpu.matmul %284, %340, %cst_254 {dimension_numbers = #tpu.dot_dimension_numbers<[1], [0], [0], [1], [0, 0, 1, 1], [], []>} : vector<16x64xbf16>, vector<64x16xbf16>, vector<16x16xf32> -> vector<16x16xf32>
    %c1_255 = arith.constant 1 : index
    %c2_256 = arith.constant 2 : index
    %c0_257 = arith.constant 0 : index
    %c0_258 = arith.constant 0 : index
    %342 = vector.load %arg8[%c1_255, %c2_256, %c0_257, %c0_258] : memref<2x4x1x16xf32, #tpu.memory_space<vmem>>, vector<1x1x1x16xf32>
    %343 = vector.shape_cast %342 : vector<1x1x1x16xf32> to vector<1x16xf32>
    %344 = vector.broadcast %343 : vector<1x16xf32> to vector<16x16xf32>
    %345 = arith.addf %341, %344 : vector<16x16xf32>
    %c1_259 = arith.constant 1 : index
    %c2_260 = arith.constant 2 : index
    %c0_261 = arith.constant 0 : index
    %c0_262 = arith.constant 0 : index
    %346 = vector.load %arg6[%c1_259, %c2_260, %c0_261, %c0_262] : memref<2x4x64x16xbf16, #tpu.memory_space<vmem>>, vector<1x1x64x16xbf16>
    %347 = vector.shape_cast %346 : vector<1x1x64x16xbf16> to vector<64x16xbf16>
    %cst_263 = arith.constant dense<0.000000e+00> : vector<16x16xf32>
    %348 = tpu.matmul %284, %347, %cst_263 {dimension_numbers = #tpu.dot_dimension_numbers<[1], [0], [0], [1], [0, 0, 1, 1], [], []>} : vector<16x64xbf16>, vector<64x16xbf16>, vector<16x16xf32> -> vector<16x16xf32>
    %c1_264 = arith.constant 1 : index
    %c2_265 = arith.constant 2 : index
    %c0_266 = arith.constant 0 : index
    %c0_267 = arith.constant 0 : index
    %349 = vector.load %arg9[%c1_264, %c2_265, %c0_266, %c0_267] : memref<2x4x1x16xf32, #tpu.memory_space<vmem>>, vector<1x1x1x16xf32>
    %350 = vector.shape_cast %349 : vector<1x1x1x16xf32> to vector<1x16xf32>
    %351 = vector.broadcast %350 : vector<1x16xf32> to vector<16x16xf32>
    %352 = arith.addf %348, %351 : vector<16x16xf32>
    %c1_268 = arith.constant 1 : index
    %c2_269 = arith.constant 2 : index
    %c0_270 = arith.constant 0 : index
    %c0_271 = arith.constant 0 : index
    %353 = vector.load %arg7[%c1_268, %c2_269, %c0_270, %c0_271] : memref<2x4x64x16xbf16, #tpu.memory_space<vmem>>, vector<1x1x64x16xbf16>
    %354 = vector.shape_cast %353 : vector<1x1x64x16xbf16> to vector<64x16xbf16>
    %cst_272 = arith.constant dense<0.000000e+00> : vector<16x16xf32>
    %355 = tpu.matmul %284, %354, %cst_272 {dimension_numbers = #tpu.dot_dimension_numbers<[1], [0], [0], [1], [0, 0, 1, 1], [], []>} : vector<16x64xbf16>, vector<64x16xbf16>, vector<16x16xf32> -> vector<16x16xf32>
    %c1_273 = arith.constant 1 : index
    %c2_274 = arith.constant 2 : index
    %c0_275 = arith.constant 0 : index
    %c0_276 = arith.constant 0 : index
    %356 = vector.load %arg10[%c1_273, %c2_274, %c0_275, %c0_276] : memref<2x4x1x16xf32, #tpu.memory_space<vmem>>, vector<1x1x1x16xf32>
    %357 = vector.shape_cast %356 : vector<1x1x1x16xf32> to vector<1x16xf32>
    %358 = vector.broadcast %357 : vector<1x16xf32> to vector<16x16xf32>
    %359 = arith.addf %355, %358 : vector<16x16xf32>
    %cst_277 = arith.constant 2.500000e-01 : f32
    %360 = vector.broadcast %cst_277 : f32 to vector<16x16xf32>
    %361 = arith.mulf %345, %360 : vector<16x16xf32>
    %362 = arith.truncf %361 : vector<16x16xf32> to vector<16x16xbf16>
    %363 = arith.truncf %352 : vector<16x16xf32> to vector<16x16xbf16>
    "tpu.trace_start"() <{level = 10 : i32, message = "qd,kd->qk"}> : () -> ()
    %cst_278 = arith.constant dense<0.000000e+00> : vector<16x16xf32>
    %364 = tpu.matmul %362, %363, %cst_278 {dimension_numbers = #tpu.dot_dimension_numbers<[1], [1], [0], [0], [0, 0, 1, 0], [], []>} : vector<16x16xbf16>, vector<16x16xbf16>, vector<16x16xf32> -> vector<16x16xf32>
    "tpu.trace_stop"() : () -> ()
    %365 = arith.truncf %359 : vector<16x16xf32> to vector<16x16xbf16>
    %c1_279 = arith.constant 1 : index
    %c3_280 = arith.constant 3 : index
    %c0_281 = arith.constant 0 : index
    %c0_282 = arith.constant 0 : index
    %366 = vector.load %arg5[%c1_279, %c3_280, %c0_281, %c0_282] : memref<2x4x64x16xbf16, #tpu.memory_space<vmem>>, vector<1x1x64x16xbf16>
    %367 = vector.shape_cast %366 : vector<1x1x64x16xbf16> to vector<64x16xbf16>
    %cst_283 = arith.constant dense<0.000000e+00> : vector<16x16xf32>
    %368 = tpu.matmul %284, %367, %cst_283 {dimension_numbers = #tpu.dot_dimension_numbers<[1], [0], [0], [1], [0, 0, 1, 1], [], []>} : vector<16x64xbf16>, vector<64x16xbf16>, vector<16x16xf32> -> vector<16x16xf32>
    %c1_284 = arith.constant 1 : index
    %c3_285 = arith.constant 3 : index
    %c0_286 = arith.constant 0 : index
    %c0_287 = arith.constant 0 : index
    %369 = vector.load %arg8[%c1_284, %c3_285, %c0_286, %c0_287] : memref<2x4x1x16xf32, #tpu.memory_space<vmem>>, vector<1x1x1x16xf32>
    %370 = vector.shape_cast %369 : vector<1x1x1x16xf32> to vector<1x16xf32>
    %371 = vector.broadcast %370 : vector<1x16xf32> to vector<16x16xf32>
    %372 = arith.addf %368, %371 : vector<16x16xf32>
    %c1_288 = arith.constant 1 : index
    %c3_289 = arith.constant 3 : index
    %c0_290 = arith.constant 0 : index
    %c0_291 = arith.constant 0 : index
    %373 = vector.load %arg6[%c1_288, %c3_289, %c0_290, %c0_291] : memref<2x4x64x16xbf16, #tpu.memory_space<vmem>>, vector<1x1x64x16xbf16>
    %374 = vector.shape_cast %373 : vector<1x1x64x16xbf16> to vector<64x16xbf16>
    %cst_292 = arith.constant dense<0.000000e+00> : vector<16x16xf32>
    %375 = tpu.matmul %284, %374, %cst_292 {dimension_numbers = #tpu.dot_dimension_numbers<[1], [0], [0], [1], [0, 0, 1, 1], [], []>} : vector<16x64xbf16>, vector<64x16xbf16>, vector<16x16xf32> -> vector<16x16xf32>
    %c1_293 = arith.constant 1 : index
    %c3_294 = arith.constant 3 : index
    %c0_295 = arith.constant 0 : index
    %c0_296 = arith.constant 0 : index
    %376 = vector.load %arg9[%c1_293, %c3_294, %c0_295, %c0_296] : memref<2x4x1x16xf32, #tpu.memory_space<vmem>>, vector<1x1x1x16xf32>
    %377 = vector.shape_cast %376 : vector<1x1x1x16xf32> to vector<1x16xf32>
    %378 = vector.broadcast %377 : vector<1x16xf32> to vector<16x16xf32>
    %379 = arith.addf %375, %378 : vector<16x16xf32>
    %c1_297 = arith.constant 1 : index
    %c3_298 = arith.constant 3 : index
    %c0_299 = arith.constant 0 : index
    %c0_300 = arith.constant 0 : index
    %380 = vector.load %arg7[%c1_297, %c3_298, %c0_299, %c0_300] : memref<2x4x64x16xbf16, #tpu.memory_space<vmem>>, vector<1x1x64x16xbf16>
    %381 = vector.shape_cast %380 : vector<1x1x64x16xbf16> to vector<64x16xbf16>
    %cst_301 = arith.constant dense<0.000000e+00> : vector<16x16xf32>
    %382 = tpu.matmul %284, %381, %cst_301 {dimension_numbers = #tpu.dot_dimension_numbers<[1], [0], [0], [1], [0, 0, 1, 1], [], []>} : vector<16x64xbf16>, vector<64x16xbf16>, vector<16x16xf32> -> vector<16x16xf32>
    %c1_302 = arith.constant 1 : index
    %c3_303 = arith.constant 3 : index
    %c0_304 = arith.constant 0 : index
    %c0_305 = arith.constant 0 : index
    %383 = vector.load %arg10[%c1_302, %c3_303, %c0_304, %c0_305] : memref<2x4x1x16xf32, #tpu.memory_space<vmem>>, vector<1x1x1x16xf32>
    %384 = vector.shape_cast %383 : vector<1x1x1x16xf32> to vector<1x16xf32>
    %385 = vector.broadcast %384 : vector<1x16xf32> to vector<16x16xf32>
    %386 = arith.addf %382, %385 : vector<16x16xf32>
    %cst_306 = arith.constant 2.500000e-01 : f32
    %387 = vector.broadcast %cst_306 : f32 to vector<16x16xf32>
    %388 = arith.mulf %372, %387 : vector<16x16xf32>
    %389 = arith.truncf %388 : vector<16x16xf32> to vector<16x16xbf16>
    %390 = arith.truncf %379 : vector<16x16xf32> to vector<16x16xbf16>
    "tpu.trace_start"() <{level = 10 : i32, message = "qd,kd->qk"}> : () -> ()
    %cst_307 = arith.constant dense<0.000000e+00> : vector<16x16xf32>
    %391 = tpu.matmul %389, %390, %cst_307 {dimension_numbers = #tpu.dot_dimension_numbers<[1], [1], [0], [0], [0, 0, 1, 0], [], []>} : vector<16x16xbf16>, vector<16x16xbf16>, vector<16x16xf32> -> vector<16x16xf32>
    "tpu.trace_stop"() : () -> ()
    %392 = arith.truncf %386 : vector<16x16xf32> to vector<16x16xbf16>
    %393 = tpu.concatenate %310, %337, %364, %391 in 0 : vector<16x16xf32>, vector<16x16xf32>, vector<16x16xf32>, vector<16x16xf32> -> vector<64x16xf32>
    %394 = vector.broadcast %5 : vector<1x16xf32> to vector<64x16xf32>
    %395 = arith.addf %393, %394 : vector<64x16xf32>
    %cst_308 = arith.constant dense<0xFF800000> : vector<64xf32>
    %396 = vector.multi_reduction <maximumf>, %395, %cst_308 [1] : vector<64x16xf32> to vector<64xf32>
    %397 = vector.shape_cast %396 : vector<64xf32> to vector<64x1xf32>
    %398 = vector.broadcast %397 : vector<64x1xf32> to vector<64x16xf32>
    %399 = arith.subf %395, %398 : vector<64x16xf32>
    %400 = math.exp %399 : vector<64x16xf32>
    %cst_309 = arith.constant dense<0.000000e+00> : vector<64xf32>
    %401 = vector.multi_reduction <add>, %400, %cst_309 [1] : vector<64x16xf32> to vector<64xf32>
    %402 = vector.shape_cast %401 : vector<64xf32> to vector<64x1xf32>
    %403 = vector.broadcast %402 : vector<64x1xf32> to vector<64x16xf32>
    %404 = arith.divf %400, %403 : vector<64x16xf32>
    %405 = vector.extract_strided_slice %404 {offsets = [0, 0], sizes = [16, 16], strides = [1, 1]} : vector<64x16xf32> to vector<16x16xf32>
    %406 = arith.truncf %405 : vector<16x16xf32> to vector<16x16xbf16>
    %cst_310 = arith.constant dense<0.000000e+00> : vector<16x16xf32>
    %407 = tpu.matmul %406, %311, %cst_310 {dimension_numbers = #tpu.dot_dimension_numbers<[1], [0], [0], [1], [0, 0, 1, 1], [], []>} : vector<16x16xbf16>, vector<16x16xbf16>, vector<16x16xf32> -> vector<16x16xf32>
    %408 = vector.extract_strided_slice %404 {offsets = [16, 0], sizes = [16, 16], strides = [1, 1]} : vector<64x16xf32> to vector<16x16xf32>
    %409 = arith.truncf %408 : vector<16x16xf32> to vector<16x16xbf16>
    %cst_311 = arith.constant dense<0.000000e+00> : vector<16x16xf32>
    %410 = tpu.matmul %409, %338, %cst_311 {dimension_numbers = #tpu.dot_dimension_numbers<[1], [0], [0], [1], [0, 0, 1, 1], [], []>} : vector<16x16xbf16>, vector<16x16xbf16>, vector<16x16xf32> -> vector<16x16xf32>
    %411 = vector.extract_strided_slice %404 {offsets = [32, 0], sizes = [16, 16], strides = [1, 1]} : vector<64x16xf32> to vector<16x16xf32>
    %412 = arith.truncf %411 : vector<16x16xf32> to vector<16x16xbf16>
    %cst_312 = arith.constant dense<0.000000e+00> : vector<16x16xf32>
    %413 = tpu.matmul %412, %365, %cst_312 {dimension_numbers = #tpu.dot_dimension_numbers<[1], [0], [0], [1], [0, 0, 1, 1], [], []>} : vector<16x16xbf16>, vector<16x16xbf16>, vector<16x16xf32> -> vector<16x16xf32>
    %414 = vector.extract_strided_slice %404 {offsets = [48, 0], sizes = [16, 16], strides = [1, 1]} : vector<64x16xf32> to vector<16x16xf32>
    %415 = arith.truncf %414 : vector<16x16xf32> to vector<16x16xbf16>
    %cst_313 = arith.constant dense<0.000000e+00> : vector<16x16xf32>
    %416 = tpu.matmul %415, %392, %cst_313 {dimension_numbers = #tpu.dot_dimension_numbers<[1], [0], [0], [1], [0, 0, 1, 1], [], []>} : vector<16x16xbf16>, vector<16x16xbf16>, vector<16x16xf32> -> vector<16x16xf32>
    %417 = tpu.concatenate %407, %410, %413, %416 in 1 : vector<16x16xf32>, vector<16x16xf32>, vector<16x16xf32>, vector<16x16xf32> -> vector<16x64xf32>
    %418 = arith.truncf %417 : vector<16x64xf32> to vector<16x64xbf16>
    %c1_314 = arith.constant 1 : index
    %c0_315 = arith.constant 0 : index
    %c0_316 = arith.constant 0 : index
    %419 = vector.load %arg11[%c1_314, %c0_315, %c0_316] : memref<2x64x64xbf16, #tpu.memory_space<vmem>>, vector<1x64x64xbf16>
    %420 = vector.shape_cast %419 : vector<1x64x64xbf16> to vector<64x64xbf16>
    %cst_317 = arith.constant dense<0.000000e+00> : vector<16x64xf32>
    %421 = tpu.matmul %418, %420, %cst_317 {dimension_numbers = #tpu.dot_dimension_numbers<[1], [0], [0], [1], [0, 0, 1, 1], [], []>} : vector<16x64xbf16>, vector<64x64xbf16>, vector<16x64xf32> -> vector<16x64xf32>
    %c1_318 = arith.constant 1 : index
    %c0_319 = arith.constant 0 : index
    %c0_320 = arith.constant 0 : index
    %422 = vector.load %arg12[%c1_318, %c0_319, %c0_320] : memref<2x1x64xf32, #tpu.memory_space<vmem>>, vector<1x1x64xf32>
    %423 = vector.shape_cast %422 : vector<1x1x64xf32> to vector<1x64xf32>
    %424 = vector.broadcast %423 : vector<1x64xf32> to vector<16x64xf32>
    %425 = arith.addf %421, %424 : vector<16x64xf32>
    %426 = arith.addf %425, %283 : vector<16x64xf32>
    %c1_321 = arith.constant 1 : index
    %c0_322 = arith.constant 0 : index
    %c0_323 = arith.constant 0 : index
    %427 = vector.load %arg13[%c1_321, %c0_322, %c0_323] : memref<2x1x64xf32, #tpu.memory_space<vmem>>, vector<1x1x64xf32>
    %428 = vector.shape_cast %427 : vector<1x1x64xf32> to vector<1x64xf32>
    %c1_324 = arith.constant 1 : index
    %c0_325 = arith.constant 0 : index
    %c0_326 = arith.constant 0 : index
    %429 = vector.load %arg14[%c1_324, %c0_325, %c0_326] : memref<2x1x64xf32, #tpu.memory_space<vmem>>, vector<1x1x64xf32>
    %430 = vector.shape_cast %429 : vector<1x1x64xf32> to vector<1x64xf32>
    %cst_327 = arith.constant dense<0.000000e+00> : vector<16xf32>
    %431 = vector.multi_reduction <add>, %426, %cst_327 [1] : vector<16x64xf32> to vector<16xf32>
    %432 = vector.shape_cast %431 : vector<16xf32> to vector<16x1xf32>
    %cst_328 = arith.constant 6.400000e+01 : f32
    %433 = vector.broadcast %cst_328 : f32 to vector<16x1xf32>
    %434 = arith.divf %432, %433 : vector<16x1xf32>
    %435 = vector.broadcast %434 : vector<16x1xf32> to vector<16x64xf32>
    %436 = arith.subf %426, %435 : vector<16x64xf32>
    %437 = arith.mulf %436, %436 : vector<16x64xf32>
    %cst_329 = arith.constant dense<0.000000e+00> : vector<16xf32>
    %438 = vector.multi_reduction <add>, %437, %cst_329 [1] : vector<16x64xf32> to vector<16xf32>
    %439 = vector.shape_cast %438 : vector<16xf32> to vector<16x1xf32>
    %cst_330 = arith.constant 6.400000e+01 : f32
    %440 = vector.broadcast %cst_330 : f32 to vector<16x1xf32>
    %441 = arith.divf %439, %440 : vector<16x1xf32>
    %442 = vector.broadcast %434 : vector<16x1xf32> to vector<16x64xf32>
    %443 = arith.subf %426, %442 : vector<16x64xf32>
    %cst_331 = arith.constant 9.99999974E-6 : f32
    %444 = vector.broadcast %cst_331 : f32 to vector<16x1xf32>
    %445 = arith.addf %441, %444 : vector<16x1xf32>
    %446 = math.rsqrt %445 : vector<16x1xf32>
    %447 = vector.broadcast %446 : vector<16x1xf32> to vector<16x64xf32>
    %448 = arith.mulf %443, %447 : vector<16x64xf32>
    %449 = vector.broadcast %428 : vector<1x64xf32> to vector<16x64xf32>
    %450 = arith.mulf %448, %449 : vector<16x64xf32>
    %451 = vector.broadcast %430 : vector<1x64xf32> to vector<16x64xf32>
    %452 = arith.addf %450, %451 : vector<16x64xf32>
    %453 = arith.truncf %452 : vector<16x64xf32> to vector<16x64xbf16>
    %c1_332 = arith.constant 1 : index
    %c0_333 = arith.constant 0 : index
    %c0_334 = arith.constant 0 : index
    %454 = vector.load %arg15[%c1_332, %c0_333, %c0_334] : memref<2x64x128xbf16, #tpu.memory_space<vmem>>, vector<1x64x128xbf16>
    %455 = vector.shape_cast %454 : vector<1x64x128xbf16> to vector<64x128xbf16>
    %cst_335 = arith.constant dense<0.000000e+00> : vector<16x128xf32>
    %456 = tpu.matmul %453, %455, %cst_335 {dimension_numbers = #tpu.dot_dimension_numbers<[1], [0], [0], [1], [0, 0, 1, 1], [], []>} : vector<16x64xbf16>, vector<64x128xbf16>, vector<16x128xf32> -> vector<16x128xf32>
    %c1_336 = arith.constant 1 : index
    %c0_337 = arith.constant 0 : index
    %c0_338 = arith.constant 0 : index
    %457 = vector.load %arg16[%c1_336, %c0_337, %c0_338] : memref<2x1x128xf32, #tpu.memory_space<vmem>>, vector<1x1x128xf32>
    %458 = vector.shape_cast %457 : vector<1x1x128xf32> to vector<1x128xf32>
    %459 = vector.broadcast %458 : vector<1x128xf32> to vector<16x128xf32>
    %460 = arith.addf %456, %459 : vector<16x128xf32>
    %cst_339 = arith.constant 0.707106769 : f32
    %461 = vector.broadcast %cst_339 : f32 to vector<16x128xf32>
    %462 = arith.mulf %460, %461 : vector<16x128xf32>
    %463 = math.absf %462 : vector<16x128xf32>
    %cst_340 = arith.constant 0.327591091 : f32
    %464 = vector.broadcast %cst_340 : f32 to vector<16x128xf32>
    %465 = arith.mulf %464, %463 : vector<16x128xf32>
    %cst_341 = arith.constant 1.000000e+00 : f32
    %466 = vector.broadcast %cst_341 : f32 to vector<16x128xf32>
    %467 = arith.addf %466, %465 : vector<16x128xf32>
    %cst_342 = arith.constant 1.000000e+00 : f32
    %468 = vector.broadcast %cst_342 : f32 to vector<16x128xf32>
    %469 = arith.divf %468, %467 : vector<16x128xf32>
    %cst_343 = arith.constant 1.06140542 : f32
    %470 = vector.broadcast %cst_343 : f32 to vector<16x128xf32>
    %471 = arith.mulf %470, %469 : vector<16x128xf32>
    %cst_344 = arith.constant 1.45315206 : f32
    %472 = vector.broadcast %cst_344 : f32 to vector<16x128xf32>
    %473 = arith.subf %471, %472 : vector<16x128xf32>
    %474 = arith.mulf %473, %469 : vector<16x128xf32>
    %cst_345 = arith.constant 1.42141378 : f32
    %475 = vector.broadcast %cst_345 : f32 to vector<16x128xf32>
    %476 = arith.addf %474, %475 : vector<16x128xf32>
    %477 = arith.mulf %476, %469 : vector<16x128xf32>
    %cst_346 = arith.constant 0.284496725 : f32
    %478 = vector.broadcast %cst_346 : f32 to vector<16x128xf32>
    %479 = arith.subf %477, %478 : vector<16x128xf32>
    %480 = arith.mulf %479, %469 : vector<16x128xf32>
    %cst_347 = arith.constant 0.254829586 : f32
    %481 = vector.broadcast %cst_347 : f32 to vector<16x128xf32>
    %482 = arith.addf %480, %481 : vector<16x128xf32>
    %483 = arith.mulf %482, %469 : vector<16x128xf32>
    %cst_348 = arith.constant 0.000000e+00 : f32
    %484 = vector.broadcast %cst_348 : f32 to vector<16x128xf32>
    %485 = arith.subf %484, %463 : vector<16x128xf32>
    %486 = arith.mulf %485, %463 : vector<16x128xf32>
    %487 = math.exp %486 : vector<16x128xf32>
    %488 = arith.mulf %483, %487 : vector<16x128xf32>
    %cst_349 = arith.constant 1.000000e+00 : f32
    %489 = vector.broadcast %cst_349 : f32 to vector<16x128xf32>
    %490 = arith.subf %489, %488 : vector<16x128xf32>
    %cst_350 = arith.constant 0.000000e+00 : f32
    %491 = vector.broadcast %cst_350 : f32 to vector<16x128xf32>
    %492 = arith.cmpf oge, %462, %491 : vector<16x128xf32>
    %cst_351 = arith.constant 0.000000e+00 : f32
    %493 = vector.broadcast %cst_351 : f32 to vector<16x128xf32>
    %494 = arith.subf %493, %490 : vector<16x128xf32>
    %495 = arith.select %492, %490, %494 : vector<16x128xi1>, vector<16x128xf32>
    %cst_352 = arith.constant 5.000000e-01 : f32
    %496 = vector.broadcast %cst_352 : f32 to vector<16x128xf32>
    %497 = arith.mulf %496, %460 : vector<16x128xf32>
    %cst_353 = arith.constant 1.000000e+00 : f32
    %498 = vector.broadcast %cst_353 : f32 to vector<16x128xf32>
    %499 = arith.addf %498, %495 : vector<16x128xf32>
    %500 = arith.mulf %497, %499 : vector<16x128xf32>
    %501 = arith.truncf %500 : vector<16x128xf32> to vector<16x128xbf16>
    %c1_354 = arith.constant 1 : index
    %c0_355 = arith.constant 0 : index
    %c0_356 = arith.constant 0 : index
    %502 = vector.load %arg17[%c1_354, %c0_355, %c0_356] : memref<2x128x64xbf16, #tpu.memory_space<vmem>>, vector<1x128x64xbf16>
    %503 = vector.shape_cast %502 : vector<1x128x64xbf16> to vector<128x64xbf16>
    %cst_357 = arith.constant dense<0.000000e+00> : vector<16x64xf32>
    %504 = tpu.matmul %501, %503, %cst_357 {dimension_numbers = #tpu.dot_dimension_numbers<[1], [0], [0], [1], [0, 0, 1, 1], [], []>} : vector<16x128xbf16>, vector<128x64xbf16>, vector<16x64xf32> -> vector<16x64xf32>
    %c1_358 = arith.constant 1 : index
    %c0_359 = arith.constant 0 : index
    %c0_360 = arith.constant 0 : index
    %505 = vector.load %arg18[%c1_358, %c0_359, %c0_360] : memref<2x1x64xf32, #tpu.memory_space<vmem>>, vector<1x1x64xf32>
    %506 = vector.shape_cast %505 : vector<1x1x64xf32> to vector<1x64xf32>
    %507 = vector.broadcast %506 : vector<1x64xf32> to vector<16x64xf32>
    %508 = arith.addf %504, %507 : vector<16x64xf32>
    %509 = arith.addf %508, %452 : vector<16x64xf32>
    %c1_361 = arith.constant 1 : index
    %c0_362 = arith.constant 0 : index
    %c0_363 = arith.constant 0 : index
    %510 = vector.load %arg19[%c1_361, %c0_362, %c0_363] : memref<2x1x64xf32, #tpu.memory_space<vmem>>, vector<1x1x64xf32>
    %511 = vector.shape_cast %510 : vector<1x1x64xf32> to vector<1x64xf32>
    %c1_364 = arith.constant 1 : index
    %c0_365 = arith.constant 0 : index
    %c0_366 = arith.constant 0 : index
    %512 = vector.load %arg20[%c1_364, %c0_365, %c0_366] : memref<2x1x64xf32, #tpu.memory_space<vmem>>, vector<1x1x64xf32>
    %513 = vector.shape_cast %512 : vector<1x1x64xf32> to vector<1x64xf32>
    %cst_367 = arith.constant dense<0.000000e+00> : vector<16xf32>
    %514 = vector.multi_reduction <add>, %509, %cst_367 [1] : vector<16x64xf32> to vector<16xf32>
    %515 = vector.shape_cast %514 : vector<16xf32> to vector<16x1xf32>
    %cst_368 = arith.constant 6.400000e+01 : f32
    %516 = vector.broadcast %cst_368 : f32 to vector<16x1xf32>
    %517 = arith.divf %515, %516 : vector<16x1xf32>
    %518 = vector.broadcast %517 : vector<16x1xf32> to vector<16x64xf32>
    %519 = arith.subf %509, %518 : vector<16x64xf32>
    %520 = arith.mulf %519, %519 : vector<16x64xf32>
    %cst_369 = arith.constant dense<0.000000e+00> : vector<16xf32>
    %521 = vector.multi_reduction <add>, %520, %cst_369 [1] : vector<16x64xf32> to vector<16xf32>
    %522 = vector.shape_cast %521 : vector<16xf32> to vector<16x1xf32>
    %cst_370 = arith.constant 6.400000e+01 : f32
    %523 = vector.broadcast %cst_370 : f32 to vector<16x1xf32>
    %524 = arith.divf %522, %523 : vector<16x1xf32>
    %525 = vector.broadcast %517 : vector<16x1xf32> to vector<16x64xf32>
    %526 = arith.subf %509, %525 : vector<16x64xf32>
    %cst_371 = arith.constant 9.99999974E-6 : f32
    %527 = vector.broadcast %cst_371 : f32 to vector<16x1xf32>
    %528 = arith.addf %524, %527 : vector<16x1xf32>
    %529 = math.rsqrt %528 : vector<16x1xf32>
    %530 = vector.broadcast %529 : vector<16x1xf32> to vector<16x64xf32>
    %531 = arith.mulf %526, %530 : vector<16x64xf32>
    %532 = vector.broadcast %511 : vector<1x64xf32> to vector<16x64xf32>
    %533 = arith.mulf %531, %532 : vector<16x64xf32>
    %534 = vector.broadcast %513 : vector<1x64xf32> to vector<16x64xf32>
    %535 = arith.addf %533, %534 : vector<16x64xf32>
    %536 = vector.extract_strided_slice %535 {offsets = [0, 0], sizes = [1, 64], strides = [1, 1]} : vector<16x64xf32> to vector<1x64xf32>
    %537 = arith.truncf %536 : vector<1x64xf32> to vector<1x64xbf16>
    %c0_372 = arith.constant 0 : index
    %c0_373 = arith.constant 0 : index
    %538 = vector.load %arg21[%c0_372, %c0_373] : memref<64x64xbf16, #tpu.memory_space<vmem>>, vector<64x64xbf16>
    %cst_374 = arith.constant dense<0.000000e+00> : vector<1x64xf32>
    %539 = tpu.matmul %537, %538, %cst_374 {dimension_numbers = #tpu.dot_dimension_numbers<[1], [0], [0], [1], [0, 0, 1, 1], [], []>} : vector<1x64xbf16>, vector<64x64xbf16>, vector<1x64xf32> -> vector<1x64xf32>
    %c0_375 = arith.constant 0 : index
    %c0_376 = arith.constant 0 : index
    %540 = vector.load %arg22[%c0_375, %c0_376] : memref<1x64xf32, #tpu.memory_space<vmem>>, vector<1x64xf32>
    %541 = arith.addf %539, %540 : vector<1x64xf32>
    %542 = math.tanh %541 : vector<1x64xf32>
    %543 = arith.truncf %542 : vector<1x64xf32> to vector<1x64xbf16>
    %c0_377 = arith.constant 0 : index
    %c0_378 = arith.constant 0 : index
    %544 = vector.load %arg23[%c0_377, %c0_378] : memref<64x3xbf16, #tpu.memory_space<vmem>>, vector<64x3xbf16>
    %cst_379 = arith.constant dense<0.000000e+00> : vector<1x3xf32>
    %545 = tpu.matmul %543, %544, %cst_379 {dimension_numbers = #tpu.dot_dimension_numbers<[1], [0], [0], [1], [0, 0, 1, 1], [], []>} : vector<1x64xbf16>, vector<64x3xbf16>, vector<1x3xf32> -> vector<1x3xf32>
    %c0_380 = arith.constant 0 : index
    %c0_381 = arith.constant 0 : index
    %546 = vector.load %arg24[%c0_380, %c0_381] : memref<1x3xf32, #tpu.memory_space<vmem>>, vector<1x3xf32>
    %547 = arith.addf %545, %546 : vector<1x3xf32>
    %c0_382 = arith.constant 0 : index
    %c0_383 = arith.constant 0 : index
    %c0_384 = arith.constant 0 : index
    %548 = vector.load %arg25[%c0_382, %c0_383, %c0_384] : memref<1x1x3xf32, #tpu.memory_space<vmem>>, vector<1x1x3xf32>
    %549 = vector.shape_cast %548 : vector<1x1x3xf32> to vector<1x3xf32>
    %550 = vector.shape_cast %547 : vector<1x3xf32> to vector<1x1x3xf32>
    tpu.vector_store %arg25[%c0_382, %c0_383, %c0_384], %550 {strides = array<i32>} : memref<1x1x3xf32, #tpu.memory_space<vmem>>, vector<1x1x3xf32>,
    return
  }
  func.func @transform_0(%arg0: i32) -> (i32, i32, i32) {
    %c0_i32 = arith.constant 0 : i32
    %c0_i32_0 = arith.constant 0 : i32
    %c0_i32_1 = arith.constant 0 : i32
    return %arg0, %c0_i32, %c0_i32_0 : i32, i32, i32
  }
  func.func @transform_1(%arg0: i32) -> (i32, i32, i32) {
    %c0_i32 = arith.constant 0 : i32
    %c0_i32_0 = arith.constant 0 : i32
    %c0_i32_1 = arith.constant 0 : i32
    return %arg0, %c0_i32, %c0_i32_0 : i32, i32, i32
  }
  func.func @transform_2(%arg0: i32) -> (i32, i32) {
    %c0_i32 = arith.constant 0 : i32
    %c0_i32_0 = arith.constant 0 : i32
    %c0_i32_1 = arith.constant 0 : i32
    return %c0_i32, %c0_i32_0 : i32, i32
  }
  func.func @transform_3(%arg0: i32) -> (i32, i32) {
    %c0_i32 = arith.constant 0 : i32
    %c0_i32_0 = arith.constant 0 : i32
    %c0_i32_1 = arith.constant 0 : i32
    return %c0_i32, %c0_i32_0 : i32, i32
  }
  func.func @transform_4(%arg0: i32) -> (i32, i32, i32, i32) {
    %c0_i32 = arith.constant 0 : i32
    %c0_i32_0 = arith.constant 0 : i32
    %c0_i32_1 = arith.constant 0 : i32
    %c0_i32_2 = arith.constant 0 : i32
    %c0_i32_3 = arith.constant 0 : i32
    return %c0_i32, %c0_i32_0, %c0_i32_1, %c0_i32_2 : i32, i32, i32, i32
  }
  func.func @transform_5(%arg0: i32) -> (i32, i32, i32, i32) {
    %c0_i32 = arith.constant 0 : i32
    %c0_i32_0 = arith.constant 0 : i32
    %c0_i32_1 = arith.constant 0 : i32
    %c0_i32_2 = arith.constant 0 : i32
    %c0_i32_3 = arith.constant 0 : i32
    return %c0_i32, %c0_i32_0, %c0_i32_1, %c0_i32_2 : i32, i32, i32, i32
  }
  func.func @transform_6(%arg0: i32) -> (i32, i32, i32, i32) {
    %c0_i32 = arith.constant 0 : i32
    %c0_i32_0 = arith.constant 0 : i32
    %c0_i32_1 = arith.constant 0 : i32
    %c0_i32_2 = arith.constant 0 : i32
    %c0_i32_3 = arith.constant 0 : i32
    return %c0_i32, %c0_i32_0, %c0_i32_1, %c0_i32_2 : i32, i32, i32, i32
  }
  func.func @transform_7(%arg0: i32) -> (i32, i32, i32, i32) {
    %c0_i32 = arith.constant 0 : i32
    %c0_i32_0 = arith.constant 0 : i32
    %c0_i32_1 = arith.constant 0 : i32
    %c0_i32_2 = arith.constant 0 : i32
    %c0_i32_3 = arith.constant 0 : i32
    return %c0_i32, %c0_i32_0, %c0_i32_1, %c0_i32_2 : i32, i32, i32, i32
  }
  func.func @transform_8(%arg0: i32) -> (i32, i32, i32, i32) {
    %c0_i32 = arith.constant 0 : i32
    %c0_i32_0 = arith.constant 0 : i32
    %c0_i32_1 = arith.constant 0 : i32
    %c0_i32_2 = arith.constant 0 : i32
    %c0_i32_3 = arith.constant 0 : i32
    return %c0_i32, %c0_i32_0, %c0_i32_1, %c0_i32_2 : i32, i32, i32, i32
  }
  func.func @transform_9(%arg0: i32) -> (i32, i32, i32, i32) {
    %c0_i32 = arith.constant 0 : i32
    %c0_i32_0 = arith.constant 0 : i32
    %c0_i32_1 = arith.constant 0 : i32
    %c0_i32_2 = arith.constant 0 : i32
    %c0_i32_3 = arith.constant 0 : i32
    return %c0_i32, %c0_i32_0, %c0_i32_1, %c0_i32_2 : i32, i32, i32, i32
  }
  func.func @transform_10(%arg0: i32) -> (i32, i32, i32) {
    %c0_i32 = arith.constant 0 : i32
    %c0_i32_0 = arith.constant 0 : i32
    %c0_i32_1 = arith.constant 0 : i32
    %c0_i32_2 = arith.constant 0 : i32
    return %c0_i32, %c0_i32_0, %c0_i32_1 : i32, i32, i32
  }
  func.func @transform_11(%arg0: i32) -> (i32, i32, i32) {
    %c0_i32 = arith.constant 0 : i32
    %c0_i32_0 = arith.constant 0 : i32
    %c0_i32_1 = arith.constant 0 : i32
    %c0_i32_2 = arith.constant 0 : i32
    return %c0_i32, %c0_i32_0, %c0_i32_1 : i32, i32, i32
  }
  func.func @transform_12(%arg0: i32) -> (i32, i32, i32) {
    %c0_i32 = arith.constant 0 : i32
    %c0_i32_0 = arith.constant 0 : i32
    %c0_i32_1 = arith.constant 0 : i32
    %c0_i32_2 = arith.constant 0 : i32
    return %c0_i32, %c0_i32_0, %c0_i32_1 : i32, i32, i32
  }
  func.func @transform_13(%arg0: i32) -> (i32, i32, i32) {
    %c0_i32 = arith.constant 0 : i32
    %c0_i32_0 = arith.constant 0 : i32
    %c0_i32_1 = arith.constant 0 : i32
    %c0_i32_2 = arith.constant 0 : i32
    return %c0_i32, %c0_i32_0, %c0_i32_1 : i32, i32, i32
  }
  func.func @transform_14(%arg0: i32) -> (i32, i32, i32) {
    %c0_i32 = arith.constant 0 : i32
    %c0_i32_0 = arith.constant 0 : i32
    %c0_i32_1 = arith.constant 0 : i32
    %c0_i32_2 = arith.constant 0 : i32
    return %c0_i32, %c0_i32_0, %c0_i32_1 : i32, i32, i32
  }
  func.func @transform_15(%arg0: i32) -> (i32, i32, i32) {
    %c0_i32 = arith.constant 0 : i32
    %c0_i32_0 = arith.constant 0 : i32
    %c0_i32_1 = arith.constant 0 : i32
    %c0_i32_2 = arith.constant 0 : i32
    return %c0_i32, %c0_i32_0, %c0_i32_1 : i32, i32, i32
  }
  func.func @transform_16(%arg0: i32) -> (i32, i32, i32) {
    %c0_i32 = arith.constant 0 : i32
    %c0_i32_0 = arith.constant 0 : i32
    %c0_i32_1 = arith.constant 0 : i32
    %c0_i32_2 = arith.constant 0 : i32
    return %c0_i32, %c0_i32_0, %c0_i32_1 : i32, i32, i32
  }
  func.func @transform_17(%arg0: i32) -> (i32, i32, i32) {
    %c0_i32 = arith.constant 0 : i32
    %c0_i32_0 = arith.constant 0 : i32
    %c0_i32_1 = arith.constant 0 : i32
    %c0_i32_2 = arith.constant 0 : i32
    return %c0_i32, %c0_i32_0, %c0_i32_1 : i32, i32, i32
  }
  func.func @transform_18(%arg0: i32) -> (i32, i32, i32) {
    %c0_i32 = arith.constant 0 : i32
    %c0_i32_0 = arith.constant 0 : i32
    %c0_i32_1 = arith.constant 0 : i32
    %c0_i32_2 = arith.constant 0 : i32
    return %c0_i32, %c0_i32_0, %c0_i32_1 : i32, i32, i32
  }
  func.func @transform_19(%arg0: i32) -> (i32, i32, i32) {
    %c0_i32 = arith.constant 0 : i32
    %c0_i32_0 = arith.constant 0 : i32
    %c0_i32_1 = arith.constant 0 : i32
    %c0_i32_2 = arith.constant 0 : i32
    return %c0_i32, %c0_i32_0, %c0_i32_1 : i32, i32, i32
  }
  func.func @transform_20(%arg0: i32) -> (i32, i32) {
    %c0_i32 = arith.constant 0 : i32
    %c0_i32_0 = arith.constant 0 : i32
    %c0_i32_1 = arith.constant 0 : i32
    return %c0_i32, %c0_i32_0 : i32, i32
  }
  func.func @transform_21(%arg0: i32) -> (i32, i32) {
    %c0_i32 = arith.constant 0 : i32
    %c0_i32_0 = arith.constant 0 : i32
    %c0_i32_1 = arith.constant 0 : i32
    return %c0_i32, %c0_i32_0 : i32, i32
  }
  func.func @transform_22(%arg0: i32) -> (i32, i32) {
    %c0_i32 = arith.constant 0 : i32
    %c0_i32_0 = arith.constant 0 : i32
    %c0_i32_1 = arith.constant 0 : i32
    return %c0_i32, %c0_i32_0 : i32, i32
  }
  func.func @transform_23(%arg0: i32) -> (i32, i32) {
    %c0_i32 = arith.constant 0 : i32
    %c0_i32_0 = arith.constant 0 : i32
    %c0_i32_1 = arith.constant 0 : i32
    return %c0_i32, %c0_i32_0 : i32, i32
  }
  func.func @transform_24(%arg0: i32) -> (i32, i32, i32) {
    %c0_i32 = arith.constant 0 : i32
    %c0_i32_0 = arith.constant 0 : i32
    %c0_i32_1 = arith.constant 0 : i32
    return %arg0, %c0_i32, %c0_i32_0 : i32, i32, i32
  }
}

</mosaic_0001>

<llo_original>
// kernel: xlmr_forward.1
$region0: #{xlmr_forward.1}
  #allocation0 [shape = 'u32[]', space=smem, size = 0x4, offset = 0x4, fixed_abs, tag = 'smem constant byte address 0x4 - core index']
  #allocation1 [shape = 'u32[144,128]{1,0:T(1,128)}', space=vmem, size = 0x12000, scoped, tag = 'internal scratch']
  %s0 = inlined_call_operand.vmem [shape: f32[2,16,64], index: 0, kind: input, shape index: {}]
  %s1 = inlined_call_operand.vmem [shape: f32[2,1,16], index: 1, kind: input, shape index: {}]
  %s2 = inlined_call_operand.vmem [shape: f32[1,64], index: 2, kind: input, shape index: {}]
  %s3 = inlined_call_operand.vmem [shape: f32[1,64], index: 3, kind: input, shape index: {}]
  %s4 = inlined_call_operand.vmem [shape: bf16[2,4,64,16], index: 4, kind: input, shape index: {}]
  %s5 = inlined_call_operand.vmem [shape: bf16[2,4,64,16], index: 5, kind: input, shape index: {}]
  %s6 = inlined_call_operand.vmem [shape: bf16[2,4,64,16], index: 6, kind: input, shape index: {}]
  %s7 = inlined_call_operand.vmem [shape: f32[2,4,1,16], index: 7, kind: input, shape index: {}]
  %s8 = inlined_call_operand.vmem [shape: f32[2,4,1,16], index: 8, kind: input, shape index: {}]
  %s9 = inlined_call_operand.vmem [shape: f32[2,4,1,16], index: 9, kind: input, shape index: {}]
  %s10 = inlined_call_operand.vmem [shape: bf16[2,64,64], index: 10, kind: input, shape index: {}]
  %s11 = inlined_call_operand.vmem [shape: f32[2,1,64], index: 11, kind: input, shape index: {}]
  %s12 = inlined_call_operand.vmem [shape: f32[2,1,64], index: 12, kind: input, shape index: {}]
  %s13 = inlined_call_operand.vmem [shape: f32[2,1,64], index: 13, kind: input, shape index: {}]
  %s14 = inlined_call_operand.vmem [shape: bf16[2,64,128], index: 14, kind: input, shape index: {}]
  %s15 = inlined_call_operand.vmem [shape: f32[2,1,128], index: 15, kind: input, shape index: {}]
  %s16 = inlined_call_operand.vmem [shape: bf16[2,128,64], index: 16, kind: input, shape index: {}]
  %s17 = inlined_call_operand.vmem [shape: f32[2,1,64], index: 17, kind: input, shape index: {}]
  %s18 = inlined_call_operand.vmem [shape: f32[2,1,64], index: 18, kind: input, shape index: {}]
  %s19 = inlined_call_operand.vmem [shape: f32[2,1,64], index: 19, kind: input, shape index: {}]
  %s20 = inlined_call_operand.vmem [shape: bf16[64,64], index: 20, kind: input, shape index: {}]
  %s21 = inlined_call_operand.vmem [shape: f32[1,64], index: 21, kind: input, shape index: {}]
  %s22 = inlined_call_operand.vmem [shape: bf16[64,3], index: 22, kind: input, shape index: {}]
  %s23 = inlined_call_operand.vmem [shape: f32[1,3], index: 23, kind: input, shape index: {}]
  %s24 = inlined_call_operand.hbm [shape: f32[2,1,3], index: 24, kind: output, shape index: {}]
  %s25 = sld [smem:[#allocation0]]
  $region129: #{xlmr_forward.1} parent=0
    _
  %s27 = ssub.s32 1, %s25
  %s28 = scalar_select 0, %s27, %s25
  $region1: #{xlmr_forward.1} parent=0
    #allocation2 [shape = 'u8[1024]{0}', space=vmem, size = 0x400, scoped, tag = 'output window, operand 0']
    #allocation3 [shape = 's32[2]{0}', space=sflag, size = 0x8, scoped, tag = 'scoped memory for xlmr_forward.1']
    %29 = vsyncpa [#allocation3], 0
    %s30 = scalar_lea.sflag [#allocation3], 1
    %31 = vsyncpa %s30, 0
    loop: start=0, step=1, limit=4
    $region2: #{xlmr_forward.1} parent=1 // loop_pre_header
      _
    $region3: #{xlmr_forward.1} parent=1 // loop_header
      %s33 = sphi 0, %s37
      %p34 = scmp.ge.s32.totalorder %s33, 4
      %s43 = sphi 0, %s45
      %s46 = sphi 0, %s43
      %s47 = sphi 0, %s46
      %s63 = sphi 0, %s47
      %s69 = sphi 0, %s71
      %s72 = sphi 0, %s69
      %s73 = sphi 0, %s72
      %s89 = sphi 0, %s73
      %s93 = sphi 0, %s93
      %s95 = sphi 0, %s93
      %s96 = sphi 0, %s95
      %s110 = sphi 0, %s96
      %s114 = sphi 0, %s114
      %s116 = sphi 0, %s114
      %s117 = sphi 0, %s116
      %s131 = sphi 0, %s117
      %s135 = sphi 0, %s135
      %s137 = sphi 0, %s135
      %s138 = sphi 0, %s137
      %s152 = sphi 0, %s138
      %s156 = sphi 0, %s156
      %s158 = sphi 0, %s156
      %s159 = sphi 0, %s158
      %s173 = sphi 0, %s159
      %s177 = sphi 0, %s177
      %s179 = sphi 0, %s177
      %s180 = sphi 0, %s179
      %s194 = sphi 0, %s180
      %s198 = sphi 0, %s198
      %s200 = sphi 0, %s198
      %s201 = sphi 0, %s200
      %s215 = sphi 0, %s201
      %s219 = sphi 0, %s219
      %s221 = sphi 0, %s219
      %s222 = sphi 0, %s221
      %s236 = sphi 0, %s222
      %s240 = sphi 0, %s240
      %s242 = sphi 0, %s240
      %s243 = sphi 0, %s242
      %s257 = sphi 0, %s243
      %s261 = sphi 0, %s261
      %s263 = sphi 0, %s261
      %s264 = sphi 0, %s263
      %s278 = sphi 0, %s264
      %s282 = sphi 0, %s282
      %s284 = sphi 0, %s282
      %s285 = sphi 0, %s284
      %s299 = sphi 0, %s285
      %s303 = sphi 0, %s303
      %s305 = sphi 0, %s303
      %s306 = sphi 0, %s305
      %s320 = sphi 0, %s306
      %s324 = sphi 0, %s324
      %s326 = sphi 0, %s324
      %s327 = sphi 0, %s326
      %s341 = sphi 0, %s327
      %s345 = sphi 0, %s345
      %s347 = sphi 0, %s345
      %s348 = sphi 0, %s347
      %s362 = sphi 0, %s348
      %s366 = sphi 0, %s366
      %s368 = sphi 0, %s366
      %s369 = sphi 0, %s368
      %s383 = sphi 0, %s369
      %s387 = sphi 0, %s387
      %s389 = sphi 0, %s387
      %s390 = sphi 0, %s389
      %s404 = sphi 0, %s390
      %s408 = sphi 0, %s408
      %s410 = sphi 0, %s408
      %s411 = sphi 0, %s410
      %s425 = sphi 0, %s411
      %s429 = sphi 0, %s429
      %s431 = sphi 0, %s429
      %s432 = sphi 0, %s431
      %s446 = sphi 0, %s432
      %s450 = sphi 0, %s450
      %s452 = sphi 0, %s450
      %s453 = sphi 0, %s452
      %s467 = sphi 0, %s453
      %s471 = sphi 0, %s471
      %s473 = sphi 0, %s471
      %s474 = sphi 0, %s473
      %s488 = sphi 0, %s474
      %s492 = sphi 0, %s492
      %s494 = sphi 0, %s492
      %s495 = sphi 0, %s494
      %s509 = sphi 0, %s495
      %s513 = sphi 0, %s513
      %s515 = sphi 0, %s513
      %s516 = sphi 0, %s515
      %s530 = sphi 0, %s516
      %s534 = sphi 0, %s534
      %s536 = sphi 0, %s534
      %s537 = sphi 0, %s536
      %s551 = sphi 0, %s537
      %s557 = sphi 0, %s559
      %s560 = sphi 0, %s557
      %s561 = sphi 0, %s560
      %s577 = sphi 0, %s561
    $region4: #{xlmr_forward.1} parent=1 // loop_header_branch
      %36 = sbr.rel (%p34) target = $region8
    $region5: #{xlmr_forward.1} parent=1 // loop_body
      %s38 = ssub.s32 %s33, 1
      %s39 = ssub.s32 %s33, 2
      %s40 = sadd.s32 %s33, 1
      %s41 = ssub.s32 %s33, %s40
      %p42 = scmp.eq.s32.totalorder %s41, 0
      %s44 = sadd.s32 %s43, 1
      %s45 = scalar_select %p42, %s43, %s44
      %p48 = pneg %p42
      %p49 = scmp.eq.s32.totalorder %s33, 1
      %p50 = por %p48, %p49
      %p51 = scmp.ne.s32.totalorder %s43, %s46
      %p52 = scmp.eq.s32.totalorder %s33, 0
      %p53 = por %p51, %p52
      %p54 = scmp.ne.s32.totalorder %s43, %s46
      %p55 = scmp.eq.s32.totalorder %s38, 1
      %p56 = por %p54, %p55
      %p57 = scmp.ne.s32.totalorder %s46, %s47
      %p58 = scmp.eq.s32.totalorder %s38, 0
      %p59 = por %p57, %p58
      %p60 = scmp.ne.s32.totalorder %s46, %s47
      %p61 = scmp.eq.s32.totalorder %s39, 1
      %p62 = por %p60, %p61
      %p64 = scmp.ne.s32.totalorder %s47, %s63
      %p65 = scmp.eq.s32.totalorder %s39, 0
      %p66 = por %p64, %p65
      %s67 = ssub.s32 %s33, %s40
      %p68 = scmp.eq.s32.totalorder %s67, 0
      %s70 = sadd.s32 %s69, 1
      %s71 = scalar_select %p68, %s69, %s70
      %p74 = pneg %p68
      %p75 = scmp.eq.s32.totalorder %s33, 1
      %p76 = por %p74, %p75
      %p77 = scmp.ne.s32.totalorder %s69, %s72
      %p78 = scmp.eq.s32.totalorder %s33, 0
      %p79 = por %p77, %p78
      %p80 = scmp.ne.s32.totalorder %s69, %s72
      %p81 = scmp.eq.s32.totalorder %s38, 1
      %p82 = por %p80, %p81
      %p83 = scmp.ne.s32.totalorder %s72, %s73
      %p84 = scmp.eq.s32.totalorder %s38, 0
      %p85 = por %p83, %p84
      %p86 = scmp.ne.s32.totalorder %s72, %s73
      %p87 = scmp.eq.s32.totalorder %s39, 1
      %p88 = por %p86, %p87
      %p90 = scmp.ne.s32.totalorder %s73, %s89
      %p91 = scmp.eq.s32.totalorder %s39, 0
      %p92 = por %p90, %p91
      %s94 = sadd.s32 %s93, 1
      %p97 = scmp.eq.s32.totalorder %s33, 1
      %p98 = scmp.ne.s32.totalorder %s93, %s95
      %p99 = scmp.eq.s32.totalorder %s33, 0
      %p100 = por %p98, %p99
      %p101 = scmp.ne.s32.totalorder %s93, %s95
      %p102 = scmp.eq.s32.totalorder %s38, 1
      %p103 = por %p101, %p102
      %p104 = scmp.ne.s32.totalorder %s95, %s96
      %p105 = scmp.eq.s32.totalorder %s38, 0
      %p106 = por %p104, %p105
      %p107 = scmp.ne.s32.totalorder %s95, %s96
      %p108 = scmp.eq.s32.totalorder %s39, 1
      %p109 = por %p107, %p108
      %p111 = scmp.ne.s32.totalorder %s96, %s110
      %p112 = scmp.eq.s32.totalorder %s39, 0
      %p113 = por %p111, %p112
      %s115 = sadd.s32 %s114, 1
      %p118 = scmp.eq.s32.totalorder %s33, 1
      %p119 = scmp.ne.s32.totalorder %s114, %s116
      %p120 = scmp.eq.s32.totalorder %s33, 0
      %p121 = por %p119, %p120
      %p122 = scmp.ne.s32.totalorder %s114, %s116
      %p123 = scmp.eq.s32.totalorder %s38, 1
      %p124 = por %p122, %p123
      %p125 = scmp.ne.s32.totalorder %s116, %s117
      %p126 = scmp.eq.s32.totalorder %s38, 0
      %p127 = por %p125, %p126
      %p128 = scmp.ne.s32.totalorder %s116, %s117
      %p129 = scmp.eq.s32.totalorder %s39, 1
      %p130 = por %p128, %p129
      %p132 = scmp.ne.s32.totalorder %s117, %s131
      %p133 = scmp.eq.s32.totalorder %s39, 0
      %p134 = por %p132, %p133
      %s136 = sadd.s32 %s135, 1
      %p139 = scmp.eq.s32.totalorder %s33, 1
      %p140 = scmp.ne.s32.totalorder %s135, %s137
      %p141 = scmp.eq.s32.totalorder %s33, 0
      %p142 = por %p140, %p141
      %p143 = scmp.ne.s32.totalorder %s135, %s137
      %p144 = scmp.eq.s32.totalorder %s38, 1
      %p145 = por %p143, %p144
      %p146 = scmp.ne.s32.totalorder %s137, %s138
      %p147 = scmp.eq.s32.totalorder %s38, 0
      %p148 = por %p146, %p147
      %p149 = scmp.ne.s32.totalorder %s137, %s138
      %p150 = scmp.eq.s32.totalorder %s39, 1
      %p151 = por %p149, %p150
      %p153 = scmp.ne.s32.totalorder %s138, %s152
      %p154 = scmp.eq.s32.totalorder %s39, 0
      %p155 = por %p153, %p154
      %s157 = sadd.s32 %s156, 1
      %p160 = scmp.eq.s32.totalorder %s33, 1
      %p161 = scmp.ne.s32.totalorder %s156, %s158
      %p162 = scmp.eq.s32.totalorder %s33, 0
      %p163 = por %p161, %p162
      %p164 = scmp.ne.s32.totalorder %s156, %s158
      %p165 = scmp.eq.s32.totalorder %s38, 1
      %p166 = por %p164, %p165
      %p167 = scmp.ne.s32.totalorder %s158, %s159
      %p168 = scmp.eq.s32.totalorder %s38, 0
      %p169 = por %p167, %p168
      %p170 = scmp.ne.s32.totalorder %s158, %s159
      %p171 = scmp.eq.s32.totalorder %s39, 1
      %p172 = por %p170, %p171
      %p174 = scmp.ne.s32.totalorder %s159, %s173
      %p175 = scmp.eq.s32.totalorder %s39, 0
      %p176 = por %p174, %p175
      %s178 = sadd.s32 %s177, 1
      %p181 = scmp.eq.s32.totalorder %s33, 1
      %p182 = scmp.ne.s32.totalorder %s177, %s179
      %p183 = scmp.eq.s32.totalorder %s33, 0
      %p184 = por %p182, %p183
      %p185 = scmp.ne.s32.totalorder %s177, %s179
      %p186 = scmp.eq.s32.totalorder %s38, 1
      %p187 = por %p185, %p186
      %p188 = scmp.ne.s32.totalorder %s179, %s180
      %p189 = scmp.eq.s32.totalorder %s38, 0
      %p190 = por %p188, %p189
      %p191 = scmp.ne.s32.totalorder %s179, %s180
      %p192 = scmp.eq.s32.totalorder %s39, 1
      %p193 = por %p191, %p192
      %p195 = scmp.ne.s32.totalorder %s180, %s194
      %p196 = scmp.eq.s32.totalorder %s39, 0
      %p197 = por %p195, %p196
      %s199 = sadd.s32 %s198, 1
      %p202 = scmp.eq.s32.totalorder %s33, 1
      %p203 = scmp.ne.s32.totalorder %s198, %s200
      %p204 = scmp.eq.s32.totalorder %s33, 0
      %p205 = por %p203, %p204
      %p206 = scmp.ne.s32.totalorder %s198, %s200
      %p207 = scmp.eq.s32.totalorder %s38, 1
      %p208 = por %p206, %p207
      %p209 = scmp.ne.s32.totalorder %s200, %s201
      %p210 = scmp.eq.s32.totalorder %s38, 0
      %p211 = por %p209, %p210
      %p212 = scmp.ne.s32.totalorder %s200, %s201
      %p213 = scmp.eq.s32.totalorder %s39, 1
      %p214 = por %p212, %p213
      %p216 = scmp.ne.s32.totalorder %s201, %s215
      %p217 = scmp.eq.s32.totalorder %s39, 0
      %p218 = por %p216, %p217
      %s220 = sadd.s32 %s219, 1
      %p223 = scmp.eq.s32.totalorder %s33, 1
      %p224 = scmp.ne.s32.totalorder %s219, %s221
      %p225 = scmp.eq.s32.totalorder %s33, 0
      %p226 = por %p224, %p225
      %p227 = scmp.ne.s32.totalorder %s219, %s221
      %p228 = scmp.eq.s32.totalorder %s38, 1
      %p229 = por %p227, %p228
      %p230 = scmp.ne.s32.totalorder %s221, %s222
      %p231 = scmp.eq.s32.totalorder %s38, 0
      %p232 = por %p230, %p231
      %p233 = scmp.ne.s32.totalorder %s221, %s222
      %p234 = scmp.eq.s32.totalorder %s39, 1
      %p235 = por %p233, %p234
      %p237 = scmp.ne.s32.totalorder %s222, %s236
      %p238 = scmp.eq.s32.totalorder %s39, 0
      %p239 = por %p237, %p238
      %s241 = sadd.s32 %s240, 1
      %p244 = scmp.eq.s32.totalorder %s33, 1
      %p245 = scmp.ne.s32.totalorder %s240, %s242
      %p246 = scmp.eq.s32.totalorder %s33, 0
      %p247 = por %p245, %p246
      %p248 = scmp.ne.s32.totalorder %s240, %s242
      %p249 = scmp.eq.s32.totalorder %s38, 1
      %p250 = por %p248, %p249
      %p251 = scmp.ne.s32.totalorder %s242, %s243
      %p252 = scmp.eq.s32.totalorder %s38, 0
      %p253 = por %p251, %p252
      %p254 = scmp.ne.s32.totalorder %s242, %s243
      %p255 = scmp.eq.s32.totalorder %s39, 1
      %p256 = por %p254, %p255
      %p258 = scmp.ne.s32.totalorder %s243, %s257
      %p259 = scmp.eq.s32.totalorder %s39, 0
      %p260 = por %p258, %p259
      %s262 = sadd.s32 %s261, 1
      %p265 = scmp.eq.s32.totalorder %s33, 1
      %p266 = scmp.ne.s32.totalorder %s261, %s263
      %p267 = scmp.eq.s32.totalorder %s33, 0
      %p268 = por %p266, %p267
      %p269 = scmp.ne.s32.totalorder %s261, %s263
      %p270 = scmp.eq.s32.totalorder %s38, 1
      %p271 = por %p269, %p270
      %p272 = scmp.ne.s32.totalorder %s263, %s264
      %p273 = scmp.eq.s32.totalorder %s38, 0
      %p274 = por %p272, %p273
      %p275 = scmp.ne.s32.totalorder %s263, %s264
      %p276 = scmp.eq.s32.totalorder %s39, 1
      %p277 = por %p275, %p276
      %p279 = scmp.ne.s32.totalorder %s264, %s278
      %p280 = scmp.eq.s32.totalorder %s39, 0
      %p281 = por %p279, %p280
      %s283 = sadd.s32 %s282, 1
      %p286 = scmp.eq.s32.totalorder %s33, 1
      %p287 = scmp.ne.s32.totalorder %s282, %s284
      %p288 = scmp.eq.s32.totalorder %s33, 0
      %p289 = por %p287, %p288
      %p290 = scmp.ne.s32.totalorder %s282, %s284
      %p291 = scmp.eq.s32.totalorder %s38, 1
      %p292 = por %p290, %p291
      %p293 = scmp.ne.s32.totalorder %s284, %s285
      %p294 = scmp.eq.s32.totalorder %s38, 0
      %p295 = por %p293, %p294
      %p296 = scmp.ne.s32.totalorder %s284, %s285
      %p297 = scmp.eq.s32.totalorder %s39, 1
      %p298 = por %p296, %p297
      %p300 = scmp.ne.s32.totalorder %s285, %s299
      %p301 = scmp.eq.s32.totalorder %s39, 0
      %p302 = por %p300, %p301
      %s304 = sadd.s32 %s303, 1
      %p307 = scmp.eq.s32.totalorder %s33, 1
      %p308 = scmp.ne.s32.totalorder %s303, %s305
      %p309 = scmp.eq.s32.totalorder %s33, 0
      %p310 = por %p308, %p309
      %p311 = scmp.ne.s32.totalorder %s303, %s305
      %p312 = scmp.eq.s32.totalorder %s38, 1
      %p313 = por %p311, %p312
      %p314 = scmp.ne.s32.totalorder %s305, %s306
      %p315 = scmp.eq.s32.totalorder %s38, 0
      %p316 = por %p314, %p315
      %p317 = scmp.ne.s32.totalorder %s305, %s306
      %p318 = scmp.eq.s32.totalorder %s39, 1
      %p319 = por %p317, %p318
      %p321 = scmp.ne.s32.totalorder %s306, %s320
      %p322 = scmp.eq.s32.totalorder %s39, 0
      %p323 = por %p321, %p322
      %s325 = sadd.s32 %s324, 1
      %p328 = scmp.eq.s32.totalorder %s33, 1
      %p329 = scmp.ne.s32.totalorder %s324, %s326
      %p330 = scmp.eq.s32.totalorder %s33, 0
      %p331 = por %p329, %p330
      %p332 = scmp.ne.s32.totalorder %s324, %s326
      %p333 = scmp.eq.s32.totalorder %s38, 1
      %p334 = por %p332, %p333
      %p335 = scmp.ne.s32.totalorder %s326, %s327
      %p336 = scmp.eq.s32.totalorder %s38, 0
      %p337 = por %p335, %p336
      %p338 = scmp.ne.s32.totalorder %s326, %s327
      %p339 = scmp.eq.s32.totalorder %s39, 1
      %p340 = por %p338, %p339
      %p342 = scmp.ne.s32.totalorder %s327, %s341
      %p343 = scmp.eq.s32.totalorder %s39, 0
      %p344 = por %p342, %p343
      %s346 = sadd.s32 %s345, 1
      %p349 = scmp.eq.s32.totalorder %s33, 1
      %p350 = scmp.ne.s32.totalorder %s345, %s347
      %p351 = scmp.eq.s32.totalorder %s33, 0
      %p352 = por %p350, %p351
      %p353 = scmp.ne.s32.totalorder %s345, %s347
      %p354 = scmp.eq.s32.totalorder %s38, 1
      %p355 = por %p353, %p354
      %p356 = scmp.ne.s32.totalorder %s347, %s348
      %p357 = scmp.eq.s32.totalorder %s38, 0
      %p358 = por %p356, %p357
      %p359 = scmp.ne.s32.totalorder %s347, %s348
      %p360 = scmp.eq.s32.totalorder %s39, 1
      %p361 = por %p359, %p360
      %p363 = scmp.ne.s32.totalorder %s348, %s362
      %p364 = scmp.eq.s32.totalorder %s39, 0
      %p365 = por %p363, %p364
      %s367 = sadd.s32 %s366, 1
      %p370 = scmp.eq.s32.totalorder %s33, 1
      %p371 = scmp.ne.s32.totalorder %s366, %s368
      %p372 = scmp.eq.s32.totalorder %s33, 0
      %p373 = por %p371, %p372
      %p374 = scmp.ne.s32.totalorder %s366, %s368
      %p375 = scmp.eq.s32.totalorder %s38, 1
      %p376 = por %p374, %p375
      %p377 = scmp.ne.s32.totalorder %s368, %s369
      %p378 = scmp.eq.s32.totalorder %s38, 0
      %p379 = por %p377, %p378
      %p380 = scmp.ne.s32.totalorder %s368, %s369
      %p381 = scmp.eq.s32.totalorder %s39, 1
      %p382 = por %p380, %p381
      %p384 = scmp.ne.s32.totalorder %s369, %s383
      %p385 = scmp.eq.s32.totalorder %s39, 0
      %p386 = por %p384, %p385
      %s388 = sadd.s32 %s387, 1
      %p391 = scmp.eq.s32.totalorder %s33, 1
      %p392 = scmp.ne.s32.totalorder %s387, %s389
      %p393 = scmp.eq.s32.totalorder %s33, 0
      %p394 = por %p392, %p393
      %p395 = scmp.ne.s32.totalorder %s387, %s389
      %p396 = scmp.eq.s32.totalorder %s38, 1
      %p397 = por %p395, %p396
      %p398 = scmp.ne.s32.totalorder %s389, %s390
      %p399 = scmp.eq.s32.totalorder %s38, 0
      %p400 = por %p398, %p399
      %p401 = scmp.ne.s32.totalorder %s389, %s390
      %p402 = scmp.eq.s32.totalorder %s39, 1
      %p403 = por %p401, %p402
      %p405 = scmp.ne.s32.totalorder %s390, %s404
      %p406 = scmp.eq.s32.totalorder %s39, 0
      %p407 = por %p405, %p406
      %s409 = sadd.s32 %s408, 1
      %p412 = scmp.eq.s32.totalorder %s33, 1
      %p413 = scmp.ne.s32.totalorder %s408, %s410
      %p414 = scmp.eq.s32.totalorder %s33, 0
      %p415 = por %p413, %p414
      %p416 = scmp.ne.s32.totalorder %s408, %s410
      %p417 = scmp.eq.s32.totalorder %s38, 1
      %p418 = por %p416, %p417
      %p419 = scmp.ne.s32.totalorder %s410, %s411
      %p420 = scmp.eq.s32.totalorder %s38, 0
      %p421 = por %p419, %p420
      %p422 = scmp.ne.s32.totalorder %s410, %s411
      %p423 = scmp.eq.s32.totalorder %s39, 1
      %p424 = por %p422, %p423
      %p426 = scmp.ne.s32.totalorder %s411, %s425
      %p427 = scmp.eq.s32.totalorder %s39, 0
      %p428 = por %p426, %p427
      %s430 = sadd.s32 %s429, 1
      %p433 = scmp.eq.s32.totalorder %s33, 1
      %p434 = scmp.ne.s32.totalorder %s429, %s431
      %p435 = scmp.eq.s32.totalorder %s33, 0
      %p436 = por %p434, %p435
      %p437 = scmp.ne.s32.totalorder %s429, %s431
      %p438 = scmp.eq.s32.totalorder %s38, 1
      %p439 = por %p437, %p438
      %p440 = scmp.ne.s32.totalorder %s431, %s432
      %p441 = scmp.eq.s32.totalorder %s38, 0
      %p442 = por %p440, %p441
      %p443 = scmp.ne.s32.totalorder %s431, %s432
      %p444 = scmp.eq.s32.totalorder %s39, 1
      %p445 = por %p443, %p444
      %p447 = scmp.ne.s32.totalorder %s432, %s446
      %p448 = scmp.eq.s32.totalorder %s39, 0
      %p449 = por %p447, %p448
      %s451 = sadd.s32 %s450, 1
      %p454 = scmp.eq.s32.totalorder %s33, 1
      %p455 = scmp.ne.s32.totalorder %s450, %s452
      %p456 = scmp.eq.s32.totalorder %s33, 0
      %p457 = por %p455, %p456
      %p458 = scmp.ne.s32.totalorder %s450, %s452
      %p459 = scmp.eq.s32.totalorder %s38, 1
      %p460 = por %p458, %p459
      %p461 = scmp.ne.s32.totalorder %s452, %s453
      %p462 = scmp.eq.s32.totalorder %s38, 0
      %p463 = por %p461, %p462
      %p464 = scmp.ne.s32.totalorder %s452, %s453
      %p465 = scmp.eq.s32.totalorder %s39, 1
      %p466 = por %p464, %p465
      %p468 = scmp.ne.s32.totalorder %s453, %s467
      %p469 = scmp.eq.s32.totalorder %s39, 0
      %p470 = por %p468, %p469
      %s472 = sadd.s32 %s471, 1
      %p475 = scmp.eq.s32.totalorder %s33, 1
      %p476 = scmp.ne.s32.totalorder %s471, %s473
      %p477 = scmp.eq.s32.totalorder %s33, 0
      %p478 = por %p476, %p477
      %p479 = scmp.ne.s32.totalorder %s471, %s473
      %p480 = scmp.eq.s32.totalorder %s38, 1
      %p481 = por %p479, %p480
      %p482 = scmp.ne.s32.totalorder %s473, %s474
      %p483 = scmp.eq.s32.totalorder %s38, 0
      %p484 = por %p482, %p483
      %p485 = scmp.ne.s32.totalorder %s473, %s474
      %p486 = scmp.eq.s32.totalorder %s39, 1
      %p487 = por %p485, %p486
      %p489 = scmp.ne.s32.totalorder %s474, %s488
      %p490 = scmp.eq.s32.totalorder %s39, 0
      %p491 = por %p489, %p490
      %s493 = sadd.s32 %s492, 1
      %p496 = scmp.eq.s32.totalorder %s33, 1
      %p497 = scmp.ne.s32.totalorder %s492, %s494
      %p498 = scmp.eq.s32.totalorder %s33, 0
      %p499 = por %p497, %p498
      %p500 = scmp.ne.s32.totalorder %s492, %s494
      %p501 = scmp.eq.s32.totalorder %s38, 1
      %p502 = por %p500, %p501
      %p503 = scmp.ne.s32.totalorder %s494, %s495
      %p504 = scmp.eq.s32.totalorder %s38, 0
      %p505 = por %p503, %p504
      %p506 = scmp.ne.s32.totalorder %s494, %s495
      %p507 = scmp.eq.s32.totalorder %s39, 1
      %p508 = por %p506, %p507
      %p510 = scmp.ne.s32.totalorder %s495, %s509
      %p511 = scmp.eq.s32.totalorder %s39, 0
      %p512 = por %p510, %p511
      %s514 = sadd.s32 %s513, 1
      %p517 = scmp.eq.s32.totalorder %s33, 1
      %p518 = scmp.ne.s32.totalorder %s513, %s515
      %p519 = scmp.eq.s32.totalorder %s33, 0
      %p520 = por %p518, %p519
      %p521 = scmp.ne.s32.totalorder %s513, %s515
      %p522 = scmp.eq.s32.totalorder %s38, 1
      %p523 = por %p521, %p522
      %p524 = scmp.ne.s32.totalorder %s515, %s516
      %p525 = scmp.eq.s32.totalorder %s38, 0
      %p526 = por %p524, %p525
      %p527 = scmp.ne.s32.totalorder %s515, %s516
      %p528 = scmp.eq.s32.totalorder %s39, 1
      %p529 = por %p527, %p528
      %p531 = scmp.ne.s32.totalorder %s516, %s530
      %p532 = scmp.eq.s32.totalorder %s39, 0
      %p533 = por %p531, %p532
      %s535 = sadd.s32 %s534, 1
      %p538 = scmp.eq.s32.totalorder %s33, 1
      %p539 = scmp.ne.s32.totalorder %s534, %s536
      %p540 = scmp.eq.s32.totalorder %s33, 0
      %p541 = por %p539, %p540
      %p542 = scmp.ne.s32.totalorder %s534, %s536
      %p543 = scmp.eq.s32.totalorder %s38, 1
      %p544 = por %p542, %p543
      %p545 = scmp.ne.s32.totalorder %s536, %s537
      %p546 = scmp.eq.s32.totalorder %s38, 0
      %p547 = por %p545, %p546
      %p548 = scmp.ne.s32.totalorder %s536, %s537
      %p549 = scmp.eq.s32.totalorder %s39, 1
      %p550 = por %p548, %p549
      %p552 = scmp.ne.s32.totalorder %s537, %s551
      %p553 = scmp.eq.s32.totalorder %s39, 0
      %p554 = por %p552, %p553
      %s555 = ssub.s32 %s33, %s40
      %p556 = scmp.eq.s32.totalorder %s555, 0
      %s558 = sadd.s32 %s557, 1
      %s559 = scalar_select %p556, %s557, %s558
      %p562 = pneg %p556
      %p563 = scmp.eq.s32.totalorder %s33, 1
      %p564 = por %p562, %p563
      %p565 = scmp.ne.s32.totalorder %s557, %s560
      %p566 = scmp.eq.s32.totalorder %s33, 0
      %p567 = por %p565, %p566
      %p568 = scmp.ne.s32.totalorder %s557, %s560
      %p569 = scmp.eq.s32.totalorder %s38, 1
      %p570 = por %p568, %p569
      %p571 = scmp.ne.s32.totalorder %s560, %s561
      %p572 = scmp.eq.s32.totalorder %s38, 0
      %p573 = por %p571, %p572
      %p574 = scmp.ne.s32.totalorder %s560, %s561
      %p575 = scmp.eq.s32.totalorder %s39, 1
      %p576 = por %p574, %p575
      %p578 = scmp.ne.s32.totalorder %s561, %s577
      %p579 = scmp.eq.s32.totalorder %s39, 0
      %p580 = por %p578, %p579
      %p581 = scmp.le.s32.totalorder 1, %s33
      %p582 = scmp.lt.s32.totalorder %s33, 3
      %p583 = pnand %p581, %p582
      %p584 = pneg %p583
      // Predicated region
      $region9: #{xlmr_forward.1} parent=5 // pred_check
        _
      $region10: #{xlmr_forward.1} parent=5 // pred_check_branch
        %586 = sbr.rel (%p583) target = $region12
      $region11: #{xlmr_forward.1} parent=5 // pred_region
        %s587 = ssub.s32 %s33, 1
        // Predicated region
        $region13: #{xlmr_forward.1} parent=11 // pred_check
          %p588 = pneg %p106
        $region14: #{xlmr_forward.1} parent=11 // pred_check_branch
          %590 = sbr.rel (%p588) target = $region16
        $region15: #{xlmr_forward.1} parent=11 // pred_region
          _
        $region16: #{xlmr_forward.1} parent=11 // pred_fallthru
          _
        // Predicated region
        $region17: #{xlmr_forward.1} parent=11 // pred_check
          %p591 = pneg %p127
        $region18: #{xlmr_forward.1} parent=11 // pred_check_branch
          %593 = sbr.rel (%p591) target = $region20
        $region19: #{xlmr_forward.1} parent=11 // pred_region
          _
        $region20: #{xlmr_forward.1} parent=11 // pred_fallthru
          _
        // Predicated region
        $region21: #{xlmr_forward.1} parent=11 // pred_check
          %p594 = pneg %p148
        $region22: #{xlmr_forward.1} parent=11 // pred_check_branch
          %596 = sbr.rel (%p594) target = $region24
        $region23: #{xlmr_forward.1} parent=11 // pred_region
          _
        $region24: #{xlmr_forward.1} parent=11 // pred_fallthru
          _
        // Predicated region
        $region25: #{xlmr_forward.1} parent=11 // pred_check
          %p597 = pneg %p169
        $region26: #{xlmr_forward.1} parent=11 // pred_check_branch
          %599 = sbr.rel (%p597) target = $region28
        $region27: #{xlmr_forward.1} parent=11 // pred_region
          _
        $region28: #{xlmr_forward.1} parent=11 // pred_fallthru
          _
        // Predicated region
        $region29: #{xlmr_forward.1} parent=11 // pred_check
          %p600 = pneg %p190
        $region30: #{xlmr_forward.1} parent=11 // pred_check_branch
          %602 = sbr.rel (%p600) target = $region32
        $region31: #{xlmr_forward.1} parent=11 // pred_region
          _
        $region32: #{xlmr_forward.1} parent=11 // pred_fallthru
          _
        // Predicated region
        $region33: #{xlmr_forward.1} parent=11 // pred_check
          %p603 = pneg %p211
        $region34: #{xlmr_forward.1} parent=11 // pred_check_branch
          %605 = sbr.rel (%p603) target = $region36
        $region35: #{xlmr_forward.1} parent=11 // pred_region
          _
        $region36: #{xlmr_forward.1} parent=11 // pred_fallthru
          _
        // Predicated region
        $region37: #{xlmr_forward.1} parent=11 // pred_check
          %p606 = pneg %p232
        $region38: #{xlmr_forward.1} parent=11 // pred_check_branch
          %608 = sbr.rel (%p606) target = $region40
        $region39: #{xlmr_forward.1} parent=11 // pred_region
          _
        $region40: #{xlmr_forward.1} parent=11 // pred_fallthru
          _
        // Predicated region
        $region41: #{xlmr_forward.1} parent=11 // pred_check
          %p609 = pneg %p253
        $region42: #{xlmr_forward.1} parent=11 // pred_check_branch
          %611 = sbr.rel (%p609) target = $region44
        $region43: #{xlmr_forward.1} parent=11 // pred_region
          _
        $region44: #{xlmr_forward.1} parent=11 // pred_fallthru
          _
        // Predicated region
        $region45: #{xlmr_forward.1} parent=11 // pred_check
          %p612 = pneg %p274
        $region46: #{xlmr_forward.1} parent=11 // pred_check_branch
          %614 = sbr.rel (%p612) target = $region48
        $region47: #{xlmr_forward.1} parent=11 // pred_region
          _
        $region48: #{xlmr_forward.1} parent=11 // pred_fallthru
          _
        // Predicated region
        $region49: #{xlmr_forward.1} parent=11 // pred_check
          %p615 = pneg %p295
        $region50: #{xlmr_forward.1} parent=11 // pred_check_branch
          %617 = sbr.rel (%p615) target = $region52
        $region51: #{xlmr_forward.1} parent=11 // pred_region
          _
        $region52: #{xlmr_forward.1} parent=11 // pred_fallthru
          _
        // Predicated region
        $region53: #{xlmr_forward.1} parent=11 // pred_check
          %p618 = pneg %p316
        $region54: #{xlmr_forward.1} parent=11 // pred_check_branch
          %620 = sbr.rel (%p618) target = $region56
        $region55: #{xlmr_forward.1} parent=11 // pred_region
          _
        $region56: #{xlmr_forward.1} parent=11 // pred_fallthru
          _
        // Predicated region
        $region57: #{xlmr_forward.1} parent=11 // pred_check
          %p621 = pneg %p337
        $region58: #{xlmr_forward.1} parent=11 // pred_check_branch
          %623 = sbr.rel (%p621) target = $region60
        $region59: #{xlmr_forward.1} parent=11 // pred_region
          _
        $region60: #{xlmr_forward.1} parent=11 // pred_fallthru
          _
        // Predicated region
        $region61: #{xlmr_forward.1} parent=11 // pred_check
          %p624 = pneg %p358
        $region62: #{xlmr_forward.1} parent=11 // pred_check_branch
          %626 = sbr.rel (%p624) target = $region64
        $region63: #{xlmr_forward.1} parent=11 // pred_region
          _
        $region64: #{xlmr_forward.1} parent=11 // pred_fallthru
          _
        // Predicated region
        $region65: #{xlmr_forward.1} parent=11 // pred_check
          %p627 = pneg %p379
        $region66: #{xlmr_forward.1} parent=11 // pred_check_branch
          %629 = sbr.rel (%p627) target = $region68
        $region67: #{xlmr_forward.1} parent=11 // pred_region
          _
        $region68: #{xlmr_forward.1} parent=11 // pred_fallthru
          _
        // Predicated region
        $region69: #{xlmr_forward.1} parent=11 // pred_check
          %p630 = pneg %p400
        $region70: #{xlmr_forward.1} parent=11 // pred_check_branch
          %632 = sbr.rel (%p630) target = $region72
        $region71: #{xlmr_forward.1} parent=11 // pred_region
          _
        $region72: #{xlmr_forward.1} parent=11 // pred_fallthru
          _
        // Predicated region
        $region73: #{xlmr_forward.1} parent=11 // pred_check
          %p633 = pneg %p421
        $region74: #{xlmr_forward.1} parent=11 // pred_check_branch
          %635 = sbr.rel (%p633) target = $region76
        $region75: #{xlmr_forward.1} parent=11 // pred_region
          _
        $region76: #{xlmr_forward.1} parent=11 // pred_fallthru
          _
        // Predicated region
        $region77: #{xlmr_forward.1} parent=11 // pred_check
          %p636 = pneg %p442
        $region78: #{xlmr_forward.1} parent=11 // pred_check_branch
          %638 = sbr.rel (%p636) target = $region80
        $region79: #{xlmr_forward.1} parent=11 // pred_region
          _
        $region80: #{xlmr_forward.1} parent=11 // pred_fallthru
          _
        // Predicated region
        $region81: #{xlmr_forward.1} parent=11 // pred_check
          %p639 = pneg %p463
        $region82: #{xlmr_forward.1} parent=11 // pred_check_branch
          %641 = sbr.rel (%p639) target = $region84
        $region83: #{xlmr_forward.1} parent=11 // pred_region
          _
        $region84: #{xlmr_forward.1} parent=11 // pred_fallthru
          _
        // Predicated region
        $region85: #{xlmr_forward.1} parent=11 // pred_check
          %p642 = pneg %p484
        $region86: #{xlmr_forward.1} parent=11 // pred_check_branch
          %644 = sbr.rel (%p642) target = $region88
        $region87: #{xlmr_forward.1} parent=11 // pred_region
          _
        $region88: #{xlmr_forward.1} parent=11 // pred_fallthru
          _
        // Predicated region
        $region89: #{xlmr_forward.1} parent=11 // pred_check
          %p645 = pneg %p505
        $region90: #{xlmr_forward.1} parent=11 // pred_check_branch
          %647 = sbr.rel (%p645) target = $region92
        $region91: #{xlmr_forward.1} parent=11 // pred_region
          _
        $region92: #{xlmr_forward.1} parent=11 // pred_fallthru
          _
        // Predicated region
        $region93: #{xlmr_forward.1} parent=11 // pred_check
          %p648 = pneg %p526
        $region94: #{xlmr_forward.1} parent=11 // pred_check_branch
          %650 = sbr.rel (%p648) target = $region96
        $region95: #{xlmr_forward.1} parent=11 // pred_region
          _
        $region96: #{xlmr_forward.1} parent=11 // pred_fallthru
          _
        // Predicated region
        $region97: #{xlmr_forward.1} parent=11 // pred_check
          %p651 = pneg %p547
        $region98: #{xlmr_forward.1} parent=11 // pred_check_branch
          %653 = sbr.rel (%p651) target = $region100
        $region99: #{xlmr_forward.1} parent=11 // pred_region
          _
        $region100: #{xlmr_forward.1} parent=11 // pred_fallthru
          _
      $region12: #{xlmr_forward.1} parent=5 // pred_fallthru
        _
      %p654 = scmp.lt.s32.totalorder %s33, 2
      // Predicated region
      $region101: #{xlmr_forward.1} parent=5 // pred_check
        %p655 = pneg %p654
      $region102: #{xlmr_forward.1} parent=5 // pred_check_branch
        %657 = sbr.rel (%p655) target = $region104
      $region103: #{xlmr_forward.1} parent=5 // pred_region
        // Predicated region
        $region105: #{xlmr_forward.1} parent=103 // pred_check
          %p658 = pneg %p53
        $region106: #{xlmr_forward.1} parent=103 // pred_check_branch
          %660 = sbr.rel (%p658) target = $region108
        $region107: #{xlmr_forward.1} parent=103 // pred_region
          %p661 = scmp.lt.s32.totalorder %s33, 1
          %s662 = scalar_select %p661, %s33, 1
          %s663 = smul.addr %s662, 2
          %s664 = smul.addr %s663, 8
          %s665 = scalar_lea.vmem %s0, %s664
        $region108: #{xlmr_forward.1} parent=103 // pred_fallthru
          _
        // Predicated region
        $region109: #{xlmr_forward.1} parent=103 // pred_check
          %p666 = pneg %p79
        $region110: #{xlmr_forward.1} parent=103 // pred_check_branch
          %668 = sbr.rel (%p666) target = $region112
        $region111: #{xlmr_forward.1} parent=103 // pred_region
          %p669 = scmp.lt.s32.totalorder %s33, 1
          %s670 = scalar_select %p669, %s33, 1
          %s671 = scalar_lea.vmem %s1, %s670
        $region112: #{xlmr_forward.1} parent=103 // pred_fallthru
          _
      $region104: #{xlmr_forward.1} parent=5 // pred_fallthru
        _
      %p672 = scmp.le.s32.totalorder 1, %s33
      %p673 = scmp.lt.s32.totalorder %s33, 3
      %p674 = pnand %p672, %p673
      %p675 = pneg %p674
      // Predicated region
      $region113: #{xlmr_forward.1} parent=5 // pred_check
        _
      $region114: #{xlmr_forward.1} parent=5 // pred_check_branch
        %677 = sbr.rel (%p674) target = $region116
      $region115: #{xlmr_forward.1} parent=5 // pred_region
        %s678 = ssub.s32 %s33, 1
        %p679 = scmp.lt.s32.totalorder %s38, 1
        %s680 = scalar_select %p679, %s38, 1
        %s681 = smul.addr %s680, 2
        %s682 = smul.addr %s681, 8
        %s683 = scalar_lea.vmem %s0, %s682
        %p684 = pneg %p59
        %p685 = pneg %p56
        %p686 = scmp.lt.s32.totalorder %s38, 1
        %s687 = scalar_select %p686, %s38, 1
        %s688 = scalar_lea.vmem %s1, %s687
        %p689 = pneg %p85
        %p690 = pneg %p82
        %p691 = pneg %p106
        %p692 = pneg %p103
        %p693 = pneg %p127
        %p694 = pneg %p124
        %p695 = pneg %p148
        %p696 = pneg %p145
        %p697 = pneg %p169
        %p698 = pneg %p166
        %p699 = pneg %p190
        %p700 = pneg %p187
        %p701 = pneg %p211
        %p702 = pneg %p208
        %p703 = pneg %p232
        %p704 = pneg %p229
        %p705 = pneg %p253
        %p706 = pneg %p250
        %p707 = pneg %p274
        %p708 = pneg %p271
        %p709 = pneg %p295
        %p710 = pneg %p292
        %p711 = pneg %p316
        %p712 = pneg %p313
        %p713 = pneg %p337
        %p714 = pneg %p334
        %p715 = pneg %p358
        %p716 = pneg %p355
        %p717 = pneg %p379
        %p718 = pneg %p376
        %p719 = pneg %p400
        %p720 = pneg %p397
        %p721 = pneg %p421
        %p722 = pneg %p418
        %p723 = pneg %p442
        %p724 = pneg %p439
        %p725 = pneg %p463
        %p726 = pneg %p460
        %p727 = pneg %p484
        %p728 = pneg %p481
        %p729 = pneg %p505
        %p730 = pneg %p502
        %p731 = pneg %p526
        %p732 = pneg %p523
        %p733 = pneg %p547
        %p734 = pneg %p544
        %p735 = pneg %p573
        %p736 = pneg %p570
        %s737 = sand.u32 %s560, 1
        %s738 = scalar_lea.sflag [#allocation3], %s737
        %s739 = sand.u32 %s560, 1
        %s740 = scalar_lea.vmem [#allocation2], %s739
        %p741 = scmp.lt.s32.totalorder %s38, 1
        %s742 = scalar_select %p741, %s38, 1
        %s743 = smul.addr %s742, 2
        %s744 = smul.addr %s743, 8
        %s745 = scalar_lea.vmem %s0, %s744
        %p746 = scmp.lt.s32.totalorder %s38, 1
        %s747 = scalar_select %p746, %s38, 1
        %s748 = scalar_lea.vmem %s1, %s747
        %v750 = vld [vmem:[%s748] sm:$0x1]
        %v751 = vsub.f32 %v750, 1.0
        %v752 = vmul.f32 %v751, 1e+09
        %v753 = vld [vmem:[%s745] sm:$0xff]
        %v754 = vld [vmem:[%s745 + $0x8] sm:$0xff]
        %v755 = vld [vmem:[%s2] sm:$0x1]
        %v756 = vld [vmem:[%s3] sm:$0x1]
        %vm757 = vcmask 523264
        %v758 = vsel %vm757, %v753, 0.0
        %759 = vadd.xlane.f32.xlu0 %v758
        %v760 = vpop.xlane.xlu0 %759
        %v761 = vsel %vm757, %v754, 0.0
        %762 = vadd.xlane.f32.xlu0 %v761
        %v763 = vpop.xlane.xlu0 %762
        %v764 = vrcp.pop 64.0
        %v765 = vmul.f32 %v760, %v764
        %v766 = vmul.f32 %v763, %v764
        %v767 = vsub.f32 %v753, %v765
        %v768 = vsub.f32 %v754, %v766
        %v769 = vmul.f32 %v767, %v767
        %v770 = vmul.f32 %v768, %v768
        %v771 = vsel %vm757, %v769, 0.0
        %772 = vadd.xlane.f32.xlu0 %v771
        %v773 = vpop.xlane.xlu0 %772
        %v774 = vsel %vm757, %v770, 0.0
        %775 = vadd.xlane.f32.xlu0 %v774
        %v776 = vpop.xlane.xlu0 %775
        %v777 = vmul.f32 %v773, %v764
        %v778 = vmul.f32 %v776, %v764
        %v779 = vadd.f32 %v777, 1e-05
        %v780 = vadd.f32 %v778, 1e-05
        %v781 = vrsqrt.pop %v779
        %v782 = vrsqrt.pop %v780
        %v783 = vmul.f32 %v767, %v781
        %v784 = vmul.f32 %v768, %v782
        %v786 = vlaneseq
        %v787 = vshrl.u32 %v786, 7
        %v788 = vsub.s32 0, %v787
        %v789 = vrot.slane %v755, %v788
        %v791 = vmul.f32 %v783, %v789
        %v792 = vmul.f32 %v784, %v789
        %v794 = vlaneseq
        %v795 = vshrl.u32 %v794, 7
        %v796 = vsub.s32 0, %v795
        %v797 = vrot.slane %v756, %v796
        %v799 = vadd.f32 %v791, %v797
        %v800 = vadd.f32 %v792, %v797
        %v801 = vpack.c.bf16 %v800, %v799
        %v802 = vld [vmem:[%s4] sm:$0xf]
        %v803 = vld [vmem:[%s4 + $0x4] sm:$0xf]
        %v804 = vld [vmem:[%s4 + $0x8] sm:$0xf]
        %v805 = vld [vmem:[%s4 + $0xc] sm:$0xf]
        %v806 = vld [vmem:[%s4 + $0x10] sm:$0xf]
        %v807 = vld [vmem:[%s4 + $0x14] sm:$0xf]
        %v808 = vld [vmem:[%s4 + $0x18] sm:$0xf]
        %v809 = vld [vmem:[%s4 + $0x1c] sm:$0xf]
        %v810 = vld [vmem:[%s7] sm:$0x1]
        %v812 = vlaneseq
        %v813 = vshrl.u32 %v812, 7
        %v814 = vsub.s32 0, %v813
        %v815 = vrot.slane %v810, %v814
        %v825 = vunpack.c.l.b16 %v802
        %v826 = vunpack.c.l.b16 %v803
        %v827 = vunpack.c.l.b16 %v804
        %v828 = vunpack.c.l.b16 %v805
        %v829 = vunpack.c.l.b16 %v806
        %v830 = vunpack.c.l.b16 %v807
        %v831 = vunpack.c.l.b16 %v808
        %v832 = vunpack.c.l.b16 %v809
        %v833 = vpack.c.b16 %v826, %v825
        %v834 = vpack.c.b16 %v828, %v827
        %v835 = vpack.c.b16 %v830, %v829
        %v836 = vpack.c.b16 %v832, %v831
        %v842 = vsel %vm757, %v801, 0
        %844 = vmatprep.subr.bf16.mxu0 0
        %845 = vmatpush1.bf16.msra.mxu0 %v833
        %846 = vmatprep.subr.bf16.mxu0 0
        %847 = vmatpush1.bf16.msra.mxu0 %v834
        %848 = vmatprep.subr.bf16.mxu0 0
        %849 = vmatpush1.bf16.msra.mxu0 %v835
        %850 = vmatprep.subr.bf16.mxu0 0
        %851 = vmatpush1.bf16.msra.mxu0 %v836
        %852 = vmatprep.subr.bf16.mxu0 0
        %853 = vmatpush1.bf16.msra.mxu0 0
        %854 = vmatprep.subr.bf16.mxu0 0
        %855 = vmatpush1.bf16.msra.mxu0 0
        %856 = vmatprep.subr.bf16.mxu0 0
        %857 = vmatpush1.bf16.msra.mxu0 0
        %858 = vmatprep.subr.bf16.mxu0 0
        %859 = vmatpush1.bf16.msra.mxu0 0
        %860 = vmatprep.subr.bf16.mxu0 0
        %861 = vmatpush1.bf16.msra.mxu0 0
        %862 = vmatprep.subr.bf16.mxu0 0
        %863 = vmatpush1.bf16.msra.mxu0 0
        %864 = vmatprep.subr.bf16.mxu0 0
        %865 = vmatpush1.bf16.msra.mxu0 0
        %866 = vmatprep.subr.bf16.mxu0 0
        %867 = vmatpush1.bf16.msra.mxu0 0
        %868 = vmatprep.subr.bf16.mxu0 0
        %869 = vmatpush1.bf16.msra.mxu0 0
        %870 = vmatprep.subr.bf16.mxu0 0
        %871 = vmatpush1.bf16.msra.mxu0 0
        %872 = vmatprep.subr.bf16.mxu0 0
        %873 = vmatpush1.bf16.msra.mxu0 0
        %874 = vmatprep.subr.bf16.mxu0 0
        %875 = vmatpush1.bf16.msra.mxu0 0
        %876 = vmatprep.mubr.bf16.mxu0 0
        %877 = vmatmul.mubr.bf16.gmra.mrb[0].mxu0 %v842
        %v878 = vpop.f32.mrb[0].mxu0
        %v879 = vadd.f32 %v815, %v878
        %v880 = vpop.f32.mrb[0].mxu0
        %v881 = vpop.f32.mrb[0].mxu0
        %v882 = vadd.f32 %v815, %v881
        %v883 = vpop.f32.mrb[0].mxu0
        %884 = vdwg.mxu0
        %v885 = vld [vmem:[%s5] sm:$0xf]
        %v886 = vld [vmem:[%s5 + $0x4] sm:$0xf]
        %v887 = vld [vmem:[%s5 + $0x8] sm:$0xf]
        %v888 = vld [vmem:[%s5 + $0xc] sm:$0xf]
        %v889 = vld [vmem:[%s5 + $0x10] sm:$0xf]
        %v890 = vld [vmem:[%s5 + $0x14] sm:$0xf]
        %v891 = vld [vmem:[%s5 + $0x18] sm:$0xf]
        %v892 = vld [vmem:[%s5 + $0x1c] sm:$0xf]
        %v893 = vld [vmem:[%s8] sm:$0x1]
        %v895 = vlaneseq
        %v896 = vshrl.u32 %v895, 7
        %v897 = vsub.s32 0, %v896
        %v898 = vrot.slane %v893, %v897
        %v908 = vunpack.c.l.b16 %v885
        %v909 = vunpack.c.l.b16 %v886
        %v910 = vunpack.c.l.b16 %v887
        %v911 = vunpack.c.l.b16 %v888
        %v912 = vunpack.c.l.b16 %v889
        %v913 = vunpack.c.l.b16 %v890
        %v914 = vunpack.c.l.b16 %v891
        %v915 = vunpack.c.l.b16 %v892
        %v916 = vpack.c.b16 %v909, %v908
        %v917 = vpack.c.b16 %v911, %v910
        %v918 = vpack.c.b16 %v913, %v912
        %v919 = vpack.c.b16 %v915, %v914
        %924 = vmatprep.subr.bf16.mxu0 0
        %925 = vmatpush1.bf16.msra.mxu0 %v916
        %926 = vmatprep.subr.bf16.mxu0 0
        %927 = vmatpush1.bf16.msra.mxu0 %v917
        %928 = vmatprep.subr.bf16.mxu0 0
        %929 = vmatpush1.bf16.msra.mxu0 %v918
        %930 = vmatprep.subr.bf16.mxu0 0
        %931 = vmatpush1.bf16.msra.mxu0 %v919
        %932 = vmatprep.subr.bf16.mxu0 0
        %933 = vmatpush1.bf16.msra.mxu0 0
        %934 = vmatprep.subr.bf16.mxu0 0
        %935 = vmatpush1.bf16.msra.mxu0 0
        %936 = vmatprep.subr.bf16.mxu0 0
        %937 = vmatpush1.bf16.msra.mxu0 0
        %938 = vmatprep.subr.bf16.mxu0 0
        %939 = vmatpush1.bf16.msra.mxu0 0
        %940 = vmatprep.subr.bf16.mxu0 0
        %941 = vmatpush1.bf16.msra.mxu0 0
        %942 = vmatprep.subr.bf16.mxu0 0
        %943 = vmatpush1.bf16.msra.mxu0 0
        %944 = vmatprep.subr.bf16.mxu0 0
        %945 = vmatpush1.bf16.msra.mxu0 0
        %946 = vmatprep.subr.bf16.mxu0 0
        %947 = vmatpush1.bf16.msra.mxu0 0
        %948 = vmatprep.subr.bf16.mxu0 0
        %949 = vmatpush1.bf16.msra.mxu0 0
        %950 = vmatprep.subr.bf16.mxu0 0
        %951 = vmatpush1.bf16.msra.mxu0 0
        %952 = vmatprep.subr.bf16.mxu0 0
        %953 = vmatpush1.bf16.msra.mxu0 0
        %954 = vmatprep.subr.bf16.mxu0 0
        %955 = vmatpush1.bf16.msra.mxu0 0
        %956 = vmatprep.mubr.bf16.mxu0 0
        %957 = vmatmul.mubr.bf16.gmra.mrb[0].mxu0 %v842
        %v958 = vpop.f32.mrb[0].mxu0
        %v959 = vadd.f32 %v898, %v958
        %v960 = vpop.f32.mrb[0].mxu0
        %v961 = vpop.f32.mrb[0].mxu0
        %v962 = vadd.f32 %v898, %v961
        %v963 = vpop.f32.mrb[0].mxu0
        %964 = vdwg.mxu0
        %v965 = vld [vmem:[%s6] sm:$0xf]
        %v966 = vld [vmem:[%s6 + $0x4] sm:$0xf]
        %v967 = vld [vmem:[%s6 + $0x8] sm:$0xf]
        %v968 = vld [vmem:[%s6 + $0xc] sm:$0xf]
        %v969 = vld [vmem:[%s6 + $0x10] sm:$0xf]
        %v970 = vld [vmem:[%s6 + $0x14] sm:$0xf]
        %v971 = vld [vmem:[%s6 + $0x18] sm:$0xf]
        %v972 = vld [vmem:[%s6 + $0x1c] sm:$0xf]
        %v973 = vld [vmem:[%s9] sm:$0x1]
        %v975 = vlaneseq
        %v976 = vshrl.u32 %v975, 7
        %v977 = vsub.s32 0, %v976
        %v978 = vrot.slane %v973, %v977
        %v988 = vunpack.c.l.b16 %v965
        %v989 = vunpack.c.l.b16 %v966
        %v990 = vunpack.c.l.b16 %v967
        %v991 = vunpack.c.l.b16 %v968
        %v992 = vunpack.c.l.b16 %v969
        %v993 = vunpack.c.l.b16 %v970
        %v994 = vunpack.c.l.b16 %v971
        %v995 = vunpack.c.l.b16 %v972
        %v996 = vpack.c.b16 %v989, %v988
        %v997 = vpack.c.b16 %v991, %v990
        %v998 = vpack.c.b16 %v993, %v992
        %v999 = vpack.c.b16 %v995, %v994
        %1004 = vmatprep.subr.bf16.mxu0 0
        %1005 = vmatpush1.bf16.msra.mxu0 %v996
        %1006 = vmatprep.subr.bf16.mxu0 0
        %1007 = vmatpush1.bf16.msra.mxu0 %v997
        %1008 = vmatprep.subr.bf16.mxu0 0
        %1009 = vmatpush1.bf16.msra.mxu0 %v998
        %1010 = vmatprep.subr.bf16.mxu0 0
        %1011 = vmatpush1.bf16.msra.mxu0 %v999
        %1012 = vmatprep.subr.bf16.mxu0 0
        %1013 = vmatpush1.bf16.msra.mxu0 0
        %1014 = vmatprep.subr.bf16.mxu0 0
        %1015 = vmatpush1.bf16.msra.mxu0 0
        %1016 = vmatprep.subr.bf16.mxu0 0
        %1017 = vmatpush1.bf16.msra.mxu0 0
        %1018 = vmatprep.subr.bf16.mxu0 0
        %1019 = vmatpush1.bf16.msra.mxu0 0
        %1020 = vmatprep.subr.bf16.mxu0 0
        %1021 = vmatpush1.bf16.msra.mxu0 0
        %1022 = vmatprep.subr.bf16.mxu0 0
        %1023 = vmatpush1.bf16.msra.mxu0 0
        %1024 = vmatprep.subr.bf16.mxu0 0
        %1025 = vmatpush1.bf16.msra.mxu0 0
        %1026 = vmatprep.subr.bf16.mxu0 0
        %1027 = vmatpush1.bf16.msra.mxu0 0
        %1028 = vmatprep.subr.bf16.mxu0 0
        %1029 = vmatpush1.bf16.msra.mxu0 0
        %1030 = vmatprep.subr.bf16.mxu0 0
        %1031 = vmatpush1.bf16.msra.mxu0 0
        %1032 = vmatprep.subr.bf16.mxu0 0
        %1033 = vmatpush1.bf16.msra.mxu0 0
        %1034 = vmatprep.subr.bf16.mxu0 0
        %1035 = vmatpush1.bf16.msra.mxu0 0
        %1036 = vmatprep.mubr.bf16.mxu0 0
        %1037 = vmatmul.mubr.bf16.gmra.mrb[0].mxu0 %v842
        %v1038 = vpop.f32.mrb[0].mxu0
        %v1039 = vadd.f32 %v978, %v1038
        %v1040 = vpop.f32.mrb[0].mxu0
        %v1041 = vpop.f32.mrb[0].mxu0
        %v1042 = vadd.f32 %v978, %v1041
        %v1043 = vpop.f32.mrb[0].mxu0
        %1044 = vdwg.mxu0
        %v1045 = vmul.f32 %v879, 0.25
        %v1046 = vmul.f32 %v882, 0.25
        %v1047 = vpack.c.bf16 %v1046, %v1045
        %v1048 = vpack.c.bf16 %v962, %v959
        %vm1049 = vcmask 130048
        %v1051 = vsel %vm1049, %v1047, 0
        %v1054 = vsel %vm1049, %v1048, 0
        %1056 = vmatprep.subr.bf16.mxu0 0
        %1057 = vmatpush1.bf16.xpose.msra.mxu0 %v1054
        %1058 = vmatprep.subr.bf16.mxu0 0
        %1059 = vmatpush1.bf16.xpose.msra.mxu0 0
        %1060 = vmatprep.subr.bf16.mxu0 0
        %1061 = vmatpush1.bf16.xpose.msra.mxu0 0
        %1062 = vmatprep.subr.bf16.mxu0 0
        %1063 = vmatpush1.bf16.xpose.msra.mxu0 0
        %1064 = vmatprep.subr.bf16.mxu0 0
        %1065 = vmatpush1.bf16.xpose.msra.mxu0 0
        %1066 = vmatprep.subr.bf16.mxu0 0
        %1067 = vmatpush1.bf16.xpose.msra.mxu0 0
        %1068 = vmatprep.subr.bf16.mxu0 0
        %1069 = vmatpush1.bf16.xpose.msra.mxu0 0
        %1070 = vmatprep.subr.bf16.mxu0 0
        %1071 = vmatpush1.bf16.xpose.msra.mxu0 0
        %1072 = vmatprep.subr.bf16.mxu0 0
        %1073 = vmatpush1.bf16.xpose.msra.mxu0 0
        %1074 = vmatprep.subr.bf16.mxu0 0
        %1075 = vmatpush1.bf16.xpose.msra.mxu0 0
        %1076 = vmatprep.subr.bf16.mxu0 0
        %1077 = vmatpush1.bf16.xpose.msra.mxu0 0
        %1078 = vmatprep.subr.bf16.mxu0 0
        %1079 = vmatpush1.bf16.xpose.msra.mxu0 0
        %1080 = vmatprep.subr.bf16.mxu0 0
        %1081 = vmatpush1.bf16.xpose.msra.mxu0 0
        %1082 = vmatprep.subr.bf16.mxu0 0
        %1083 = vmatpush1.bf16.xpose.msra.mxu0 0
        %1084 = vmatprep.subr.bf16.mxu0 0
        %1085 = vmatpush1.bf16.xpose.msra.mxu0 0
        %1086 = vmatprep.subr.bf16.mxu0 0
        %1087 = vmatpush1.bf16.xpose.msra.mxu0 0
        %1088 = vmatprep.mubr.bf16.mxu0 0
        %1089 = vmatmul.mubr.bf16.gmra.mrb[0].mxu0 %v1051
        %v1090 = vpop.f32.mrb[0].mxu0
        %v1091 = vadd.f32 0.0, %v1090
        %v1092 = vpop.f32.mrb[0].mxu0
        %v1093 = vpop.f32.mrb[0].mxu0
        %v1094 = vadd.f32 0.0, %v1093
        %v1095 = vpop.f32.mrb[0].mxu0
        %1096 = vdwg.mxu0
        %v1097 = vpack.c.bf16 %v1042, %v1039
        %s1098 = scalar_lea.vmem %s4, 32
        %v1099 = vld [vmem:[%s1098] sm:$0xf]
        %v1100 = vld [vmem:[%s1098 + $0x4] sm:$0xf]
        %v1101 = vld [vmem:[%s1098 + $0x8] sm:$0xf]
        %v1102 = vld [vmem:[%s1098 + $0xc] sm:$0xf]
        %v1103 = vld [vmem:[%s1098 + $0x10] sm:$0xf]
        %v1104 = vld [vmem:[%s1098 + $0x14] sm:$0xf]
        %v1105 = vld [vmem:[%s1098 + $0x18] sm:$0xf]
        %v1106 = vld [vmem:[%s1098 + $0x1c] sm:$0xf]
        %s1107 = scalar_lea.vmem %s7, 1
        %v1108 = vld [vmem:[%s1107] sm:$0x1]
        %v1110 = vlaneseq
        %v1111 = vshrl.u32 %v1110, 7
        %v1112 = vsub.s32 0, %v1111
        %v1113 = vrot.slane %v1108, %v1112
        %v1123 = vunpack.c.l.b16 %v1099
        %v1124 = vunpack.c.l.b16 %v1100
        %v1125 = vunpack.c.l.b16 %v1101
        %v1126 = vunpack.c.l.b16 %v1102
        %v1127 = vunpack.c.l.b16 %v1103
        %v1128 = vunpack.c.l.b16 %v1104
        %v1129 = vunpack.c.l.b16 %v1105
        %v1130 = vunpack.c.l.b16 %v1106
        %v1131 = vpack.c.b16 %v1124, %v1123
        %v1132 = vpack.c.b16 %v1126, %v1125
        %v1133 = vpack.c.b16 %v1128, %v1127
        %v1134 = vpack.c.b16 %v1130, %v1129
        %1139 = vmatprep.subr.bf16.mxu0 0
        %1140 = vmatpush1.bf16.msra.mxu0 %v1131
        %1141 = vmatprep.subr.bf16.mxu0 0
        %1142 = vmatpush1.bf16.msra.mxu0 %v1132
        %1143 = vmatprep.subr.bf16.mxu0 0
        %1144 = vmatpush1.bf16.msra.mxu0 %v1133
        %1145 = vmatprep.subr.bf16.mxu0 0
        %1146 = vmatpush1.bf16.msra.mxu0 %v1134
        %1147 = vmatprep.subr.bf16.mxu0 0
        %1148 = vmatpush1.bf16.msra.mxu0 0
        %1149 = vmatprep.subr.bf16.mxu0 0
        %1150 = vmatpush1.bf16.msra.mxu0 0
        %1151 = vmatprep.subr.bf16.mxu0 0
        %1152 = vmatpush1.bf16.msra.mxu0 0
        %1153 = vmatprep.subr.bf16.mxu0 0
        %1154 = vmatpush1.bf16.msra.mxu0 0
        %1155 = vmatprep.subr.bf16.mxu0 0
        %1156 = vmatpush1.bf16.msra.mxu0 0
        %1157 = vmatprep.subr.bf16.mxu0 0
        %1158 = vmatpush1.bf16.msra.mxu0 0
        %1159 = vmatprep.subr.bf16.mxu0 0
        %1160 = vmatpush1.bf16.msra.mxu0 0
        %1161 = vmatprep.subr.bf16.mxu0 0
        %1162 = vmatpush1.bf16.msra.mxu0 0
        %1163 = vmatprep.subr.bf16.mxu0 0
        %1164 = vmatpush1.bf16.msra.mxu0 0
        %1165 = vmatprep.subr.bf16.mxu0 0
        %1166 = vmatpush1.bf16.msra.mxu0 0
        %1167 = vmatprep.subr.bf16.mxu0 0
        %1168 = vmatpush1.bf16.msra.mxu0 0
        %1169 = vmatprep.subr.bf16.mxu0 0
        %1170 = vmatpush1.bf16.msra.mxu0 0
        %1171 = vmatprep.mubr.bf16.mxu0 0
        %1172 = vmatmul.mubr.bf16.gmra.mrb[0].mxu0 %v842
        %v1173 = vpop.f32.mrb[0].mxu0
        %v1174 = vadd.f32 %v1113, %v1173
        %v1175 = vpop.f32.mrb[0].mxu0
        %v1176 = vpop.f32.mrb[0].mxu0
        %v1177 = vadd.f32 %v1113, %v1176
        %v1178 = vpop.f32.mrb[0].mxu0
        %1179 = vdwg.mxu0
        %s1180 = scalar_lea.vmem %s5, 32
        %v1181 = vld [vmem:[%s1180] sm:$0xf]
        %v1182 = vld [vmem:[%s1180 + $0x4] sm:$0xf]
        %v1183 = vld [vmem:[%s1180 + $0x8] sm:$0xf]
        %v1184 = vld [vmem:[%s1180 + $0xc] sm:$0xf]
        %v1185 = vld [vmem:[%s1180 + $0x10] sm:$0xf]
        %v1186 = vld [vmem:[%s1180 + $0x14] sm:$0xf]
        %v1187 = vld [vmem:[%s1180 + $0x18] sm:$0xf]
        %v1188 = vld [vmem:[%s1180 + $0x1c] sm:$0xf]
        %s1189 = scalar_lea.vmem %s8, 1
        %v1190 = vld [vmem:[%s1189] sm:$0x1]
        %v1192 = vlaneseq
        %v1193 = vshrl.u32 %v1192, 7
        %v1194 = vsub.s32 0, %v1193
        %v1195 = vrot.slane %v1190, %v1194
        %v1205 = vunpack.c.l.b16 %v1181
        %v1206 = vunpack.c.l.b16 %v1182
        %v1207 = vunpack.c.l.b16 %v1183
        %v1208 = vunpack.c.l.b16 %v1184
        %v1209 = vunpack.c.l.b16 %v1185
        %v1210 = vunpack.c.l.b16 %v1186
        %v1211 = vunpack.c.l.b16 %v1187
        %v1212 = vunpack.c.l.b16 %v1188
        %v1213 = vpack.c.b16 %v1206, %v1205
        %v1214 = vpack.c.b16 %v1208, %v1207
        %v1215 = vpack.c.b16 %v1210, %v1209
        %v1216 = vpack.c.b16 %v1212, %v1211
        %1221 = vmatprep.subr.bf16.mxu0 0
        %1222 = vmatpush1.bf16.msra.mxu0 %v1213
        %1223 = vmatprep.subr.bf16.mxu0 0
        %1224 = vmatpush1.bf16.msra.mxu0 %v1214
        %1225 = vmatprep.subr.bf16.mxu0 0
        %1226 = vmatpush1.bf16.msra.mxu0 %v1215
        %1227 = vmatprep.subr.bf16.mxu0 0
        %1228 = vmatpush1.bf16.msra.mxu0 %v1216
        %1229 = vmatprep.subr.bf16.mxu0 0
        %1230 = vmatpush1.bf16.msra.mxu0 0
        %1231 = vmatprep.subr.bf16.mxu0 0
        %1232 = vmatpush1.bf16.msra.mxu0 0
        %1233 = vmatprep.subr.bf16.mxu0 0
        %1234 = vmatpush1.bf16.msra.mxu0 0
        %1235 = vmatprep.subr.bf16.mxu0 0
        %1236 = vmatpush1.bf16.msra.mxu0 0
        %1237 = vmatprep.subr.bf16.mxu0 0
        %1238 = vmatpush1.bf16.msra.mxu0 0
        %1239 = vmatprep.subr.bf16.mxu0 0
        %1240 = vmatpush1.bf16.msra.mxu0 0
        %1241 = vmatprep.subr.bf16.mxu0 0
        %1242 = vmatpush1.bf16.msra.mxu0 0
        %1243 = vmatprep.subr.bf16.mxu0 0
        %1244 = vmatpush1.bf16.msra.mxu0 0
        %1245 = vmatprep.subr.bf16.mxu0 0
        %1246 = vmatpush1.bf16.msra.mxu0 0
        %1247 = vmatprep.subr.bf16.mxu0 0
        %1248 = vmatpush1.bf16.msra.mxu0 0
        %1249 = vmatprep.subr.bf16.mxu0 0
        %1250 = vmatpush1.bf16.msra.mxu0 0
        %1251 = vmatprep.subr.bf16.mxu0 0
        %1252 = vmatpush1.bf16.msra.mxu0 0
        %1253 = vmatprep.mubr.bf16.mxu0 0
        %1254 = vmatmul.mubr.bf16.gmra.mrb[0].mxu0 %v842
        %v1255 = vpop.f32.mrb[0].mxu0
        %v1256 = vadd.f32 %v1195, %v1255
        %v1257 = vpop.f32.mrb[0].mxu0
        %v1258 = vpop.f32.mrb[0].mxu0
        %v1259 = vadd.f32 %v1195, %v1258
        %v1260 = vpop.f32.mrb[0].mxu0
        %1261 = vdwg.mxu0
        %s1262 = scalar_lea.vmem %s6, 32
        %v1263 = vld [vmem:[%s1262] sm:$0xf]
        %v1264 = vld [vmem:[%s1262 + $0x4] sm:$0xf]
        %v1265 = vld [vmem:[%s1262 + $0x8] sm:$0xf]
        %v1266 = vld [vmem:[%s1262 + $0xc] sm:$0xf]
        %v1267 = vld [vmem:[%s1262 + $0x10] sm:$0xf]
        %v1268 = vld [vmem:[%s1262 + $0x14] sm:$0xf]
        %v1269 = vld [vmem:[%s1262 + $0x18] sm:$0xf]
        %v1270 = vld [vmem:[%s1262 + $0x1c] sm:$0xf]
        %s1271 = scalar_lea.vmem %s9, 1
        %v1272 = vld [vmem:[%s1271] sm:$0x1]
        %v1274 = vlaneseq
        %v1275 = vshrl.u32 %v1274, 7
        %v1276 = vsub.s32 0, %v1275
        %v1277 = vrot.slane %v1272, %v1276
        %v1287 = vunpack.c.l.b16 %v1263
        %v1288 = vunpack.c.l.b16 %v1264
        %v1289 = vunpack.c.l.b16 %v1265
        %v1290 = vunpack.c.l.b16 %v1266
        %v1291 = vunpack.c.l.b16 %v1267
        %v1292 = vunpack.c.l.b16 %v1268
        %v1293 = vunpack.c.l.b16 %v1269
        %v1294 = vunpack.c.l.b16 %v1270
        %v1295 = vpack.c.b16 %v1288, %v1287
        %v1296 = vpack.c.b16 %v1290, %v1289
        %v1297 = vpack.c.b16 %v1292, %v1291
        %v1298 = vpack.c.b16 %v1294, %v1293
        %1303 = vmatprep.subr.bf16.mxu0 0
        %1304 = vmatpush1.bf16.msra.mxu0 %v1295
        %1305 = vmatprep.subr.bf16.mxu0 0
        %1306 = vmatpush1.bf16.msra.mxu0 %v1296
        %1307 = vmatprep.subr.bf16.mxu0 0
        %1308 = vmatpush1.bf16.msra.mxu0 %v1297
        %1309 = vmatprep.subr.bf16.mxu0 0
        %1310 = vmatpush1.bf16.msra.mxu0 %v1298
        %1311 = vmatprep.subr.bf16.mxu0 0
        %1312 = vmatpush1.bf16.msra.mxu0 0
        %1313 = vmatprep.subr.bf16.mxu0 0
        %1314 = vmatpush1.bf16.msra.mxu0 0
        %1315 = vmatprep.subr.bf16.mxu0 0
        %1316 = vmatpush1.bf16.msra.mxu0 0
        %1317 = vmatprep.subr.bf16.mxu0 0
        %1318 = vmatpush1.bf16.msra.mxu0 0
        %1319 = vmatprep.subr.bf16.mxu0 0
        %1320 = vmatpush1.bf16.msra.mxu0 0
        %1321 = vmatprep.subr.bf16.mxu0 0
        %1322 = vmatpush1.bf16.msra.mxu0 0
        %1323 = vmatprep.subr.bf16.mxu0 0
        %1324 = vmatpush1.bf16.msra.mxu0 0
        %1325 = vmatprep.subr.bf16.mxu0 0
        %1326 = vmatpush1.bf16.msra.mxu0 0
        %1327 = vmatprep.subr.bf16.mxu0 0
        %1328 = vmatpush1.bf16.msra.mxu0 0
        %1329 = vmatprep.subr.bf16.mxu0 0
        %1330 = vmatpush1.bf16.msra.mxu0 0
        %1331 = vmatprep.subr.bf16.mxu0 0
        %1332 = vmatpush1.bf16.msra.mxu0 0
        %1333 = vmatprep.subr.bf16.mxu0 0
        %1334 = vmatpush1.bf16.msra.mxu0 0
        %1335 = vmatprep.mubr.bf16.mxu0 0
        %1336 = vmatmul.mubr.bf16.gmra.mrb[0].mxu0 %v842
        %v1337 = vpop.f32.mrb[0].mxu0
        %v1338 = vadd.f32 %v1277, %v1337
        %v1339 = vpop.f32.mrb[0].mxu0
        %v1340 = vpop.f32.mrb[0].mxu0
        %v1341 = vadd.f32 %v1277, %v1340
        %v1342 = vpop.f32.mrb[0].mxu0
        %1343 = vdwg.mxu0
        %v1344 = vmul.f32 %v1174, 0.25
        %v1345 = vmul.f32 %v1177, 0.25
        %v1346 = vpack.c.bf16 %v1345, %v1344
        %v1347 = vpack.c.bf16 %v1259, %v1256
        %v1349 = vsel %vm1049, %v1346, 0
        %v1352 = vsel %vm1049, %v1347, 0
        %1354 = vmatprep.subr.bf16.mxu0 0
        %1355 = vmatpush1.bf16.xpose.msra.mxu0 %v1352
        %1356 = vmatprep.subr.bf16.mxu0 0
        %1357 = vmatpush1.bf16.xpose.msra.mxu0 0
        %1358 = vmatprep.subr.bf16.mxu0 0
        %1359 = vmatpush1.bf16.xpose.msra.mxu0 0
        %1360 = vmatprep.subr.bf16.mxu0 0
        %1361 = vmatpush1.bf16.xpose.msra.mxu0 0
        %1362 = vmatprep.subr.bf16.mxu0 0
        %1363 = vmatpush1.bf16.xpose.msra.mxu0 0
        %1364 = vmatprep.subr.bf16.mxu0 0
        %1365 = vmatpush1.bf16.xpose.msra.mxu0 0
        %1366 = vmatprep.subr.bf16.mxu0 0
        %1367 = vmatpush1.bf16.xpose.msra.mxu0 0
        %1368 = vmatprep.subr.bf16.mxu0 0
        %1369 = vmatpush1.bf16.xpose.msra.mxu0 0
        %1370 = vmatprep.subr.bf16.mxu0 0
        %1371 = vmatpush1.bf16.xpose.msra.mxu0 0
        %1372 = vmatprep.subr.bf16.mxu0 0
        %1373 = vmatpush1.bf16.xpose.msra.mxu0 0
        %1374 = vmatprep.subr.bf16.mxu0 0
        %1375 = vmatpush1.bf16.xpose.msra.mxu0 0
        %1376 = vmatprep.subr.bf16.mxu0 0
        %1377 = vmatpush1.bf16.xpose.msra.mxu0 0
        %1378 = vmatprep.subr.bf16.mxu0 0
        %1379 = vmatpush1.bf16.xpose.msra.mxu0 0
        %1380 = vmatprep.subr.bf16.mxu0 0
        %1381 = vmatpush1.bf16.xpose.msra.mxu0 0
        %1382 = vmatprep.subr.bf16.mxu0 0
        %1383 = vmatpush1.bf16.xpose.msra.mxu0 0
        %1384 = vmatprep.subr.bf16.mxu0 0
        %1385 = vmatpush1.bf16.xpose.msra.mxu0 0
        %1386 = vmatprep.mubr.bf16.mxu0 0
        %1387 = vmatmul.mubr.bf16.gmra.mrb[0].mxu0 %v1349
        %v1388 = vpop.f32.mrb[0].mxu0
        %v1389 = vadd.f32 0.0, %v1388
        %v1390 = vpop.f32.mrb[0].mxu0
        %v1391 = vpop.f32.mrb[0].mxu0
        %v1392 = vadd.f32 0.0, %v1391
        %v1393 = vpop.f32.mrb[0].mxu0
        %1394 = vdwg.mxu0
        %v1395 = vpack.c.bf16 %v1341, %v1338
        %s1396 = scalar_lea.vmem %s4, 64
        %v1397 = vld [vmem:[%s1396] sm:$0xf]
        %v1398 = vld [vmem:[%s1396 + $0x4] sm:$0xf]
        %v1399 = vld [vmem:[%s1396 + $0x8] sm:$0xf]
        %v1400 = vld [vmem:[%s1396 + $0xc] sm:$0xf]
        %v1401 = vld [vmem:[%s1396 + $0x10] sm:$0xf]
        %v1402 = vld [vmem:[%s1396 + $0x14] sm:$0xf]
        %v1403 = vld [vmem:[%s1396 + $0x18] sm:$0xf]
        %v1404 = vld [vmem:[%s1396 + $0x1c] sm:$0xf]
        %s1405 = scalar_lea.vmem %s7, 2
        %v1406 = vld [vmem:[%s1405] sm:$0x1]
        %v1408 = vlaneseq
        %v1409 = vshrl.u32 %v1408, 7
        %v1410 = vsub.s32 0, %v1409
        %v1411 = vrot.slane %v1406, %v1410
        %v1421 = vunpack.c.l.b16 %v1397
        %v1422 = vunpack.c.l.b16 %v1398
        %v1423 = vunpack.c.l.b16 %v1399
        %v1424 = vunpack.c.l.b16 %v1400
        %v1425 = vunpack.c.l.b16 %v1401
        %v1426 = vunpack.c.l.b16 %v1402
        %v1427 = vunpack.c.l.b16 %v1403
        %v1428 = vunpack.c.l.b16 %v1404
        %v1429 = vpack.c.b16 %v1422, %v1421
        %v1430 = vpack.c.b16 %v1424, %v1423
        %v1431 = vpack.c.b16 %v1426, %v1425
        %v1432 = vpack.c.b16 %v1428, %v1427
        %1437 = vmatprep.subr.bf16.mxu0 0
        %1438 = vmatpush1.bf16.msra.mxu0 %v1429
        %1439 = vmatprep.subr.bf16.mxu0 0
        %1440 = vmatpush1.bf16.msra.mxu0 %v1430
        %1441 = vmatprep.subr.bf16.mxu0 0
        %1442 = vmatpush1.bf16.msra.mxu0 %v1431
        %1443 = vmatprep.subr.bf16.mxu0 0
        %1444 = vmatpush1.bf16.msra.mxu0 %v1432
        %1445 = vmatprep.subr.bf16.mxu0 0
        %1446 = vmatpush1.bf16.msra.mxu0 0
        %1447 = vmatprep.subr.bf16.mxu0 0
        %1448 = vmatpush1.bf16.msra.mxu0 0
        %1449 = vmatprep.subr.bf16.mxu0 0
        %1450 = vmatpush1.bf16.msra.mxu0 0
        %1451 = vmatprep.subr.bf16.mxu0 0
        %1452 = vmatpush1.bf16.msra.mxu0 0
        %1453 = vmatprep.subr.bf16.mxu0 0
        %1454 = vmatpush1.bf16.msra.mxu0 0
        %1455 = vmatprep.subr.bf16.mxu0 0
        %1456 = vmatpush1.bf16.msra.mxu0 0
        %1457 = vmatprep.subr.bf16.mxu0 0
        %1458 = vmatpush1.bf16.msra.mxu0 0
        %1459 = vmatprep.subr.bf16.mxu0 0
        %1460 = vmatpush1.bf16.msra.mxu0 0
        %1461 = vmatprep.subr.bf16.mxu0 0
        %1462 = vmatpush1.bf16.msra.mxu0 0
        %1463 = vmatprep.subr.bf16.mxu0 0
        %1464 = vmatpush1.bf16.msra.mxu0 0
        %1465 = vmatprep.subr.bf16.mxu0 0
        %1466 = vmatpush1.bf16.msra.mxu0 0
        %1467 = vmatprep.subr.bf16.mxu0 0
        %1468 = vmatpush1.bf16.msra.mxu0 0
        %1469 = vmatprep.mubr.bf16.mxu0 0
        %1470 = vmatmul.mubr.bf16.gmra.mrb[0].mxu0 %v842
        %v1471 = vpop.f32.mrb[0].mxu0
        %v1472 = vadd.f32 %v1411, %v1471
        %v1473 = vpop.f32.mrb[0].mxu0
        %v1474 = vpop.f32.mrb[0].mxu0
        %v1475 = vadd.f32 %v1411, %v1474
        %v1476 = vpop.f32.mrb[0].mxu0
        %1477 = vdwg.mxu0
        %s1478 = scalar_lea.vmem %s5, 64
        %v1479 = vld [vmem:[%s1478] sm:$0xf]
        %v1480 = vld [vmem:[%s1478 + $0x4] sm:$0xf]
        %v1481 = vld [vmem:[%s1478 + $0x8] sm:$0xf]
        %v1482 = vld [vmem:[%s1478 + $0xc] sm:$0xf]
        %v1483 = vld [vmem:[%s1478 + $0x10] sm:$0xf]
        %v1484 = vld [vmem:[%s1478 + $0x14] sm:$0xf]
        %v1485 = vld [vmem:[%s1478 + $0x18] sm:$0xf]
        %v1486 = vld [vmem:[%s1478 + $0x1c] sm:$0xf]
        %s1487 = scalar_lea.vmem %s8, 2
        %v1488 = vld [vmem:[%s1487] sm:$0x1]
        %v1490 = vlaneseq
        %v1491 = vshrl.u32 %v1490, 7
        %v1492 = vsub.s32 0, %v1491
        %v1493 = vrot.slane %v1488, %v1492
        %v1503 = vunpack.c.l.b16 %v1479
        %v1504 = vunpack.c.l.b16 %v1480
        %v1505 = vunpack.c.l.b16 %v1481
        %v1506 = vunpack.c.l.b16 %v1482
        %v1507 = vunpack.c.l.b16 %v1483
        %v1508 = vunpack.c.l.b16 %v1484
        %v1509 = vunpack.c.l.b16 %v1485
        %v1510 = vunpack.c.l.b16 %v1486
        %v1511 = vpack.c.b16 %v1504, %v1503
        %v1512 = vpack.c.b16 %v1506, %v1505
        %v1513 = vpack.c.b16 %v1508, %v1507
        %v1514 = vpack.c.b16 %v1510, %v1509
        %1519 = vmatprep.subr.bf16.mxu0 0
        %1520 = vmatpush1.bf16.msra.mxu0 %v1511
        %1521 = vmatprep.subr.bf16.mxu0 0
        %1522 = vmatpush1.bf16.msra.mxu0 %v1512
        %1523 = vmatprep.subr.bf16.mxu0 0
        %1524 = vmatpush1.bf16.msra.mxu0 %v1513
        %1525 = vmatprep.subr.bf16.mxu0 0
        %1526 = vmatpush1.bf16.msra.mxu0 %v1514
        %1527 = vmatprep.subr.bf16.mxu0 0
        %1528 = vmatpush1.bf16.msra.mxu0 0
        %1529 = vmatprep.subr.bf16.mxu0 0
        %1530 = vmatpush1.bf16.msra.mxu0 0
        %1531 = vmatprep.subr.bf16.mxu0 0
        %1532 = vmatpush1.bf16.msra.mxu0 0
        %1533 = vmatprep.subr.bf16.mxu0 0
        %1534 = vmatpush1.bf16.msra.mxu0 0
        %1535 = vmatprep.subr.bf16.mxu0 0
        %1536 = vmatpush1.bf16.msra.mxu0 0
        %1537 = vmatprep.subr.bf16.mxu0 0
        %1538 = vmatpush1.bf16.msra.mxu0 0
        %1539 = vmatprep.subr.bf16.mxu0 0
        %1540 = vmatpush1.bf16.msra.mxu0 0
        %1541 = vmatprep.subr.bf16.mxu0 0
        %1542 = vmatpush1.bf16.msra.mxu0 0
        %1543 = vmatprep.subr.bf16.mxu0 0
        %1544 = vmatpush1.bf16.msra.mxu0 0
        %1545 = vmatprep.subr.bf16.mxu0 0
        %1546 = vmatpush1.bf16.msra.mxu0 0
        %1547 = vmatprep.subr.bf16.mxu0 0
        %1548 = vmatpush1.bf16.msra.mxu0 0
        %1549 = vmatprep.subr.bf16.mxu0 0
        %1550 = vmatpush1.bf16.msra.mxu0 0
        %1551 = vmatprep.mubr.bf16.mxu0 0
        %1552 = vmatmul.mubr.bf16.gmra.mrb[0].mxu0 %v842
        %v1553 = vpop.f32.mrb[0].mxu0
        %v1554 = vadd.f32 %v1493, %v1553
        %v1555 = vpop.f32.mrb[0].mxu0
        %v1556 = vpop.f32.mrb[0].mxu0
        %v1557 = vadd.f32 %v1493, %v1556
        %v1558 = vpop.f32.mrb[0].mxu0
        %1559 = vdwg.mxu0
        %s1560 = scalar_lea.vmem %s6, 64
        %v1561 = vld [vmem:[%s1560] sm:$0xf]
        %v1562 = vld [vmem:[%s1560 + $0x4] sm:$0xf]
        %v1563 = vld [vmem:[%s1560 + $0x8] sm:$0xf]
        %v1564 = vld [vmem:[%s1560 + $0xc] sm:$0xf]
        %v1565 = vld [vmem:[%s1560 + $0x10] sm:$0xf]
        %v1566 = vld [vmem:[%s1560 + $0x14] sm:$0xf]
        %v1567 = vld [vmem:[%s1560 + $0x18] sm:$0xf]
        %v1568 = vld [vmem:[%s1560 + $0x1c] sm:$0xf]
        %s1569 = scalar_lea.vmem %s9, 2
        %v1570 = vld [vmem:[%s1569] sm:$0x1]
        %v1572 = vlaneseq
        %v1573 = vshrl.u32 %v1572, 7
        %v1574 = vsub.s32 0, %v1573
        %v1575 = vrot.slane %v1570, %v1574
        %v1585 = vunpack.c.l.b16 %v1561
        %v1586 = vunpack.c.l.b16 %v1562
        %v1587 = vunpack.c.l.b16 %v1563
        %v1588 = vunpack.c.l.b16 %v1564
        %v1589 = vunpack.c.l.b16 %v1565
        %v1590 = vunpack.c.l.b16 %v1566
        %v1591 = vunpack.c.l.b16 %v1567
        %v1592 = vunpack.c.l.b16 %v1568
        %v1593 = vpack.c.b16 %v1586, %v1585
        %v1594 = vpack.c.b16 %v1588, %v1587
        %v1595 = vpack.c.b16 %v1590, %v1589
        %v1596 = vpack.c.b16 %v1592, %v1591
        %1601 = vmatprep.subr.bf16.mxu0 0
        %1602 = vmatpush1.bf16.msra.mxu0 %v1593
        %1603 = vmatprep.subr.bf16.mxu0 0
        %1604 = vmatpush1.bf16.msra.mxu0 %v1594
        %1605 = vmatprep.subr.bf16.mxu0 0
        %1606 = vmatpush1.bf16.msra.mxu0 %v1595
        %1607 = vmatprep.subr.bf16.mxu0 0
        %1608 = vmatpush1.bf16.msra.mxu0 %v1596
        %1609 = vmatprep.subr.bf16.mxu0 0
        %1610 = vmatpush1.bf16.msra.mxu0 0
        %1611 = vmatprep.subr.bf16.mxu0 0
        %1612 = vmatpush1.bf16.msra.mxu0 0
        %1613 = vmatprep.subr.bf16.mxu0 0
        %1614 = vmatpush1.bf16.msra.mxu0 0
        %1615 = vmatprep.subr.bf16.mxu0 0
        %1616 = vmatpush1.bf16.msra.mxu0 0
        %1617 = vmatprep.subr.bf16.mxu0 0
        %1618 = vmatpush1.bf16.msra.mxu0 0
        %1619 = vmatprep.subr.bf16.mxu0 0
        %1620 = vmatpush1.bf16.msra.mxu0 0
        %1621 = vmatprep.subr.bf16.mxu0 0
        %1622 = vmatpush1.bf16.msra.mxu0 0
        %1623 = vmatprep.subr.bf16.mxu0 0
        %1624 = vmatpush1.bf16.msra.mxu0 0
        %1625 = vmatprep.subr.bf16.mxu0 0
        %1626 = vmatpush1.bf16.msra.mxu0 0
        %1627 = vmatprep.subr.bf16.mxu0 0
        %1628 = vmatpush1.bf16.msra.mxu0 0
        %1629 = vmatprep.subr.bf16.mxu0 0
        %1630 = vmatpush1.bf16.msra.mxu0 0
        %1631 = vmatprep.subr.bf16.mxu0 0
        %1632 = vmatpush1.bf16.msra.mxu0 0
        %1633 = vmatprep.mubr.bf16.mxu0 0
        %1634 = vmatmul.mubr.bf16.gmra.mrb[0].mxu0 %v842
        %v1635 = vpop.f32.mrb[0].mxu0
        %v1636 = vadd.f32 %v1575, %v1635
        %v1637 = vpop.f32.mrb[0].mxu0
        %v1638 = vpop.f32.mrb[0].mxu0
        %v1639 = vadd.f32 %v1575, %v1638
        %v1640 = vpop.f32.mrb[0].mxu0
        %1641 = vdwg.mxu0
        %v1642 = vmul.f32 %v1472, 0.25
        %v1643 = vmul.f32 %v1475, 0.25
        %v1644 = vpack.c.bf16 %v1643, %v1642
        %v1645 = vpack.c.bf16 %v1557, %v1554
        %v1647 = vsel %vm1049, %v1644, 0
        %v1650 = vsel %vm1049, %v1645, 0
        %1652 = vmatprep.subr.bf16.mxu0 0
        %1653 = vmatpush1.bf16.xpose.msra.mxu0 %v1650
        %1654 = vmatprep.subr.bf16.mxu0 0
        %1655 = vmatpush1.bf16.xpose.msra.mxu0 0
        %1656 = vmatprep.subr.bf16.mxu0 0
        %1657 = vmatpush1.bf16.xpose.msra.mxu0 0
        %1658 = vmatprep.subr.bf16.mxu0 0
        %1659 = vmatpush1.bf16.xpose.msra.mxu0 0
        %1660 = vmatprep.subr.bf16.mxu0 0
        %1661 = vmatpush1.bf16.xpose.msra.mxu0 0
        %1662 = vmatprep.subr.bf16.mxu0 0
        %1663 = vmatpush1.bf16.xpose.msra.mxu0 0
        %1664 = vmatprep.subr.bf16.mxu0 0
        %1665 = vmatpush1.bf16.xpose.msra.mxu0 0
        %1666 = vmatprep.subr.bf16.mxu0 0
        %1667 = vmatpush1.bf16.xpose.msra.mxu0 0
        %1668 = vmatprep.subr.bf16.mxu0 0
        %1669 = vmatpush1.bf16.xpose.msra.mxu0 0
        %1670 = vmatprep.subr.bf16.mxu0 0
        %1671 = vmatpush1.bf16.xpose.msra.mxu0 0
        %1672 = vmatprep.subr.bf16.mxu0 0
        %1673 = vmatpush1.bf16.xpose.msra.mxu0 0
        %1674 = vmatprep.subr.bf16.mxu0 0
        %1675 = vmatpush1.bf16.xpose.msra.mxu0 0
        %1676 = vmatprep.subr.bf16.mxu0 0
        %1677 = vmatpush1.bf16.xpose.msra.mxu0 0
        %1678 = vmatprep.subr.bf16.mxu0 0
        %1679 = vmatpush1.bf16.xpose.msra.mxu0 0
        %1680 = vmatprep.subr.bf16.mxu0 0
        %1681 = vmatpush1.bf16.xpose.msra.mxu0 0
        %1682 = vmatprep.subr.bf16.mxu0 0
        %1683 = vmatpush1.bf16.xpose.msra.mxu0 0
        %1684 = vmatprep.mubr.bf16.mxu0 0
        %1685 = vmatmul.mubr.bf16.gmra.mrb[0].mxu0 %v1647
        %v1686 = vpop.f32.mrb[0].mxu0
        %v1687 = vadd.f32 0.0, %v1686
        %v1688 = vpop.f32.mrb[0].mxu0
        %v1689 = vpop.f32.mrb[0].mxu0
        %v1690 = vadd.f32 0.0, %v1689
        %v1691 = vpop.f32.mrb[0].mxu0
        %1692 = vdwg.mxu0
        %v1693 = vpack.c.bf16 %v1639, %v1636
        %s1694 = scalar_lea.vmem %s4, 96
        %v1695 = vld [vmem:[%s1694] sm:$0xf]
        %v1696 = vld [vmem:[%s1694 + $0x4] sm:$0xf]
        %v1697 = vld [vmem:[%s1694 + $0x8] sm:$0xf]
        %v1698 = vld [vmem:[%s1694 + $0xc] sm:$0xf]
        %v1699 = vld [vmem:[%s1694 + $0x10] sm:$0xf]
        %v1700 = vld [vmem:[%s1694 + $0x14] sm:$0xf]
        %v1701 = vld [vmem:[%s1694 + $0x18] sm:$0xf]
        %v1702 = vld [vmem:[%s1694 + $0x1c] sm:$0xf]
        %s1703 = scalar_lea.vmem %s7, 3
        %v1704 = vld [vmem:[%s1703] sm:$0x1]
        %v1706 = vlaneseq
        %v1707 = vshrl.u32 %v1706, 7
        %v1708 = vsub.s32 0, %v1707
        %v1709 = vrot.slane %v1704, %v1708
        %v1719 = vunpack.c.l.b16 %v1695
        %v1720 = vunpack.c.l.b16 %v1696
        %v1721 = vunpack.c.l.b16 %v1697
        %v1722 = vunpack.c.l.b16 %v1698
        %v1723 = vunpack.c.l.b16 %v1699
        %v1724 = vunpack.c.l.b16 %v1700
        %v1725 = vunpack.c.l.b16 %v1701
        %v1726 = vunpack.c.l.b16 %v1702
        %v1727 = vpack.c.b16 %v1720, %v1719
        %v1728 = vpack.c.b16 %v1722, %v1721
        %v1729 = vpack.c.b16 %v1724, %v1723
        %v1730 = vpack.c.b16 %v1726, %v1725
        %1735 = vmatprep.subr.bf16.mxu0 0
        %1736 = vmatpush1.bf16.msra.mxu0 %v1727
        %1737 = vmatprep.subr.bf16.mxu0 0
        %1738 = vmatpush1.bf16.msra.mxu0 %v1728
        %1739 = vmatprep.subr.bf16.mxu0 0
        %1740 = vmatpush1.bf16.msra.mxu0 %v1729
        %1741 = vmatprep.subr.bf16.mxu0 0
        %1742 = vmatpush1.bf16.msra.mxu0 %v1730
        %1743 = vmatprep.subr.bf16.mxu0 0
        %1744 = vmatpush1.bf16.msra.mxu0 0
        %1745 = vmatprep.subr.bf16.mxu0 0
        %1746 = vmatpush1.bf16.msra.mxu0 0
        %1747 = vmatprep.subr.bf16.mxu0 0
        %1748 = vmatpush1.bf16.msra.mxu0 0
        %1749 = vmatprep.subr.bf16.mxu0 0
        %1750 = vmatpush1.bf16.msra.mxu0 0
        %1751 = vmatprep.subr.bf16.mxu0 0
        %1752 = vmatpush1.bf16.msra.mxu0 0
        %1753 = vmatprep.subr.bf16.mxu0 0
        %1754 = vmatpush1.bf16.msra.mxu0 0
        %1755 = vmatprep.subr.bf16.mxu0 0
        %1756 = vmatpush1.bf16.msra.mxu0 0
        %1757 = vmatprep.subr.bf16.mxu0 0
        %1758 = vmatpush1.bf16.msra.mxu0 0
        %1759 = vmatprep.subr.bf16.mxu0 0
        %1760 = vmatpush1.bf16.msra.mxu0 0
        %1761 = vmatprep.subr.bf16.mxu0 0
        %1762 = vmatpush1.bf16.msra.mxu0 0
        %1763 = vmatprep.subr.bf16.mxu0 0
        %1764 = vmatpush1.bf16.msra.mxu0 0
        %1765 = vmatprep.subr.bf16.mxu0 0
        %1766 = vmatpush1.bf16.msra.mxu0 0
        %1767 = vmatprep.mubr.bf16.mxu0 0
        %1768 = vmatmul.mubr.bf16.gmra.mrb[0].mxu0 %v842
        %v1769 = vpop.f32.mrb[0].mxu0
        %v1770 = vadd.f32 %v1709, %v1769
        %v1771 = vpop.f32.mrb[0].mxu0
        %v1772 = vpop.f32.mrb[0].mxu0
        %v1773 = vadd.f32 %v1709, %v1772
        %v1774 = vpop.f32.mrb[0].mxu0
        %1775 = vdwg.mxu0
        %s1776 = scalar_lea.vmem %s5, 96
        %v1777 = vld [vmem:[%s1776] sm:$0xf]
        %v1778 = vld [vmem:[%s1776 + $0x4] sm:$0xf]
        %v1779 = vld [vmem:[%s1776 + $0x8] sm:$0xf]
        %v1780 = vld [vmem:[%s1776 + $0xc] sm:$0xf]
        %v1781 = vld [vmem:[%s1776 + $0x10] sm:$0xf]
        %v1782 = vld [vmem:[%s1776 + $0x14] sm:$0xf]
        %v1783 = vld [vmem:[%s1776 + $0x18] sm:$0xf]
        %v1784 = vld [vmem:[%s1776 + $0x1c] sm:$0xf]
        %s1785 = scalar_lea.vmem %s8, 3
        %v1786 = vld [vmem:[%s1785] sm:$0x1]
        %v1788 = vlaneseq
        %v1789 = vshrl.u32 %v1788, 7
        %v1790 = vsub.s32 0, %v1789
        %v1791 = vrot.slane %v1786, %v1790
        %v1801 = vunpack.c.l.b16 %v1777
        %v1802 = vunpack.c.l.b16 %v1778
        %v1803 = vunpack.c.l.b16 %v1779
        %v1804 = vunpack.c.l.b16 %v1780
        %v1805 = vunpack.c.l.b16 %v1781
        %v1806 = vunpack.c.l.b16 %v1782
        %v1807 = vunpack.c.l.b16 %v1783
        %v1808 = vunpack.c.l.b16 %v1784
        %v1809 = vpack.c.b16 %v1802, %v1801
        %v1810 = vpack.c.b16 %v1804, %v1803
        %v1811 = vpack.c.b16 %v1806, %v1805
        %v1812 = vpack.c.b16 %v1808, %v1807
        %1817 = vmatprep.subr.bf16.mxu0 0
        %1818 = vmatpush1.bf16.msra.mxu0 %v1809
        %1819 = vmatprep.subr.bf16.mxu0 0
        %1820 = vmatpush1.bf16.msra.mxu0 %v1810
        %1821 = vmatprep.subr.bf16.mxu0 0
        %1822 = vmatpush1.bf16.msra.mxu0 %v1811
        %1823 = vmatprep.subr.bf16.mxu0 0
        %1824 = vmatpush1.bf16.msra.mxu0 %v1812
        %1825 = vmatprep.subr.bf16.mxu0 0
        %1826 = vmatpush1.bf16.msra.mxu0 0
        %1827 = vmatprep.subr.bf16.mxu0 0
        %1828 = vmatpush1.bf16.msra.mxu0 0
        %1829 = vmatprep.subr.bf16.mxu0 0
        %1830 = vmatpush1.bf16.msra.mxu0 0
        %1831 = vmatprep.subr.bf16.mxu0 0
        %1832 = vmatpush1.bf16.msra.mxu0 0
        %1833 = vmatprep.subr.bf16.mxu0 0
        %1834 = vmatpush1.bf16.msra.mxu0 0
        %1835 = vmatprep.subr.bf16.mxu0 0
        %1836 = vmatpush1.bf16.msra.mxu0 0
        %1837 = vmatprep.subr.bf16.mxu0 0
        %1838 = vmatpush1.bf16.msra.mxu0 0
        %1839 = vmatprep.subr.bf16.mxu0 0
        %1840 = vmatpush1.bf16.msra.mxu0 0
        %1841 = vmatprep.subr.bf16.mxu0 0
        %1842 = vmatpush1.bf16.msra.mxu0 0
        %1843 = vmatprep.subr.bf16.mxu0 0
        %1844 = vmatpush1.bf16.msra.mxu0 0
        %1845 = vmatprep.subr.bf16.mxu0 0
        %1846 = vmatpush1.bf16.msra.mxu0 0
        %1847 = vmatprep.subr.bf16.mxu0 0
        %1848 = vmatpush1.bf16.msra.mxu0 0
        %1849 = vmatprep.mubr.bf16.mxu0 0
        %1850 = vmatmul.mubr.bf16.gmra.mrb[0].mxu0 %v842
        %v1851 = vpop.f32.mrb[0].mxu0
        %v1852 = vadd.f32 %v1791, %v1851
        %v1853 = vpop.f32.mrb[0].mxu0
        %v1854 = vpop.f32.mrb[0].mxu0
        %v1855 = vadd.f32 %v1791, %v1854
        %v1856 = vpop.f32.mrb[0].mxu0
        %1857 = vdwg.mxu0
        %s1858 = scalar_lea.vmem %s6, 96
        %v1859 = vld [vmem:[%s1858] sm:$0xf]
        %v1860 = vld [vmem:[%s1858 + $0x4] sm:$0xf]
        %v1861 = vld [vmem:[%s1858 + $0x8] sm:$0xf]
        %v1862 = vld [vmem:[%s1858 + $0xc] sm:$0xf]
        %v1863 = vld [vmem:[%s1858 + $0x10] sm:$0xf]
        %v1864 = vld [vmem:[%s1858 + $0x14] sm:$0xf]
        %v1865 = vld [vmem:[%s1858 + $0x18] sm:$0xf]
        %v1866 = vld [vmem:[%s1858 + $0x1c] sm:$0xf]
        %s1867 = scalar_lea.vmem %s9, 3
        %v1868 = vld [vmem:[%s1867] sm:$0x1]
        %v1870 = vlaneseq
        %v1871 = vshrl.u32 %v1870, 7
        %v1872 = vsub.s32 0, %v1871
        %v1873 = vrot.slane %v1868, %v1872
        %v1883 = vunpack.c.l.b16 %v1859
        %v1884 = vunpack.c.l.b16 %v1860
        %v1885 = vunpack.c.l.b16 %v1861
        %v1886 = vunpack.c.l.b16 %v1862
        %v1887 = vunpack.c.l.b16 %v1863
        %v1888 = vunpack.c.l.b16 %v1864
        %v1889 = vunpack.c.l.b16 %v1865
        %v1890 = vunpack.c.l.b16 %v1866
        %v1891 = vpack.c.b16 %v1884, %v1883
        %v1892 = vpack.c.b16 %v1886, %v1885
        %v1893 = vpack.c.b16 %v1888, %v1887
        %v1894 = vpack.c.b16 %v1890, %v1889
        %1899 = vmatprep.subr.bf16.mxu0 0
        %1900 = vmatpush1.bf16.msra.mxu0 %v1891
        %1901 = vmatprep.subr.bf16.mxu0 0
        %1902 = vmatpush1.bf16.msra.mxu0 %v1892
        %1903 = vmatprep.subr.bf16.mxu0 0
        %1904 = vmatpush1.bf16.msra.mxu0 %v1893
        %1905 = vmatprep.subr.bf16.mxu0 0
        %1906 = vmatpush1.bf16.msra.mxu0 %v1894
        %1907 = vmatprep.subr.bf16.mxu0 0
        %1908 = vmatpush1.bf16.msra.mxu0 0
        %1909 = vmatprep.subr.bf16.mxu0 0
        %1910 = vmatpush1.bf16.msra.mxu0 0
        %1911 = vmatprep.subr.bf16.mxu0 0
        %1912 = vmatpush1.bf16.msra.mxu0 0
        %1913 = vmatprep.subr.bf16.mxu0 0
        %1914 = vmatpush1.bf16.msra.mxu0 0
        %1915 = vmatprep.subr.bf16.mxu0 0
        %1916 = vmatpush1.bf16.msra.mxu0 0
        %1917 = vmatprep.subr.bf16.mxu0 0
        %1918 = vmatpush1.bf16.msra.mxu0 0
        %1919 = vmatprep.subr.bf16.mxu0 0
        %1920 = vmatpush1.bf16.msra.mxu0 0
        %1921 = vmatprep.subr.bf16.mxu0 0
        %1922 = vmatpush1.bf16.msra.mxu0 0
        %1923 = vmatprep.subr.bf16.mxu0 0
        %1924 = vmatpush1.bf16.msra.mxu0 0
        %1925 = vmatprep.subr.bf16.mxu0 0
        %1926 = vmatpush1.bf16.msra.mxu0 0
        %1927 = vmatprep.subr.bf16.mxu0 0
        %1928 = vmatpush1.bf16.msra.mxu0 0
        %1929 = vmatprep.subr.bf16.mxu0 0
        %1930 = vmatpush1.bf16.msra.mxu0 0
        %1931 = vmatprep.mubr.bf16.mxu0 0
        %1932 = vmatmul.mubr.bf16.gmra.mrb[0].mxu0 %v842
        %v1933 = vpop.f32.mrb[0].mxu0
        %v1934 = vadd.f32 %v1873, %v1933
        %v1935 = vpop.f32.mrb[0].mxu0
        %v1936 = vpop.f32.mrb[0].mxu0
        %v1937 = vadd.f32 %v1873, %v1936
        %v1938 = vpop.f32.mrb[0].mxu0
        %1939 = vdwg.mxu0
        %v1940 = vmul.f32 %v1770, 0.25
        %v1941 = vmul.f32 %v1773, 0.25
        %v1942 = vpack.c.bf16 %v1941, %v1940
        %v1943 = vpack.c.bf16 %v1855, %v1852
        %v1945 = vsel %vm1049, %v1942, 0
        %v1948 = vsel %vm1049, %v1943, 0
        %1950 = vmatprep.subr.bf16.mxu0 0
        %1951 = vmatpush1.bf16.xpose.msra.mxu0 %v1948
        %1952 = vmatprep.subr.bf16.mxu0 0
        %1953 = vmatpush1.bf16.xpose.msra.mxu0 0
        %1954 = vmatprep.subr.bf16.mxu0 0
        %1955 = vmatpush1.bf16.xpose.msra.mxu0 0
        %1956 = vmatprep.subr.bf16.mxu0 0
        %1957 = vmatpush1.bf16.xpose.msra.mxu0 0
        %1958 = vmatprep.subr.bf16.mxu0 0
        %1959 = vmatpush1.bf16.xpose.msra.mxu0 0
        %1960 = vmatprep.subr.bf16.mxu0 0
        %1961 = vmatpush1.bf16.xpose.msra.mxu0 0
        %1962 = vmatprep.subr.bf16.mxu0 0
        %1963 = vmatpush1.bf16.xpose.msra.mxu0 0
        %1964 = vmatprep.subr.bf16.mxu0 0
        %1965 = vmatpush1.bf16.xpose.msra.mxu0 0
        %1966 = vmatprep.subr.bf16.mxu0 0
        %1967 = vmatpush1.bf16.xpose.msra.mxu0 0
        %1968 = vmatprep.subr.bf16.mxu0 0
        %1969 = vmatpush1.bf16.xpose.msra.mxu0 0
        %1970 = vmatprep.subr.bf16.mxu0 0
        %1971 = vmatpush1.bf16.xpose.msra.mxu0 0
        %1972 = vmatprep.subr.bf16.mxu0 0
        %1973 = vmatpush1.bf16.xpose.msra.mxu0 0
        %1974 = vmatprep.subr.bf16.mxu0 0
        %1975 = vmatpush1.bf16.xpose.msra.mxu0 0
        %1976 = vmatprep.subr.bf16.mxu0 0
        %1977 = vmatpush1.bf16.xpose.msra.mxu0 0
        %1978 = vmatprep.subr.bf16.mxu0 0
        %1979 = vmatpush1.bf16.xpose.msra.mxu0 0
        %1980 = vmatprep.subr.bf16.mxu0 0
        %1981 = vmatpush1.bf16.xpose.msra.mxu0 0
        %1982 = vmatprep.mubr.bf16.mxu0 0
        %1983 = vmatmul.mubr.bf16.gmra.mrb[0].mxu0 %v1945
        %v1984 = vpop.f32.mrb[0].mxu0
        %v1985 = vadd.f32 0.0, %v1984
        %v1986 = vpop.f32.mrb[0].mxu0
        %v1987 = vpop.f32.mrb[0].mxu0
        %v1988 = vadd.f32 0.0, %v1987
        %v1989 = vpop.f32.mrb[0].mxu0
        %1990 = vdwg.mxu0
        %v1991 = vpack.c.bf16 %v1937, %v1934
        %v1993 = vlaneseq
        %v1994 = vshrl.u32 %v1993, 7
        %v1995 = vsub.s32 0, %v1994
        %v1996 = vrot.slane %v752, %v1995
        %v1998 = vadd.f32 %v1091, %v1996
        %v1999 = vadd.f32 %v1094, %v1996
        %v2000 = vadd.f32 %v1389, %v1996
        %v2001 = vadd.f32 %v1392, %v1996
        %v2002 = vadd.f32 %v1687, %v1996
        %v2003 = vadd.f32 %v1690, %v1996
        %v2004 = vadd.f32 %v1985, %v1996
        %v2005 = vadd.f32 %v1988, %v1996
        %v2006 = vsel %vm1049, %v1998, -inf
        %2007 = vmax.xlane.f32.xlu0 %v2006
        %v2008 = vpop.xlane.xlu0 %2007
        %v2009 = vsel %vm1049, %v1999, -inf
        %2010 = vmax.xlane.f32.xlu0 %v2009
        %v2011 = vpop.xlane.xlu0 %2010
        %v2012 = vsel %vm1049, %v2000, -inf
        %2013 = vmax.xlane.f32.xlu0 %v2012
        %v2014 = vpop.xlane.xlu0 %2013
        %v2015 = vsel %vm1049, %v2001, -inf
        %2016 = vmax.xlane.f32.xlu0 %v2015
        %v2017 = vpop.xlane.xlu0 %2016
        %v2018 = vsel %vm1049, %v2002, -inf
        %2019 = vmax.xlane.f32.xlu0 %v2018
        %v2020 = vpop.xlane.xlu0 %2019
        %v2021 = vsel %vm1049, %v2003, -inf
        %2022 = vmax.xlane.f32.xlu0 %v2021
        %v2023 = vpop.xlane.xlu0 %2022
        %v2024 = vsel %vm1049, %v2004, -inf
        %2025 = vmax.xlane.f32.xlu0 %v2024
        %v2026 = vpop.xlane.xlu0 %2025
        %v2027 = vsel %vm1049, %v2005, -inf
        %2028 = vmax.xlane.f32.xlu0 %v2027
        %v2029 = vpop.xlane.xlu0 %2028
        %v2030 = vsub.f32 %v1998, %v2008
        %v2031 = vsub.f32 %v1999, %v2011
        %v2032 = vsub.f32 %v2000, %v2014
        %v2033 = vsub.f32 %v2001, %v2017
        %v2034 = vsub.f32 %v2002, %v2020
        %v2035 = vsub.f32 %v2003, %v2023
        %v2036 = vsub.f32 %v2004, %v2026
        %v2037 = vsub.f32 %v2005, %v2029
        %v2038 = vmul.f32 %v2030, 1.442695
        %v2039 = vpow.pop %v2038
        %v2040 = vmul.f32 %v2031, 1.442695
        %v2041 = vpow.pop %v2040
        %v2042 = vmul.f32 %v2032, 1.442695
        %v2043 = vpow.pop %v2042
        %v2044 = vmul.f32 %v2033, 1.442695
        %v2045 = vpow.pop %v2044
        %v2046 = vmul.f32 %v2034, 1.442695
        %v2047 = vpow.pop %v2046
        %v2048 = vmul.f32 %v2035, 1.442695
        %v2049 = vpow.pop %v2048
        %v2050 = vmul.f32 %v2036, 1.442695
        %v2051 = vpow.pop %v2050
        %v2052 = vmul.f32 %v2037, 1.442695
        %v2053 = vpow.pop %v2052
        %v2054 = vsel %vm1049, %v2039, 0.0
        %2055 = vadd.xlane.f32.xlu0 %v2054
        %v2056 = vpop.xlane.xlu0 %2055
        %v2057 = vsel %vm1049, %v2041, 0.0
        %2058 = vadd.xlane.f32.xlu0 %v2057
        %v2059 = vpop.xlane.xlu0 %2058
        %v2060 = vsel %vm1049, %v2043, 0.0
        %2061 = vadd.xlane.f32.xlu0 %v2060
        %v2062 = vpop.xlane.xlu0 %2061
        %v2063 = vsel %vm1049, %v2045, 0.0
        %2064 = vadd.xlane.f32.xlu0 %v2063
        %v2065 = vpop.xlane.xlu0 %2064
        %v2066 = vsel %vm1049, %v2047, 0.0
        %2067 = vadd.xlane.f32.xlu0 %v2066
        %v2068 = vpop.xlane.xlu0 %2067
        %v2069 = vsel %vm1049, %v2049, 0.0
        %2070 = vadd.xlane.f32.xlu0 %v2069
        %v2071 = vpop.xlane.xlu0 %2070
        %v2072 = vsel %vm1049, %v2051, 0.0
        %2073 = vadd.xlane.f32.xlu0 %v2072
        %v2074 = vpop.xlane.xlu0 %2073
        %v2075 = vsel %vm1049, %v2053, 0.0
        %2076 = vadd.xlane.f32.xlu0 %v2075
        %v2077 = vpop.xlane.xlu0 %2076
        %v2078 = vrcp.pop %v2056
        %v2079 = vmul.f32 %v2039, %v2078
        %v2080 = vrcp.pop %v2059
        %v2081 = vmul.f32 %v2041, %v2080
        %v2082 = vrcp.pop %v2062
        %v2083 = vmul.f32 %v2043, %v2082
        %v2084 = vrcp.pop %v2065
        %v2085 = vmul.f32 %v2045, %v2084
        %v2086 = vrcp.pop %v2068
        %v2087 = vmul.f32 %v2047, %v2086
        %v2088 = vrcp.pop %v2071
        %v2089 = vmul.f32 %v2049, %v2088
        %v2090 = vrcp.pop %v2074
        %v2091 = vmul.f32 %v2051, %v2090
        %v2092 = vrcp.pop %v2077
        %v2093 = vmul.f32 %v2053, %v2092
        %v2094 = vpack.c.bf16 %v2081, %v2079
        %v2096 = vsel %vm1049, %v2094, 0
        %2098 = vmatprep.subr.bf16.mxu0 0
        %2099 = vmatpush1.bf16.msra.mxu0 %v1097
        %2100 = vmatprep.subr.bf16.mxu0 0
        %2101 = vmatpush1.bf16.msra.mxu0 0
        %2102 = vmatprep.subr.bf16.mxu0 0
        %2103 = vmatpush1.bf16.msra.mxu0 0
        %2104 = vmatprep.subr.bf16.mxu0 0
        %2105 = vmatpush1.bf16.msra.mxu0 0
        %2106 = vmatprep.subr.bf16.mxu0 0
        %2107 = vmatpush1.bf16.msra.mxu0 0
        %2108 = vmatprep.subr.bf16.mxu0 0
        %2109 = vmatpush1.bf16.msra.mxu0 0
        %2110 = vmatprep.subr.bf16.mxu0 0
        %2111 = vmatpush1.bf16.msra.mxu0 0
        %2112 = vmatprep.subr.bf16.mxu0 0
        %2113 = vmatpush1.bf16.msra.mxu0 0
        %2114 = vmatprep.subr.bf16.mxu0 0
        %2115 = vmatpush1.bf16.msra.mxu0 0
        %2116 = vmatprep.subr.bf16.mxu0 0
        %2117 = vmatpush1.bf16.msra.mxu0 0
        %2118 = vmatprep.subr.bf16.mxu0 0
        %2119 = vmatpush1.bf16.msra.mxu0 0
        %2120 = vmatprep.subr.bf16.mxu0 0
        %2121 = vmatpush1.bf16.msra.mxu0 0
        %2122 = vmatprep.subr.bf16.mxu0 0
        %2123 = vmatpush1.bf16.msra.mxu0 0
        %2124 = vmatprep.subr.bf16.mxu0 0
        %2125 = vmatpush1.bf16.msra.mxu0 0
        %2126 = vmatprep.subr.bf16.mxu0 0
        %2127 = vmatpush1.bf16.msra.mxu0 0
        %2128 = vmatprep.subr.bf16.mxu0 0
        %2129 = vmatpush1.bf16.msra.mxu0 0
        %2130 = vmatprep.mubr.bf16.mxu0 0
        %2131 = vmatmul.mubr.bf16.gmra.mrb[0].mxu0 %v2096
        %v2132 = vpop.f32.mrb[0].mxu0
        %v2133 = vadd.f32 0.0, %v2132
        %v2134 = vpop.f32.mrb[0].mxu0
        %v2135 = vpop.f32.mrb[0].mxu0
        %v2136 = vadd.f32 0.0, %v2135
        %v2137 = vpop.f32.mrb[0].mxu0
        %2138 = vdwg.mxu0
        %v2139 = vpack.c.bf16 %v2085, %v2083
        %v2141 = vsel %vm1049, %v2139, 0
        %2143 = vmatprep.subr.bf16.mxu0 0
        %2144 = vmatpush1.bf16.msra.mxu0 %v1395
        %2145 = vmatprep.subr.bf16.mxu0 0
        %2146 = vmatpush1.bf16.msra.mxu0 0
        %2147 = vmatprep.subr.bf16.mxu0 0
        %2148 = vmatpush1.bf16.msra.mxu0 0
        %2149 = vmatprep.subr.bf16.mxu0 0
        %2150 = vmatpush1.bf16.msra.mxu0 0
        %2151 = vmatprep.subr.bf16.mxu0 0
        %2152 = vmatpush1.bf16.msra.mxu0 0
        %2153 = vmatprep.subr.bf16.mxu0 0
        %2154 = vmatpush1.bf16.msra.mxu0 0
        %2155 = vmatprep.subr.bf16.mxu0 0
        %2156 = vmatpush1.bf16.msra.mxu0 0
        %2157 = vmatprep.subr.bf16.mxu0 0
        %2158 = vmatpush1.bf16.msra.mxu0 0
        %2159 = vmatprep.subr.bf16.mxu0 0
        %2160 = vmatpush1.bf16.msra.mxu0 0
        %2161 = vmatprep.subr.bf16.mxu0 0
        %2162 = vmatpush1.bf16.msra.mxu0 0
        %2163 = vmatprep.subr.bf16.mxu0 0
        %2164 = vmatpush1.bf16.msra.mxu0 0
        %2165 = vmatprep.subr.bf16.mxu0 0
        %2166 = vmatpush1.bf16.msra.mxu0 0
        %2167 = vmatprep.subr.bf16.mxu0 0
        %2168 = vmatpush1.bf16.msra.mxu0 0
        %2169 = vmatprep.subr.bf16.mxu0 0
        %2170 = vmatpush1.bf16.msra.mxu0 0
        %2171 = vmatprep.subr.bf16.mxu0 0
        %2172 = vmatpush1.bf16.msra.mxu0 0
        %2173 = vmatprep.subr.bf16.mxu0 0
        %2174 = vmatpush1.bf16.msra.mxu0 0
        %2175 = vmatprep.mubr.bf16.mxu0 0
        %2176 = vmatmul.mubr.bf16.gmra.mrb[0].mxu0 %v2141
        %v2177 = vpop.f32.mrb[0].mxu0
        %v2178 = vadd.f32 0.0, %v2177
        %v2179 = vpop.f32.mrb[0].mxu0
        %v2180 = vpop.f32.mrb[0].mxu0
        %v2181 = vadd.f32 0.0, %v2180
        %v2182 = vpop.f32.mrb[0].mxu0
        %2183 = vdwg.mxu0
        %v2184 = vpack.c.bf16 %v2089, %v2087
        %v2186 = vsel %vm1049, %v2184, 0
        %2188 = vmatprep.subr.bf16.mxu0 0
        %2189 = vmatpush1.bf16.msra.mxu0 %v1693
        %2190 = vmatprep.subr.bf16.mxu0 0
        %2191 = vmatpush1.bf16.msra.mxu0 0
        %2192 = vmatprep.subr.bf16.mxu0 0
        %2193 = vmatpush1.bf16.msra.mxu0 0
        %2194 = vmatprep.subr.bf16.mxu0 0
        %2195 = vmatpush1.bf16.msra.mxu0 0
        %2196 = vmatprep.subr.bf16.mxu0 0
        %2197 = vmatpush1.bf16.msra.mxu0 0
        %2198 = vmatprep.subr.bf16.mxu0 0
        %2199 = vmatpush1.bf16.msra.mxu0 0
        %2200 = vmatprep.subr.bf16.mxu0 0
        %2201 = vmatpush1.bf16.msra.mxu0 0
        %2202 = vmatprep.subr.bf16.mxu0 0
        %2203 = vmatpush1.bf16.msra.mxu0 0
        %2204 = vmatprep.subr.bf16.mxu0 0
        %2205 = vmatpush1.bf16.msra.mxu0 0
        %2206 = vmatprep.subr.bf16.mxu0 0
        %2207 = vmatpush1.bf16.msra.mxu0 0
        %2208 = vmatprep.subr.bf16.mxu0 0
        %2209 = vmatpush1.bf16.msra.mxu0 0
        %2210 = vmatprep.subr.bf16.mxu0 0
        %2211 = vmatpush1.bf16.msra.mxu0 0
        %2212 = vmatprep.subr.bf16.mxu0 0
        %2213 = vmatpush1.bf16.msra.mxu0 0
        %2214 = vmatprep.subr.bf16.mxu0 0
        %2215 = vmatpush1.bf16.msra.mxu0 0
        %2216 = vmatprep.subr.bf16.mxu0 0
        %2217 = vmatpush1.bf16.msra.mxu0 0
        %2218 = vmatprep.subr.bf16.mxu0 0
        %2219 = vmatpush1.bf16.msra.mxu0 0
        %2220 = vmatprep.mubr.bf16.mxu0 0
        %2221 = vmatmul.mubr.bf16.gmra.mrb[0].mxu0 %v2186
        %v2222 = vpop.f32.mrb[0].mxu0
        %v2223 = vadd.f32 0.0, %v2222
        %v2224 = vpop.f32.mrb[0].mxu0
        %v2225 = vpop.f32.mrb[0].mxu0
        %v2226 = vadd.f32 0.0, %v2225
        %v2227 = vpop.f32.mrb[0].mxu0
        %2228 = vdwg.mxu0
        %v2229 = vpack.c.bf16 %v2093, %v2091
        %v2231 = vsel %vm1049, %v2229, 0
        %2233 = vmatprep.subr.bf16.mxu0 0
        %2234 = vmatpush1.bf16.msra.mxu0 %v1991
        %2235 = vmatprep.subr.bf16.mxu0 0
        %2236 = vmatpush1.bf16.msra.mxu0 0
        %2237 = vmatprep.subr.bf16.mxu0 0
        %2238 = vmatpush1.bf16.msra.mxu0 0
        %2239 = vmatprep.subr.bf16.mxu0 0
        %2240 = vmatpush1.bf16.msra.mxu0 0
        %2241 = vmatprep.subr.bf16.mxu0 0
        %2242 = vmatpush1.bf16.msra.mxu0 0
        %2243 = vmatprep.subr.bf16.mxu0 0
        %2244 = vmatpush1.bf16.msra.mxu0 0
        %2245 = vmatprep.subr.bf16.mxu0 0
        %2246 = vmatpush1.bf16.msra.mxu0 0
        %2247 = vmatprep.subr.bf16.mxu0 0
        %2248 = vmatpush1.bf16.msra.mxu0 0
        %2249 = vmatprep.subr.bf16.mxu0 0
        %2250 = vmatpush1.bf16.msra.mxu0 0
        %2251 = vmatprep.subr.bf16.mxu0 0
        %2252 = vmatpush1.bf16.msra.mxu0 0
        %2253 = vmatprep.subr.bf16.mxu0 0
        %2254 = vmatpush1.bf16.msra.mxu0 0
        %2255 = vmatprep.subr.bf16.mxu0 0
        %2256 = vmatpush1.bf16.msra.mxu0 0
        %2257 = vmatprep.subr.bf16.mxu0 0
        %2258 = vmatpush1.bf16.msra.mxu0 0
        %2259 = vmatprep.subr.bf16.mxu0 0
        %2260 = vmatpush1.bf16.msra.mxu0 0
        %2261 = vmatprep.subr.bf16.mxu0 0
        %2262 = vmatpush1.bf16.msra.mxu0 0
        %2263 = vmatprep.subr.bf16.mxu0 0
        %2264 = vmatpush1.bf16.msra.mxu0 0
        %2265 = vmatprep.mubr.bf16.mxu0 0
        %2266 = vmatmul.mubr.bf16.gmra.mrb[0].mxu0 %v2231
        %v2267 = vpop.f32.mrb[0].mxu0
        %v2268 = vadd.f32 0.0, %v2267
        %v2269 = vpop.f32.mrb[0].mxu0
        %v2270 = vpop.f32.mrb[0].mxu0
        %v2271 = vadd.f32 0.0, %v2270
        %v2272 = vpop.f32.mrb[0].mxu0
        %2273 = vdwg.mxu0
        %2276 = vrot.lane.b32.xlu0 %v2178, 16
        %v2277 = vpop.permute.xlu0 %2276
        %2278 = vrot.lane.b32.xlu0 %v2181, 16
        %v2279 = vpop.permute.xlu0 %2278
        %2284 = vrot.lane.b32.xlu0 %v2223, 32
        %v2285 = vpop.permute.xlu0 %2284
        %2286 = vrot.lane.b32.xlu0 %v2226, 32
        %v2287 = vpop.permute.xlu0 %2286
        %2292 = vrot.lane.b32.xlu0 %v2268, 48
        %v2293 = vpop.permute.xlu0 %2292
        %2294 = vrot.lane.b32.xlu0 %v2271, 48
        %v2295 = vpop.permute.xlu0 %2294
        %v2298 = vsel %vm1049, %v2133, %v2277
        %v2299 = vsel %vm1049, %v2136, %v2279
        %vm2300 = vcmask 261120
        %v2301 = vsel %vm2300, %v2298, %v2285
        %v2302 = vsel %vm2300, %v2299, %v2287
        %vm2303 = vcmask 392192
        %v2304 = vsel %vm2303, %v2301, %v2293
        %v2305 = vsel %vm2303, %v2302, %v2295
        %v2306 = vpack.c.bf16 %v2305, %v2304
        %v2307 = vld [vmem:[%s10] sm:$0xf]
        %v2308 = vld [vmem:[%s10 + $0x4] sm:$0xf]
        %v2309 = vld [vmem:[%s10 + $0x8] sm:$0xf]
        %v2310 = vld [vmem:[%s10 + $0xc] sm:$0xf]
        %v2311 = vld [vmem:[%s10 + $0x10] sm:$0xf]
        %v2312 = vld [vmem:[%s10 + $0x14] sm:$0xf]
        %v2313 = vld [vmem:[%s10 + $0x18] sm:$0xf]
        %v2314 = vld [vmem:[%s10 + $0x1c] sm:$0xf]
        %v2315 = vld [vmem:[%s11] sm:$0x1]
        %v2317 = vlaneseq
        %v2318 = vshrl.u32 %v2317, 7
        %v2319 = vsub.s32 0, %v2318
        %v2320 = vrot.slane %v2315, %v2319
        %v2330 = vunpack.c.l.b16 %v2307
        %v2331 = vunpack.c.l.b16 %v2308
        %v2332 = vunpack.c.l.b16 %v2309
        %v2333 = vunpack.c.l.b16 %v2310
        %v2334 = vunpack.c.l.b16 %v2311
        %v2335 = vunpack.c.l.b16 %v2312
        %v2336 = vunpack.c.l.b16 %v2313
        %v2337 = vunpack.c.l.b16 %v2314
        %v2338 = vpack.c.b16 %v2331, %v2330
        %v2339 = vpack.c.b16 %v2333, %v2332
        %v2340 = vpack.c.b16 %v2335, %v2334
        %v2341 = vpack.c.b16 %v2337, %v2336
        %v2347 = vsel %vm757, %v2306, 0
        %2349 = vmatprep.subr.bf16.mxu0 0
        %2350 = vmatpush1.bf16.msra.mxu0 %v2338
        %2351 = vmatprep.subr.bf16.mxu0 0
        %2352 = vmatpush1.bf16.msra.mxu0 %v2339
        %2353 = vmatprep.subr.bf16.mxu0 0
        %2354 = vmatpush1.bf16.msra.mxu0 %v2340
        %2355 = vmatprep.subr.bf16.mxu0 0
        %2356 = vmatpush1.bf16.msra.mxu0 %v2341
        %2357 = vmatprep.subr.bf16.mxu0 0
        %2358 = vmatpush1.bf16.msra.mxu0 0
        %2359 = vmatprep.subr.bf16.mxu0 0
        %2360 = vmatpush1.bf16.msra.mxu0 0
        %2361 = vmatprep.subr.bf16.mxu0 0
        %2362 = vmatpush1.bf16.msra.mxu0 0
        %2363 = vmatprep.subr.bf16.mxu0 0
        %2364 = vmatpush1.bf16.msra.mxu0 0
        %2365 = vmatprep.subr.bf16.mxu0 0
        %2366 = vmatpush1.bf16.msra.mxu0 0
        %2367 = vmatprep.subr.bf16.mxu0 0
        %2368 = vmatpush1.bf16.msra.mxu0 0
        %2369 = vmatprep.subr.bf16.mxu0 0
        %2370 = vmatpush1.bf16.msra.mxu0 0
        %2371 = vmatprep.subr.bf16.mxu0 0
        %2372 = vmatpush1.bf16.msra.mxu0 0
        %2373 = vmatprep.subr.bf16.mxu0 0
        %2374 = vmatpush1.bf16.msra.mxu0 0
        %2375 = vmatprep.subr.bf16.mxu0 0
        %2376 = vmatpush1.bf16.msra.mxu0 0
        %2377 = vmatprep.subr.bf16.mxu0 0
        %2378 = vmatpush1.bf16.msra.mxu0 0
        %2379 = vmatprep.subr.bf16.mxu0 0
        %2380 = vmatpush1.bf16.msra.mxu0 0
        %2381 = vmatprep.mubr.bf16.mxu0 0
        %2382 = vmatmul.mubr.bf16.gmra.mrb[0].mxu0 %v2347
        %v2383 = vpop.f32.mrb[0].mxu0
        %v2384 = vadd.f32 %v2320, %v2383
        %v2385 = vpop.f32.mrb[0].mxu0
        %v2386 = vpop.f32.mrb[0].mxu0
        %v2387 = vadd.f32 %v2320, %v2386
        %v2388 = vpop.f32.mrb[0].mxu0
        %2389 = vdwg.mxu0
        %v2390 = vadd.f32 %v2384, %v799
        %v2391 = vadd.f32 %v2387, %v800
        %v2392 = vld [vmem:[%s12] sm:$0x1]
        %v2393 = vld [vmem:[%s13] sm:$0x1]
        %v2394 = vsel %vm757, %v2390, 0.0
        %2395 = vadd.xlane.f32.xlu0 %v2394
        %v2396 = vpop.xlane.xlu0 %2395
        %v2397 = vsel %vm757, %v2391, 0.0
        %2398 = vadd.xlane.f32.xlu0 %v2397
        %v2399 = vpop.xlane.xlu0 %2398
        %v2400 = vmul.f32 %v2396, %v764
        %v2401 = vmul.f32 %v2399, %v764
        %v2402 = vsub.f32 %v2390, %v2400
        %v2403 = vsub.f32 %v2391, %v2401
        %v2404 = vmul.f32 %v2402, %v2402
        %v2405 = vmul.f32 %v2403, %v2403
        %v2406 = vsel %vm757, %v2404, 0.0
        %2407 = vadd.xlane.f32.xlu0 %v2406
        %v2408 = vpop.xlane.xlu0 %2407
        %v2409 = vsel %vm757, %v2405, 0.0
        %2410 = vadd.xlane.f32.xlu0 %v2409
        %v2411 = vpop.xlane.xlu0 %2410
        %v2412 = vmul.f32 %v2408, %v764
        %v2413 = vmul.f32 %v2411, %v764
        %v2414 = vadd.f32 %v2412, 1e-05
        %v2415 = vadd.f32 %v2413, 1e-05
        %v2416 = vrsqrt.pop %v2414
        %v2417 = vrsqrt.pop %v2415
        %v2418 = vmul.f32 %v2402, %v2416
        %v2419 = vmul.f32 %v2403, %v2417
        %v2421 = vlaneseq
        %v2422 = vshrl.u32 %v2421, 7
        %v2423 = vsub.s32 0, %v2422
        %v2424 = vrot.slane %v2392, %v2423
        %v2426 = vmul.f32 %v2418, %v2424
        %v2427 = vmul.f32 %v2419, %v2424
        %v2429 = vlaneseq
        %v2430 = vshrl.u32 %v2429, 7
        %v2431 = vsub.s32 0, %v2430
        %v2432 = vrot.slane %v2393, %v2431
        %v2434 = vadd.f32 %v2426, %v2432
        %v2435 = vadd.f32 %v2427, %v2432
        %v2436 = vpack.c.bf16 %v2435, %v2434
        %v2437 = vld [vmem:[%s14] sm:$0xf]
        %v2438 = vld [vmem:[%s14 + $0x4] sm:$0xf]
        %v2439 = vld [vmem:[%s14 + $0x8] sm:$0xf]
        %v2440 = vld [vmem:[%s14 + $0xc] sm:$0xf]
        %v2441 = vld [vmem:[%s14 + $0x10] sm:$0xf]
        %v2442 = vld [vmem:[%s14 + $0x14] sm:$0xf]
        %v2443 = vld [vmem:[%s14 + $0x18] sm:$0xf]
        %v2444 = vld [vmem:[%s14 + $0x1c] sm:$0xf]
        %v2445 = vld [vmem:[%s15] sm:$0x1]
        %v2447 = vlaneseq
        %v2448 = vshrl.u32 %v2447, 7
        %v2449 = vsub.s32 0, %v2448
        %v2450 = vrot.slane %v2445, %v2449
        %v2460 = vunpack.c.l.b16 %v2437
        %v2461 = vunpack.c.l.b16 %v2438
        %v2462 = vunpack.c.l.b16 %v2439
        %v2463 = vunpack.c.l.b16 %v2440
        %v2464 = vunpack.c.l.b16 %v2441
        %v2465 = vunpack.c.l.b16 %v2442
        %v2466 = vunpack.c.l.b16 %v2443
        %v2467 = vunpack.c.l.b16 %v2444
        %v2468 = vpack.c.b16 %v2461, %v2460
        %v2469 = vpack.c.b16 %v2463, %v2462
        %v2470 = vpack.c.b16 %v2465, %v2464
        %v2471 = vpack.c.b16 %v2467, %v2466
        %v2477 = vsel %vm757, %v2436, 0
        %2479 = vmatprep.subr.bf16.mxu0 0
        %2480 = vmatpush1.bf16.msra.mxu0 %v2468
        %2481 = vmatprep.subr.bf16.mxu0 0
        %2482 = vmatpush1.bf16.msra.mxu0 %v2469
        %2483 = vmatprep.subr.bf16.mxu0 0
        %2484 = vmatpush1.bf16.msra.mxu0 %v2470
        %2485 = vmatprep.subr.bf16.mxu0 0
        %2486 = vmatpush1.bf16.msra.mxu0 %v2471
        %2487 = vmatprep.subr.bf16.mxu0 0
        %2488 = vmatpush1.bf16.msra.mxu0 0
        %2489 = vmatprep.subr.bf16.mxu0 0
        %2490 = vmatpush1.bf16.msra.mxu0 0
        %2491 = vmatprep.subr.bf16.mxu0 0
        %2492 = vmatpush1.bf16.msra.mxu0 0
        %2493 = vmatprep.subr.bf16.mxu0 0
        %2494 = vmatpush1.bf16.msra.mxu0 0
        %2495 = vmatprep.subr.bf16.mxu0 0
        %2496 = vmatpush1.bf16.msra.mxu0 0
        %2497 = vmatprep.subr.bf16.mxu0 0
        %2498 = vmatpush1.bf16.msra.mxu0 0
        %2499 = vmatprep.subr.bf16.mxu0 0
        %2500 = vmatpush1.bf16.msra.mxu0 0
        %2501 = vmatprep.subr.bf16.mxu0 0
        %2502 = vmatpush1.bf16.msra.mxu0 0
        %2503 = vmatprep.subr.bf16.mxu0 0
        %2504 = vmatpush1.bf16.msra.mxu0 0
        %2505 = vmatprep.subr.bf16.mxu0 0
        %2506 = vmatpush1.bf16.msra.mxu0 0
        %2507 = vmatprep.subr.bf16.mxu0 0
        %2508 = vmatpush1.bf16.msra.mxu0 0
        %2509 = vmatprep.subr.bf16.mxu0 0
        %2510 = vmatpush1.bf16.msra.mxu0 0
        %2511 = vmatprep.mubr.bf16.mxu0 0
        %2512 = vmatmul.mubr.bf16.gmra.mrb[0].mxu0 %v2477
        %v2513 = vpop.f32.mrb[0].mxu0
        %v2514 = vadd.f32 %v2450, %v2513
        %v2515 = vpop.f32.mrb[0].mxu0
        %v2516 = vpop.f32.mrb[0].mxu0
        %v2517 = vadd.f32 %v2450, %v2516
        %v2518 = vpop.f32.mrb[0].mxu0
        %2519 = vdwg.mxu0
        %v2520 = vmul.f32 %v2514, 0.70710677
        %v2521 = vmul.f32 %v2517, 0.70710677
        %v2522 = vand.u32 2147483647, %v2520
        %v2523 = vand.u32 2147483647, %v2521
        %v2524 = vmul.f32 %v2522, 0.3275911
        %v2525 = vmul.f32 %v2523, 0.3275911
        %v2526 = vadd.f32 %v2524, 1.0
        %v2527 = vadd.f32 %v2525, 1.0
        %v2528 = vrcp.pop %v2526
        %v2529 = vmul.f32 1.0, %v2528
        %v2530 = vrcp.pop %v2527
        %v2531 = vmul.f32 1.0, %v2530
        %v2532 = vmul.f32 %v2529, 1.0614054
        %v2533 = vmul.f32 %v2531, 1.0614054
        %v2534 = vsub.f32 %v2532, 1.4531521
        %v2535 = vsub.f32 %v2533, 1.4531521
        %v2536 = vmul.f32 %v2534, %v2529
        %v2537 = vmul.f32 %v2535, %v2531
        %v2538 = vadd.f32 %v2536, 1.4214138
        %v2539 = vadd.f32 %v2537, 1.4214138
        %v2540 = vmul.f32 %v2538, %v2529
        %v2541 = vmul.f32 %v2539, %v2531
        %v2542 = vsub.f32 %v2540, 0.28449672
        %v2543 = vsub.f32 %v2541, 0.28449672
        %v2544 = vmul.f32 %v2542, %v2529
        %v2545 = vmul.f32 %v2543, %v2531
        %v2546 = vadd.f32 %v2544, 0.2548296
        %v2547 = vadd.f32 %v2545, 0.2548296
        %v2548 = vmul.f32 %v2546, %v2529
        %v2549 = vmul.f32 %v2547, %v2531
        %v2550 = vsub.f32 0.0, %v2522
        %v2551 = vsub.f32 0.0, %v2523
        %v2552 = vmul.f32 %v2550, %v2522
        %v2553 = vmul.f32 %v2551, %v2523
        %v2554 = vmul.f32 %v2552, 1.442695
        %v2555 = vpow.pop %v2554
        %v2556 = vmul.f32 %v2553, 1.442695
        %v2557 = vpow.pop %v2556
        %v2558 = vmul.f32 %v2548, %v2555
        %v2559 = vmul.f32 %v2549, %v2557
        %v2560 = vsub.f32 1.0, %v2558
        %v2561 = vsub.f32 1.0, %v2559
        %vm2562 = vcmp.ge.f32.partialorder %v2520, 0.0
        %vm2563 = vcmp.ge.f32.partialorder %v2521, 0.0
        %v2564 = vsub.f32 0.0, %v2560
        %v2565 = vsub.f32 0.0, %v2561
        %v2566 = vsel %vm2562, %v2560, %v2564
        %v2567 = vsel %vm2563, %v2561, %v2565
        %v2568 = vmul.f32 %v2514, 0.5
        %v2569 = vmul.f32 %v2517, 0.5
        %v2570 = vadd.f32 %v2566, 1.0
        %v2571 = vadd.f32 %v2567, 1.0
        %v2572 = vmul.f32 %v2568, %v2570
        %v2573 = vmul.f32 %v2569, %v2571
        %v2574 = vpack.c.bf16 %v2573, %v2572
        %v2575 = vld [vmem:[%s16] sm:$0xf]
        %v2576 = vld [vmem:[%s16 + $0x4] sm:$0xf]
        %v2577 = vld [vmem:[%s16 + $0x8] sm:$0xf]
        %v2578 = vld [vmem:[%s16 + $0xc] sm:$0xf]
        %v2579 = vld [vmem:[%s16 + $0x10] sm:$0xf]
        %v2580 = vld [vmem:[%s16 + $0x14] sm:$0xf]
        %v2581 = vld [vmem:[%s16 + $0x18] sm:$0xf]
        %v2582 = vld [vmem:[%s16 + $0x1c] sm:$0xf]
        %v2583 = vld [vmem:[%s16 + $0x20] sm:$0xf]
        %v2584 = vld [vmem:[%s16 + $0x24] sm:$0xf]
        %v2585 = vld [vmem:[%s16 + $0x28] sm:$0xf]
        %v2586 = vld [vmem:[%s16 + $0x2c] sm:$0xf]
        %v2587 = vld [vmem:[%s16 + $0x30] sm:$0xf]
        %v2588 = vld [vmem:[%s16 + $0x34] sm:$0xf]
        %v2589 = vld [vmem:[%s16 + $0x38] sm:$0xf]
        %v2590 = vld [vmem:[%s16 + $0x3c] sm:$0xf]
        %v2591 = vld [vmem:[%s17] sm:$0x1]
        %v2593 = vlaneseq
        %v2594 = vshrl.u32 %v2593, 7
        %v2595 = vsub.s32 0, %v2594
        %v2596 = vrot.slane %v2591, %v2595
        %v2614 = vunpack.c.l.b16 %v2575
        %v2615 = vunpack.c.l.b16 %v2576
        %v2616 = vunpack.c.l.b16 %v2577
        %v2617 = vunpack.c.l.b16 %v2578
        %v2618 = vunpack.c.l.b16 %v2579
        %v2619 = vunpack.c.l.b16 %v2580
        %v2620 = vunpack.c.l.b16 %v2581
        %v2621 = vunpack.c.l.b16 %v2582
        %v2622 = vunpack.c.l.b16 %v2583
        %v2623 = vunpack.c.l.b16 %v2584
        %v2624 = vunpack.c.l.b16 %v2585
        %v2625 = vunpack.c.l.b16 %v2586
        %v2626 = vunpack.c.l.b16 %v2587
        %v2627 = vunpack.c.l.b16 %v2588
        %v2628 = vunpack.c.l.b16 %v2589
        %v2629 = vunpack.c.l.b16 %v2590
        %v2630 = vpack.c.b16 %v2615, %v2614
        %v2631 = vpack.c.b16 %v2617, %v2616
        %v2632 = vpack.c.b16 %v2619, %v2618
        %v2633 = vpack.c.b16 %v2621, %v2620
        %v2634 = vpack.c.b16 %v2623, %v2622
        %v2635 = vpack.c.b16 %v2625, %v2624
        %v2636 = vpack.c.b16 %v2627, %v2626
        %v2637 = vpack.c.b16 %v2629, %v2628
        %2646 = vmatprep.subr.bf16.mxu0 0
        %2647 = vmatpush1.bf16.msra.mxu0 %v2630
        %2648 = vmatprep.subr.bf16.mxu0 0
        %2649 = vmatpush1.bf16.msra.mxu0 %v2631
        %2650 = vmatprep.subr.bf16.mxu0 0
        %2651 = vmatpush1.bf16.msra.mxu0 %v2632
        %2652 = vmatprep.subr.bf16.mxu0 0
        %2653 = vmatpush1.bf16.msra.mxu0 %v2633
        %2654 = vmatprep.subr.bf16.mxu0 0
        %2655 = vmatpush1.bf16.msra.mxu0 %v2634
        %2656 = vmatprep.subr.bf16.mxu0 0
        %2657 = vmatpush1.bf16.msra.mxu0 %v2635
        %2658 = vmatprep.subr.bf16.mxu0 0
        %2659 = vmatpush1.bf16.msra.mxu0 %v2636
        %2660 = vmatprep.subr.bf16.mxu0 0
        %2661 = vmatpush1.bf16.msra.mxu0 %v2637
        %2662 = vmatprep.subr.bf16.mxu0 0
        %2663 = vmatpush1.bf16.msra.mxu0 0
        %2664 = vmatprep.subr.bf16.mxu0 0
        %2665 = vmatpush1.bf16.msra.mxu0 0
        %2666 = vmatprep.subr.bf16.mxu0 0
        %2667 = vmatpush1.bf16.msra.mxu0 0
        %2668 = vmatprep.subr.bf16.mxu0 0
        %2669 = vmatpush1.bf16.msra.mxu0 0
        %2670 = vmatprep.subr.bf16.mxu0 0
        %2671 = vmatpush1.bf16.msra.mxu0 0
        %2672 = vmatprep.subr.bf16.mxu0 0
        %2673 = vmatpush1.bf16.msra.mxu0 0
        %2674 = vmatprep.subr.bf16.mxu0 0
        %2675 = vmatpush1.bf16.msra.mxu0 0
        %2676 = vmatprep.subr.bf16.mxu0 0
        %2677 = vmatpush1.bf16.msra.mxu0 0
        %2678 = vmatprep.mubr.bf16.mxu0 0
        %2679 = vmatmul.mubr.bf16.gmra.mrb[0].mxu0 %v2574
        %v2680 = vpop.f32.mrb[0].mxu0
        %v2681 = vadd.f32 %v2596, %v2680
        %v2682 = vpop.f32.mrb[0].mxu0
        %v2683 = vpop.f32.mrb[0].mxu0
        %v2684 = vadd.f32 %v2596, %v2683
        %v2685 = vpop.f32.mrb[0].mxu0
        %2686 = vdwg.mxu0
        %v2687 = vadd.f32 %v2681, %v2434
        %v2688 = vadd.f32 %v2684, %v2435
        %v2689 = vld [vmem:[%s18] sm:$0x1]
        %v2690 = vld [vmem:[%s19] sm:$0x1]
        %v2691 = vsel %vm757, %v2687, 0.0
        %2692 = vadd.xlane.f32.xlu0 %v2691
        %v2693 = vpop.xlane.xlu0 %2692
        %v2694 = vsel %vm757, %v2688, 0.0
        %2695 = vadd.xlane.f32.xlu0 %v2694
        %v2696 = vpop.xlane.xlu0 %2695
        %v2697 = vmul.f32 %v2693, %v764
        %v2698 = vmul.f32 %v2696, %v764
        %v2699 = vsub.f32 %v2687, %v2697
        %v2700 = vsub.f32 %v2688, %v2698
        %v2701 = vmul.f32 %v2699, %v2699
        %v2702 = vmul.f32 %v2700, %v2700
        %v2703 = vsel %vm757, %v2701, 0.0
        %2704 = vadd.xlane.f32.xlu0 %v2703
        %v2705 = vpop.xlane.xlu0 %2704
        %v2706 = vsel %vm757, %v2702, 0.0
        %2707 = vadd.xlane.f32.xlu0 %v2706
        %v2708 = vpop.xlane.xlu0 %2707
        %v2709 = vmul.f32 %v2705, %v764
        %v2710 = vmul.f32 %v2708, %v764
        %v2711 = vadd.f32 %v2709, 1e-05
        %v2712 = vadd.f32 %v2710, 1e-05
        %v2713 = vrsqrt.pop %v2711
        %v2714 = vrsqrt.pop %v2712
        %v2715 = vmul.f32 %v2699, %v2713
        %v2716 = vmul.f32 %v2700, %v2714
        %v2718 = vlaneseq
        %v2719 = vshrl.u32 %v2718, 7
        %v2720 = vsub.s32 0, %v2719
        %v2721 = vrot.slane %v2689, %v2720
        %v2723 = vmul.f32 %v2715, %v2721
        %v2724 = vmul.f32 %v2716, %v2721
        %v2726 = vlaneseq
        %v2727 = vshrl.u32 %v2726, 7
        %v2728 = vsub.s32 0, %v2727
        %v2729 = vrot.slane %v2690, %v2728
        %v2731 = vadd.f32 %v2723, %v2729
        %v2732 = vadd.f32 %v2724, %v2729
        %v2733 = vpack.c.bf16 %v2732, %v2731
        %s2734 = scalar_lea.vmem %s4, 128
        %v2735 = vld [vmem:[%s2734] sm:$0xf]
        %v2736 = vld [vmem:[%s2734 + $0x4] sm:$0xf]
        %v2737 = vld [vmem:[%s2734 + $0x8] sm:$0xf]
        %v2738 = vld [vmem:[%s2734 + $0xc] sm:$0xf]
        %v2739 = vld [vmem:[%s2734 + $0x10] sm:$0xf]
        %v2740 = vld [vmem:[%s2734 + $0x14] sm:$0xf]
        %v2741 = vld [vmem:[%s2734 + $0x18] sm:$0xf]
        %v2742 = vld [vmem:[%s2734 + $0x1c] sm:$0xf]
        %s2743 = scalar_lea.vmem %s7, 4
        %v2744 = vld [vmem:[%s2743] sm:$0x1]
        %v2746 = vlaneseq
        %v2747 = vshrl.u32 %v2746, 7
        %v2748 = vsub.s32 0, %v2747
        %v2749 = vrot.slane %v2744, %v2748
        %v2759 = vunpack.c.l.b16 %v2735
        %v2760 = vunpack.c.l.b16 %v2736
        %v2761 = vunpack.c.l.b16 %v2737
        %v2762 = vunpack.c.l.b16 %v2738
        %v2763 = vunpack.c.l.b16 %v2739
        %v2764 = vunpack.c.l.b16 %v2740
        %v2765 = vunpack.c.l.b16 %v2741
        %v2766 = vunpack.c.l.b16 %v2742
        %v2767 = vpack.c.b16 %v2760, %v2759
        %v2768 = vpack.c.b16 %v2762, %v2761
        %v2769 = vpack.c.b16 %v2764, %v2763
        %v2770 = vpack.c.b16 %v2766, %v2765
        %v2776 = vsel %vm757, %v2733, 0
        %2778 = vmatprep.subr.bf16.mxu0 0
        %2779 = vmatpush1.bf16.msra.mxu0 %v2767
        %2780 = vmatprep.subr.bf16.mxu0 0
        %2781 = vmatpush1.bf16.msra.mxu0 %v2768
        %2782 = vmatprep.subr.bf16.mxu0 0
        %2783 = vmatpush1.bf16.msra.mxu0 %v2769
        %2784 = vmatprep.subr.bf16.mxu0 0
        %2785 = vmatpush1.bf16.msra.mxu0 %v2770
        %2786 = vmatprep.subr.bf16.mxu0 0
        %2787 = vmatpush1.bf16.msra.mxu0 0
        %2788 = vmatprep.subr.bf16.mxu0 0
        %2789 = vmatpush1.bf16.msra.mxu0 0
        %2790 = vmatprep.subr.bf16.mxu0 0
        %2791 = vmatpush1.bf16.msra.mxu0 0
        %2792 = vmatprep.subr.bf16.mxu0 0
        %2793 = vmatpush1.bf16.msra.mxu0 0
        %2794 = vmatprep.subr.bf16.mxu0 0
        %2795 = vmatpush1.bf16.msra.mxu0 0
        %2796 = vmatprep.subr.bf16.mxu0 0
        %2797 = vmatpush1.bf16.msra.mxu0 0
        %2798 = vmatprep.subr.bf16.mxu0 0
        %2799 = vmatpush1.bf16.msra.mxu0 0
        %2800 = vmatprep.subr.bf16.mxu0 0
        %2801 = vmatpush1.bf16.msra.mxu0 0
        %2802 = vmatprep.subr.bf16.mxu0 0
        %2803 = vmatpush1.bf16.msra.mxu0 0
        %2804 = vmatprep.subr.bf16.mxu0 0
        %2805 = vmatpush1.bf16.msra.mxu0 0
        %2806 = vmatprep.subr.bf16.mxu0 0
        %2807 = vmatpush1.bf16.msra.mxu0 0
        %2808 = vmatprep.subr.bf16.mxu0 0
        %2809 = vmatpush1.bf16.msra.mxu0 0
        %2810 = vmatprep.mubr.bf16.mxu0 0
        %2811 = vmatmul.mubr.bf16.gmra.mrb[0].mxu0 %v2776
        %v2812 = vpop.f32.mrb[0].mxu0
        %v2813 = vadd.f32 %v2749, %v2812
        %v2814 = vpop.f32.mrb[0].mxu0
        %v2815 = vpop.f32.mrb[0].mxu0
        %v2816 = vadd.f32 %v2749, %v2815
        %v2817 = vpop.f32.mrb[0].mxu0
        %2818 = vdwg.mxu0
        %s2819 = scalar_lea.vmem %s5, 128
        %v2820 = vld [vmem:[%s2819] sm:$0xf]
        %v2821 = vld [vmem:[%s2819 + $0x4] sm:$0xf]
        %v2822 = vld [vmem:[%s2819 + $0x8] sm:$0xf]
        %v2823 = vld [vmem:[%s2819 + $0xc] sm:$0xf]
        %v2824 = vld [vmem:[%s2819 + $0x10] sm:$0xf]
        %v2825 = vld [vmem:[%s2819 + $0x14] sm:$0xf]
        %v2826 = vld [vmem:[%s2819 + $0x18] sm:$0xf]
        %v2827 = vld [vmem:[%s2819 + $0x1c] sm:$0xf]
        %s2828 = scalar_lea.vmem %s8, 4
        %v2829 = vld [vmem:[%s2828] sm:$0x1]
        %v2831 = vlaneseq
        %v2832 = vshrl.u32 %v2831, 7
        %v2833 = vsub.s32 0, %v2832
        %v2834 = vrot.slane %v2829, %v2833
        %v2844 = vunpack.c.l.b16 %v2820
        %v2845 = vunpack.c.l.b16 %v2821
        %v2846 = vunpack.c.l.b16 %v2822
        %v2847 = vunpack.c.l.b16 %v2823
        %v2848 = vunpack.c.l.b16 %v2824
        %v2849 = vunpack.c.l.b16 %v2825
        %v2850 = vunpack.c.l.b16 %v2826
        %v2851 = vunpack.c.l.b16 %v2827
        %v2852 = vpack.c.b16 %v2845, %v2844
        %v2853 = vpack.c.b16 %v2847, %v2846
        %v2854 = vpack.c.b16 %v2849, %v2848
        %v2855 = vpack.c.b16 %v2851, %v2850
        %2860 = vmatprep.subr.bf16.mxu0 0
        %2861 = vmatpush1.bf16.msra.mxu0 %v2852
        %2862 = vmatprep.subr.bf16.mxu0 0
        %2863 = vmatpush1.bf16.msra.mxu0 %v2853
        %2864 = vmatprep.subr.bf16.mxu0 0
        %2865 = vmatpush1.bf16.msra.mxu0 %v2854
        %2866 = vmatprep.subr.bf16.mxu0 0
        %2867 = vmatpush1.bf16.msra.mxu0 %v2855
        %2868 = vmatprep.subr.bf16.mxu0 0
        %2869 = vmatpush1.bf16.msra.mxu0 0
        %2870 = vmatprep.subr.bf16.mxu0 0
        %2871 = vmatpush1.bf16.msra.mxu0 0
        %2872 = vmatprep.subr.bf16.mxu0 0
        %2873 = vmatpush1.bf16.msra.mxu0 0
        %2874 = vmatprep.subr.bf16.mxu0 0
        %2875 = vmatpush1.bf16.msra.mxu0 0
        %2876 = vmatprep.subr.bf16.mxu0 0
        %2877 = vmatpush1.bf16.msra.mxu0 0
        %2878 = vmatprep.subr.bf16.mxu0 0
        %2879 = vmatpush1.bf16.msra.mxu0 0
        %2880 = vmatprep.subr.bf16.mxu0 0
        %2881 = vmatpush1.bf16.msra.mxu0 0
        %2882 = vmatprep.subr.bf16.mxu0 0
        %2883 = vmatpush1.bf16.msra.mxu0 0
        %2884 = vmatprep.subr.bf16.mxu0 0
        %2885 = vmatpush1.bf16.msra.mxu0 0
        %2886 = vmatprep.subr.bf16.mxu0 0
        %2887 = vmatpush1.bf16.msra.mxu0 0
        %2888 = vmatprep.subr.bf16.mxu0 0
        %2889 = vmatpush1.bf16.msra.mxu0 0
        %2890 = vmatprep.subr.bf16.mxu0 0
        %2891 = vmatpush1.bf16.msra.mxu0 0
        %2892 = vmatprep.mubr.bf16.mxu0 0
        %2893 = vmatmul.mubr.bf16.gmra.mrb[0].mxu0 %v2776
        %v2894 = vpop.f32.mrb[0].mxu0
        %v2895 = vadd.f32 %v2834, %v2894
        %v2896 = vpop.f32.mrb[0].mxu0
        %v2897 = vpop.f32.mrb[0].mxu0
        %v2898 = vadd.f32 %v2834, %v2897
        %v2899 = vpop.f32.mrb[0].mxu0
        %2900 = vdwg.mxu0
        %s2901 = scalar_lea.vmem %s6, 128
        %v2902 = vld [vmem:[%s2901] sm:$0xf]
        %v2903 = vld [vmem:[%s2901 + $0x4] sm:$0xf]
        %v2904 = vld [vmem:[%s2901 + $0x8] sm:$0xf]
        %v2905 = vld [vmem:[%s2901 + $0xc] sm:$0xf]
        %v2906 = vld [vmem:[%s2901 + $0x10] sm:$0xf]
        %v2907 = vld [vmem:[%s2901 + $0x14] sm:$0xf]
        %v2908 = vld [vmem:[%s2901 + $0x18] sm:$0xf]
        %v2909 = vld [vmem:[%s2901 + $0x1c] sm:$0xf]
        %s2910 = scalar_lea.vmem %s9, 4
        %v2911 = vld [vmem:[%s2910] sm:$0x1]
        %v2913 = vlaneseq
        %v2914 = vshrl.u32 %v2913, 7
        %v2915 = vsub.s32 0, %v2914
        %v2916 = vrot.slane %v2911, %v2915
        %v2926 = vunpack.c.l.b16 %v2902
        %v2927 = vunpack.c.l.b16 %v2903
        %v2928 = vunpack.c.l.b16 %v2904
        %v2929 = vunpack.c.l.b16 %v2905
        %v2930 = vunpack.c.l.b16 %v2906
        %v2931 = vunpack.c.l.b16 %v2907
        %v2932 = vunpack.c.l.b16 %v2908
        %v2933 = vunpack.c.l.b16 %v2909
        %v2934 = vpack.c.b16 %v2927, %v2926
        %v2935 = vpack.c.b16 %v2929, %v2928
        %v2936 = vpack.c.b16 %v2931, %v2930
        %v2937 = vpack.c.b16 %v2933, %v2932
        %2942 = vmatprep.subr.bf16.mxu0 0
        %2943 = vmatpush1.bf16.msra.mxu0 %v2934
        %2944 = vmatprep.subr.bf16.mxu0 0
        %2945 = vmatpush1.bf16.msra.mxu0 %v2935
        %2946 = vmatprep.subr.bf16.mxu0 0
        %2947 = vmatpush1.bf16.msra.mxu0 %v2936
        %2948 = vmatprep.subr.bf16.mxu0 0
        %2949 = vmatpush1.bf16.msra.mxu0 %v2937
        %2950 = vmatprep.subr.bf16.mxu0 0
        %2951 = vmatpush1.bf16.msra.mxu0 0
        %2952 = vmatprep.subr.bf16.mxu0 0
        %2953 = vmatpush1.bf16.msra.mxu0 0
        %2954 = vmatprep.subr.bf16.mxu0 0
        %2955 = vmatpush1.bf16.msra.mxu0 0
        %2956 = vmatprep.subr.bf16.mxu0 0
        %2957 = vmatpush1.bf16.msra.mxu0 0
        %2958 = vmatprep.subr.bf16.mxu0 0
        %2959 = vmatpush1.bf16.msra.mxu0 0
        %2960 = vmatprep.subr.bf16.mxu0 0
        %2961 = vmatpush1.bf16.msra.mxu0 0
        %2962 = vmatprep.subr.bf16.mxu0 0
        %2963 = vmatpush1.bf16.msra.mxu0 0
        %2964 = vmatprep.subr.bf16.mxu0 0
        %2965 = vmatpush1.bf16.msra.mxu0 0
        %2966 = vmatprep.subr.bf16.mxu0 0
        %2967 = vmatpush1.bf16.msra.mxu0 0
        %2968 = vmatprep.subr.bf16.mxu0 0
        %2969 = vmatpush1.bf16.msra.mxu0 0
        %2970 = vmatprep.subr.bf16.mxu0 0
        %2971 = vmatpush1.bf16.msra.mxu0 0
        %2972 = vmatprep.subr.bf16.mxu0 0
        %2973 = vmatpush1.bf16.msra.mxu0 0
        %2974 = vmatprep.mubr.bf16.mxu0 0
        %2975 = vmatmul.mubr.bf16.gmra.mrb[0].mxu0 %v2776
        %v2976 = vpop.f32.mrb[0].mxu0
        %v2977 = vadd.f32 %v2916, %v2976
        %v2978 = vpop.f32.mrb[0].mxu0
        %v2979 = vpop.f32.mrb[0].mxu0
        %v2980 = vadd.f32 %v2916, %v2979
        %v2981 = vpop.f32.mrb[0].mxu0
        %2982 = vdwg.mxu0
        %v2983 = vmul.f32 %v2813, 0.25
        %v2984 = vmul.f32 %v2816, 0.25
        %v2985 = vpack.c.bf16 %v2984, %v2983
        %v2986 = vpack.c.bf16 %v2898, %v2895
        %v2988 = vsel %vm1049, %v2985, 0
        %v2991 = vsel %vm1049, %v2986, 0
        %2993 = vmatprep.subr.bf16.mxu0 0
        %2994 = vmatpush1.bf16.xpose.msra.mxu0 %v2991
        %2995 = vmatprep.subr.bf16.mxu0 0
        %2996 = vmatpush1.bf16.xpose.msra.mxu0 0
        %2997 = vmatprep.subr.bf16.mxu0 0
        %2998 = vmatpush1.bf16.xpose.msra.mxu0 0
        %2999 = vmatprep.subr.bf16.mxu0 0
        %3000 = vmatpush1.bf16.xpose.msra.mxu0 0
        %3001 = vmatprep.subr.bf16.mxu0 0
        %3002 = vmatpush1.bf16.xpose.msra.mxu0 0
        %3003 = vmatprep.subr.bf16.mxu0 0
        %3004 = vmatpush1.bf16.xpose.msra.mxu0 0
        %3005 = vmatprep.subr.bf16.mxu0 0
        %3006 = vmatpush1.bf16.xpose.msra.mxu0 0
        %3007 = vmatprep.subr.bf16.mxu0 0
        %3008 = vmatpush1.bf16.xpose.msra.mxu0 0
        %3009 = vmatprep.subr.bf16.mxu0 0
        %3010 = vmatpush1.bf16.xpose.msra.mxu0 0
        %3011 = vmatprep.subr.bf16.mxu0 0
        %3012 = vmatpush1.bf16.xpose.msra.mxu0 0
        %3013 = vmatprep.subr.bf16.mxu0 0
        %3014 = vmatpush1.bf16.xpose.msra.mxu0 0
        %3015 = vmatprep.subr.bf16.mxu0 0
        %3016 = vmatpush1.bf16.xpose.msra.mxu0 0
        %3017 = vmatprep.subr.bf16.mxu0 0
        %3018 = vmatpush1.bf16.xpose.msra.mxu0 0
        %3019 = vmatprep.subr.bf16.mxu0 0
        %3020 = vmatpush1.bf16.xpose.msra.mxu0 0
        %3021 = vmatprep.subr.bf16.mxu0 0
        %3022 = vmatpush1.bf16.xpose.msra.mxu0 0
        %3023 = vmatprep.subr.bf16.mxu0 0
        %3024 = vmatpush1.bf16.xpose.msra.mxu0 0
        %3025 = vmatprep.mubr.bf16.mxu0 0
        %3026 = vmatmul.mubr.bf16.gmra.mrb[0].mxu0 %v2988
        %v3027 = vpop.f32.mrb[0].mxu0
        %v3028 = vadd.f32 0.0, %v3027
        %v3029 = vpop.f32.mrb[0].mxu0
        %v3030 = vpop.f32.mrb[0].mxu0
        %v3031 = vadd.f32 0.0, %v3030
        %v3032 = vpop.f32.mrb[0].mxu0
        %3033 = vdwg.mxu0
        %v3034 = vpack.c.bf16 %v2980, %v2977
        %s3035 = scalar_lea.vmem %s4, 160
        %v3036 = vld [vmem:[%s3035] sm:$0xf]
        %v3037 = vld [vmem:[%s3035 + $0x4] sm:$0xf]
        %v3038 = vld [vmem:[%s3035 + $0x8] sm:$0xf]
        %v3039 = vld [vmem:[%s3035 + $0xc] sm:$0xf]
        %v3040 = vld [vmem:[%s3035 + $0x10] sm:$0xf]
        %v3041 = vld [vmem:[%s3035 + $0x14] sm:$0xf]
        %v3042 = vld [vmem:[%s3035 + $0x18] sm:$0xf]
        %v3043 = vld [vmem:[%s3035 + $0x1c] sm:$0xf]
        %s3044 = scalar_lea.vmem %s7, 5
        %v3045 = vld [vmem:[%s3044] sm:$0x1]
        %v3047 = vlaneseq
        %v3048 = vshrl.u32 %v3047, 7
        %v3049 = vsub.s32 0, %v3048
        %v3050 = vrot.slane %v3045, %v3049
        %v3060 = vunpack.c.l.b16 %v3036
        %v3061 = vunpack.c.l.b16 %v3037
        %v3062 = vunpack.c.l.b16 %v3038
        %v3063 = vunpack.c.l.b16 %v3039
        %v3064 = vunpack.c.l.b16 %v3040
        %v3065 = vunpack.c.l.b16 %v3041
        %v3066 = vunpack.c.l.b16 %v3042
        %v3067 = vunpack.c.l.b16 %v3043
        %v3068 = vpack.c.b16 %v3061, %v3060
        %v3069 = vpack.c.b16 %v3063, %v3062
        %v3070 = vpack.c.b16 %v3065, %v3064
        %v3071 = vpack.c.b16 %v3067, %v3066
        %3076 = vmatprep.subr.bf16.mxu0 0
        %3077 = vmatpush1.bf16.msra.mxu0 %v3068
        %3078 = vmatprep.subr.bf16.mxu0 0
        %3079 = vmatpush1.bf16.msra.mxu0 %v3069
        %3080 = vmatprep.subr.bf16.mxu0 0
        %3081 = vmatpush1.bf16.msra.mxu0 %v3070
        %3082 = vmatprep.subr.bf16.mxu0 0
        %3083 = vmatpush1.bf16.msra.mxu0 %v3071
        %3084 = vmatprep.subr.bf16.mxu0 0
        %3085 = vmatpush1.bf16.msra.mxu0 0
        %3086 = vmatprep.subr.bf16.mxu0 0
        %3087 = vmatpush1.bf16.msra.mxu0 0
        %3088 = vmatprep.subr.bf16.mxu0 0
        %3089 = vmatpush1.bf16.msra.mxu0 0
        %3090 = vmatprep.subr.bf16.mxu0 0
        %3091 = vmatpush1.bf16.msra.mxu0 0
        %3092 = vmatprep.subr.bf16.mxu0 0
        %3093 = vmatpush1.bf16.msra.mxu0 0
        %3094 = vmatprep.subr.bf16.mxu0 0
        %3095 = vmatpush1.bf16.msra.mxu0 0
        %3096 = vmatprep.subr.bf16.mxu0 0
        %3097 = vmatpush1.bf16.msra.mxu0 0
        %3098 = vmatprep.subr.bf16.mxu0 0
        %3099 = vmatpush1.bf16.msra.mxu0 0
        %3100 = vmatprep.subr.bf16.mxu0 0
        %3101 = vmatpush1.bf16.msra.mxu0 0
        %3102 = vmatprep.subr.bf16.mxu0 0
        %3103 = vmatpush1.bf16.msra.mxu0 0
        %3104 = vmatprep.subr.bf16.mxu0 0
        %3105 = vmatpush1.bf16.msra.mxu0 0
        %3106 = vmatprep.subr.bf16.mxu0 0
        %3107 = vmatpush1.bf16.msra.mxu0 0
        %3108 = vmatprep.mubr.bf16.mxu0 0
        %3109 = vmatmul.mubr.bf16.gmra.mrb[0].mxu0 %v2776
        %v3110 = vpop.f32.mrb[0].mxu0
        %v3111 = vadd.f32 %v3050, %v3110
        %v3112 = vpop.f32.mrb[0].mxu0
        %v3113 = vpop.f32.mrb[0].mxu0
        %v3114 = vadd.f32 %v3050, %v3113
        %v3115 = vpop.f32.mrb[0].mxu0
        %3116 = vdwg.mxu0
        %s3117 = scalar_lea.vmem %s5, 160
        %v3118 = vld [vmem:[%s3117] sm:$0xf]
        %v3119 = vld [vmem:[%s3117 + $0x4] sm:$0xf]
        %v3120 = vld [vmem:[%s3117 + $0x8] sm:$0xf]
        %v3121 = vld [vmem:[%s3117 + $0xc] sm:$0xf]
        %v3122 = vld [vmem:[%s3117 + $0x10] sm:$0xf]
        %v3123 = vld [vmem:[%s3117 + $0x14] sm:$0xf]
        %v3124 = vld [vmem:[%s3117 + $0x18] sm:$0xf]
        %v3125 = vld [vmem:[%s3117 + $0x1c] sm:$0xf]
        %s3126 = scalar_lea.vmem %s8, 5
        %v3127 = vld [vmem:[%s3126] sm:$0x1]
        %v3129 = vlaneseq
        %v3130 = vshrl.u32 %v3129, 7
        %v3131 = vsub.s32 0, %v3130
        %v3132 = vrot.slane %v3127, %v3131
        %v3142 = vunpack.c.l.b16 %v3118
        %v3143 = vunpack.c.l.b16 %v3119
        %v3144 = vunpack.c.l.b16 %v3120
        %v3145 = vunpack.c.l.b16 %v3121
        %v3146 = vunpack.c.l.b16 %v3122
        %v3147 = vunpack.c.l.b16 %v3123
        %v3148 = vunpack.c.l.b16 %v3124
        %v3149 = vunpack.c.l.b16 %v3125
        %v3150 = vpack.c.b16 %v3143, %v3142
        %v3151 = vpack.c.b16 %v3145, %v3144
        %v3152 = vpack.c.b16 %v3147, %v3146
        %v3153 = vpack.c.b16 %v3149, %v3148
        %3158 = vmatprep.subr.bf16.mxu0 0
        %3159 = vmatpush1.bf16.msra.mxu0 %v3150
        %3160 = vmatprep.subr.bf16.mxu0 0
        %3161 = vmatpush1.bf16.msra.mxu0 %v3151
        %3162 = vmatprep.subr.bf16.mxu0 0
        %3163 = vmatpush1.bf16.msra.mxu0 %v3152
        %3164 = vmatprep.subr.bf16.mxu0 0
        %3165 = vmatpush1.bf16.msra.mxu0 %v3153
        %3166 = vmatprep.subr.bf16.mxu0 0
        %3167 = vmatpush1.bf16.msra.mxu0 0
        %3168 = vmatprep.subr.bf16.mxu0 0
        %3169 = vmatpush1.bf16.msra.mxu0 0
        %3170 = vmatprep.subr.bf16.mxu0 0
        %3171 = vmatpush1.bf16.msra.mxu0 0
        %3172 = vmatprep.subr.bf16.mxu0 0
        %3173 = vmatpush1.bf16.msra.mxu0 0
        %3174 = vmatprep.subr.bf16.mxu0 0
        %3175 = vmatpush1.bf16.msra.mxu0 0
        %3176 = vmatprep.subr.bf16.mxu0 0
        %3177 = vmatpush1.bf16.msra.mxu0 0
        %3178 = vmatprep.subr.bf16.mxu0 0
        %3179 = vmatpush1.bf16.msra.mxu0 0
        %3180 = vmatprep.subr.bf16.mxu0 0
        %3181 = vmatpush1.bf16.msra.mxu0 0
        %3182 = vmatprep.subr.bf16.mxu0 0
        %3183 = vmatpush1.bf16.msra.mxu0 0
        %3184 = vmatprep.subr.bf16.mxu0 0
        %3185 = vmatpush1.bf16.msra.mxu0 0
        %3186 = vmatprep.subr.bf16.mxu0 0
        %3187 = vmatpush1.bf16.msra.mxu0 0
        %3188 = vmatprep.subr.bf16.mxu0 0
        %3189 = vmatpush1.bf16.msra.mxu0 0
        %3190 = vmatprep.mubr.bf16.mxu0 0
        %3191 = vmatmul.mubr.bf16.gmra.mrb[0].mxu0 %v2776
        %v3192 = vpop.f32.mrb[0].mxu0
        %v3193 = vadd.f32 %v3132, %v3192
        %v3194 = vpop.f32.mrb[0].mxu0
        %v3195 = vpop.f32.mrb[0].mxu0
        %v3196 = vadd.f32 %v3132, %v3195
        %v3197 = vpop.f32.mrb[0].mxu0
        %3198 = vdwg.mxu0
        %s3199 = scalar_lea.vmem %s6, 160
        %v3200 = vld [vmem:[%s3199] sm:$0xf]
        %v3201 = vld [vmem:[%s3199 + $0x4] sm:$0xf]
        %v3202 = vld [vmem:[%s3199 + $0x8] sm:$0xf]
        %v3203 = vld [vmem:[%s3199 + $0xc] sm:$0xf]
        %v3204 = vld [vmem:[%s3199 + $0x10] sm:$0xf]
        %v3205 = vld [vmem:[%s3199 + $0x14] sm:$0xf]
        %v3206 = vld [vmem:[%s3199 + $0x18] sm:$0xf]
        %v3207 = vld [vmem:[%s3199 + $0x1c] sm:$0xf]
        %s3208 = scalar_lea.vmem %s9, 5
        %v3209 = vld [vmem:[%s3208] sm:$0x1]
        %v3211 = vlaneseq
        %v3212 = vshrl.u32 %v3211, 7
        %v3213 = vsub.s32 0, %v3212
        %v3214 = vrot.slane %v3209, %v3213
        %v3224 = vunpack.c.l.b16 %v3200
        %v3225 = vunpack.c.l.b16 %v3201
        %v3226 = vunpack.c.l.b16 %v3202
        %v3227 = vunpack.c.l.b16 %v3203
        %v3228 = vunpack.c.l.b16 %v3204
        %v3229 = vunpack.c.l.b16 %v3205
        %v3230 = vunpack.c.l.b16 %v3206
        %v3231 = vunpack.c.l.b16 %v3207
        %v3232 = vpack.c.b16 %v3225, %v3224
        %v3233 = vpack.c.b16 %v3227, %v3226
        %v3234 = vpack.c.b16 %v3229, %v3228
        %v3235 = vpack.c.b16 %v3231, %v3230
        %3240 = vmatprep.subr.bf16.mxu0 0
        %3241 = vmatpush1.bf16.msra.mxu0 %v3232
        %3242 = vmatprep.subr.bf16.mxu0 0
        %3243 = vmatpush1.bf16.msra.mxu0 %v3233
        %3244 = vmatprep.subr.bf16.mxu0 0
        %3245 = vmatpush1.bf16.msra.mxu0 %v3234
        %3246 = vmatprep.subr.bf16.mxu0 0
        %3247 = vmatpush1.bf16.msra.mxu0 %v3235
        %3248 = vmatprep.subr.bf16.mxu0 0
        %3249 = vmatpush1.bf16.msra.mxu0 0
        %3250 = vmatprep.subr.bf16.mxu0 0
        %3251 = vmatpush1.bf16.msra.mxu0 0
        %3252 = vmatprep.subr.bf16.mxu0 0
        %3253 = vmatpush1.bf16.msra.mxu0 0
        %3254 = vmatprep.subr.bf16.mxu0 0
        %3255 = vmatpush1.bf16.msra.mxu0 0
        %3256 = vmatprep.subr.bf16.mxu0 0
        %3257 = vmatpush1.bf16.msra.mxu0 0
        %3258 = vmatprep.subr.bf16.mxu0 0
        %3259 = vmatpush1.bf16.msra.mxu0 0
        %3260 = vmatprep.subr.bf16.mxu0 0
        %3261 = vmatpush1.bf16.msra.mxu0 0
        %3262 = vmatprep.subr.bf16.mxu0 0
        %3263 = vmatpush1.bf16.msra.mxu0 0
        %3264 = vmatprep.subr.bf16.mxu0 0
        %3265 = vmatpush1.bf16.msra.mxu0 0
        %3266 = vmatprep.subr.bf16.mxu0 0
        %3267 = vmatpush1.bf16.msra.mxu0 0
        %3268 = vmatprep.subr.bf16.mxu0 0
        %3269 = vmatpush1.bf16.msra.mxu0 0
        %3270 = vmatprep.subr.bf16.mxu0 0
        %3271 = vmatpush1.bf16.msra.mxu0 0
        %3272 = vmatprep.mubr.bf16.mxu0 0
        %3273 = vmatmul.mubr.bf16.gmra.mrb[0].mxu0 %v2776
        %v3274 = vpop.f32.mrb[0].mxu0
        %v3275 = vadd.f32 %v3214, %v3274
        %v3276 = vpop.f32.mrb[0].mxu0
        %v3277 = vpop.f32.mrb[0].mxu0
        %v3278 = vadd.f32 %v3214, %v3277
        %v3279 = vpop.f32.mrb[0].mxu0
        %3280 = vdwg.mxu0
        %v3281 = vmul.f32 %v3111, 0.25
        %v3282 = vmul.f32 %v3114, 0.25
        %v3283 = vpack.c.bf16 %v3282, %v3281
        %v3284 = vpack.c.bf16 %v3196, %v3193
        %v3286 = vsel %vm1049, %v3283, 0
        %v3289 = vsel %vm1049, %v3284, 0
        %3291 = vmatprep.subr.bf16.mxu0 0
        %3292 = vmatpush1.bf16.xpose.msra.mxu0 %v3289
        %3293 = vmatprep.subr.bf16.mxu0 0
        %3294 = vmatpush1.bf16.xpose.msra.mxu0 0
        %3295 = vmatprep.subr.bf16.mxu0 0
        %3296 = vmatpush1.bf16.xpose.msra.mxu0 0
        %3297 = vmatprep.subr.bf16.mxu0 0
        %3298 = vmatpush1.bf16.xpose.msra.mxu0 0
        %3299 = vmatprep.subr.bf16.mxu0 0
        %3300 = vmatpush1.bf16.xpose.msra.mxu0 0
        %3301 = vmatprep.subr.bf16.mxu0 0
        %3302 = vmatpush1.bf16.xpose.msra.mxu0 0
        %3303 = vmatprep.subr.bf16.mxu0 0
        %3304 = vmatpush1.bf16.xpose.msra.mxu0 0
        %3305 = vmatprep.subr.bf16.mxu0 0
        %3306 = vmatpush1.bf16.xpose.msra.mxu0 0
        %3307 = vmatprep.subr.bf16.mxu0 0
        %3308 = vmatpush1.bf16.xpose.msra.mxu0 0
        %3309 = vmatprep.subr.bf16.mxu0 0
        %3310 = vmatpush1.bf16.xpose.msra.mxu0 0
        %3311 = vmatprep.subr.bf16.mxu0 0
        %3312 = vmatpush1.bf16.xpose.msra.mxu0 0
        %3313 = vmatprep.subr.bf16.mxu0 0
        %3314 = vmatpush1.bf16.xpose.msra.mxu0 0
        %3315 = vmatprep.subr.bf16.mxu0 0
        %3316 = vmatpush1.bf16.xpose.msra.mxu0 0
        %3317 = vmatprep.subr.bf16.mxu0 0
        %3318 = vmatpush1.bf16.xpose.msra.mxu0 0
        %3319 = vmatprep.subr.bf16.mxu0 0
        %3320 = vmatpush1.bf16.xpose.msra.mxu0 0
        %3321 = vmatprep.subr.bf16.mxu0 0
        %3322 = vmatpush1.bf16.xpose.msra.mxu0 0
        %3323 = vmatprep.mubr.bf16.mxu0 0
        %3324 = vmatmul.mubr.bf16.gmra.mrb[0].mxu0 %v3286
        %v3325 = vpop.f32.mrb[0].mxu0
        %v3326 = vadd.f32 0.0, %v3325
        %v3327 = vpop.f32.mrb[0].mxu0
        %v3328 = vpop.f32.mrb[0].mxu0
        %v3329 = vadd.f32 0.0, %v3328
        %v3330 = vpop.f32.mrb[0].mxu0
        %3331 = vdwg.mxu0
        %v3332 = vpack.c.bf16 %v3278, %v3275
        %s3333 = scalar_lea.vmem %s4, 192
        %v3334 = vld [vmem:[%s3333] sm:$0xf]
        %v3335 = vld [vmem:[%s3333 + $0x4] sm:$0xf]
        %v3336 = vld [vmem:[%s3333 + $0x8] sm:$0xf]
        %v3337 = vld [vmem:[%s3333 + $0xc] sm:$0xf]
        %v3338 = vld [vmem:[%s3333 + $0x10] sm:$0xf]
        %v3339 = vld [vmem:[%s3333 + $0x14] sm:$0xf]
        %v3340 = vld [vmem:[%s3333 + $0x18] sm:$0xf]
        %v3341 = vld [vmem:[%s3333 + $0x1c] sm:$0xf]
        %s3342 = scalar_lea.vmem %s7, 6
        %v3343 = vld [vmem:[%s3342] sm:$0x1]
        %v3345 = vlaneseq
        %v3346 = vshrl.u32 %v3345, 7
        %v3347 = vsub.s32 0, %v3346
        %v3348 = vrot.slane %v3343, %v3347
        %v3358 = vunpack.c.l.b16 %v3334
        %v3359 = vunpack.c.l.b16 %v3335
        %v3360 = vunpack.c.l.b16 %v3336
        %v3361 = vunpack.c.l.b16 %v3337
        %v3362 = vunpack.c.l.b16 %v3338
        %v3363 = vunpack.c.l.b16 %v3339
        %v3364 = vunpack.c.l.b16 %v3340
        %v3365 = vunpack.c.l.b16 %v3341
        %v3366 = vpack.c.b16 %v3359, %v3358
        %v3367 = vpack.c.b16 %v3361, %v3360
        %v3368 = vpack.c.b16 %v3363, %v3362
        %v3369 = vpack.c.b16 %v3365, %v3364
        %3374 = vmatprep.subr.bf16.mxu0 0
        %3375 = vmatpush1.bf16.msra.mxu0 %v3366
        %3376 = vmatprep.subr.bf16.mxu0 0
        %3377 = vmatpush1.bf16.msra.mxu0 %v3367
        %3378 = vmatprep.subr.bf16.mxu0 0
        %3379 = vmatpush1.bf16.msra.mxu0 %v3368
        %3380 = vmatprep.subr.bf16.mxu0 0
        %3381 = vmatpush1.bf16.msra.mxu0 %v3369
        %3382 = vmatprep.subr.bf16.mxu0 0
        %3383 = vmatpush1.bf16.msra.mxu0 0
        %3384 = vmatprep.subr.bf16.mxu0 0
        %3385 = vmatpush1.bf16.msra.mxu0 0
        %3386 = vmatprep.subr.bf16.mxu0 0
        %3387 = vmatpush1.bf16.msra.mxu0 0
        %3388 = vmatprep.subr.bf16.mxu0 0
        %3389 = vmatpush1.bf16.msra.mxu0 0
        %3390 = vmatprep.subr.bf16.mxu0 0
        %3391 = vmatpush1.bf16.msra.mxu0 0
        %3392 = vmatprep.subr.bf16.mxu0 0
        %3393 = vmatpush1.bf16.msra.mxu0 0
        %3394 = vmatprep.subr.bf16.mxu0 0
        %3395 = vmatpush1.bf16.msra.mxu0 0
        %3396 = vmatprep.subr.bf16.mxu0 0
        %3397 = vmatpush1.bf16.msra.mxu0 0
        %3398 = vmatprep.subr.bf16.mxu0 0
        %3399 = vmatpush1.bf16.msra.mxu0 0
        %3400 = vmatprep.subr.bf16.mxu0 0
        %3401 = vmatpush1.bf16.msra.mxu0 0
        %3402 = vmatprep.subr.bf16.mxu0 0
        %3403 = vmatpush1.bf16.msra.mxu0 0
        %3404 = vmatprep.subr.bf16.mxu0 0
        %3405 = vmatpush1.bf16.msra.mxu0 0
        %3406 = vmatprep.mubr.bf16.mxu0 0
        %3407 = vmatmul.mubr.bf16.gmra.mrb[0].mxu0 %v2776
        %v3408 = vpop.f32.mrb[0].mxu0
        %v3409 = vadd.f32 %v3348, %v3408
        %v3410 = vpop.f32.mrb[0].mxu0
        %v3411 = vpop.f32.mrb[0].mxu0
        %v3412 = vadd.f32 %v3348, %v3411
        %v3413 = vpop.f32.mrb[0].mxu0
        %3414 = vdwg.mxu0
        %s3415 = scalar_lea.vmem %s5, 192
        %v3416 = vld [vmem:[%s3415] sm:$0xf]
        %v3417 = vld [vmem:[%s3415 + $0x4] sm:$0xf]
        %v3418 = vld [vmem:[%s3415 + $0x8] sm:$0xf]
        %v3419 = vld [vmem:[%s3415 + $0xc] sm:$0xf]
        %v3420 = vld [vmem:[%s3415 + $0x10] sm:$0xf]
        %v3421 = vld [vmem:[%s3415 + $0x14] sm:$0xf]
        %v3422 = vld [vmem:[%s3415 + $0x18] sm:$0xf]
        %v3423 = vld [vmem:[%s3415 + $0x1c] sm:$0xf]
        %s3424 = scalar_lea.vmem %s8, 6
        %v3425 = vld [vmem:[%s3424] sm:$0x1]
        %v3427 = vlaneseq
        %v3428 = vshrl.u32 %v3427, 7
        %v3429 = vsub.s32 0, %v3428
        %v3430 = vrot.slane %v3425, %v3429
        %v3440 = vunpack.c.l.b16 %v3416
        %v3441 = vunpack.c.l.b16 %v3417
        %v3442 = vunpack.c.l.b16 %v3418
        %v3443 = vunpack.c.l.b16 %v3419
        %v3444 = vunpack.c.l.b16 %v3420
        %v3445 = vunpack.c.l.b16 %v3421
        %v3446 = vunpack.c.l.b16 %v3422
        %v3447 = vunpack.c.l.b16 %v3423
        %v3448 = vpack.c.b16 %v3441, %v3440
        %v3449 = vpack.c.b16 %v3443, %v3442
        %v3450 = vpack.c.b16 %v3445, %v3444
        %v3451 = vpack.c.b16 %v3447, %v3446
        %3456 = vmatprep.subr.bf16.mxu0 0
        %3457 = vmatpush1.bf16.msra.mxu0 %v3448
        %3458 = vmatprep.subr.bf16.mxu0 0
        %3459 = vmatpush1.bf16.msra.mxu0 %v3449
        %3460 = vmatprep.subr.bf16.mxu0 0
        %3461 = vmatpush1.bf16.msra.mxu0 %v3450
        %3462 = vmatprep.subr.bf16.mxu0 0
        %3463 = vmatpush1.bf16.msra.mxu0 %v3451
        %3464 = vmatprep.subr.bf16.mxu0 0
        %3465 = vmatpush1.bf16.msra.mxu0 0
        %3466 = vmatprep.subr.bf16.mxu0 0
        %3467 = vmatpush1.bf16.msra.mxu0 0
        %3468 = vmatprep.subr.bf16.mxu0 0
        %3469 = vmatpush1.bf16.msra.mxu0 0
        %3470 = vmatprep.subr.bf16.mxu0 0
        %3471 = vmatpush1.bf16.msra.mxu0 0
        %3472 = vmatprep.subr.bf16.mxu0 0
        %3473 = vmatpush1.bf16.msra.mxu0 0
        %3474 = vmatprep.subr.bf16.mxu0 0
        %3475 = vmatpush1.bf16.msra.mxu0 0
        %3476 = vmatprep.subr.bf16.mxu0 0
        %3477 = vmatpush1.bf16.msra.mxu0 0
        %3478 = vmatprep.subr.bf16.mxu0 0
        %3479 = vmatpush1.bf16.msra.mxu0 0
        %3480 = vmatprep.subr.bf16.mxu0 0
        %3481 = vmatpush1.bf16.msra.mxu0 0
        %3482 = vmatprep.subr.bf16.mxu0 0
        %3483 = vmatpush1.bf16.msra.mxu0 0
        %3484 = vmatprep.subr.bf16.mxu0 0
        %3485 = vmatpush1.bf16.msra.mxu0 0
        %3486 = vmatprep.subr.bf16.mxu0 0
        %3487 = vmatpush1.bf16.msra.mxu0 0
        %3488 = vmatprep.mubr.bf16.mxu0 0
        %3489 = vmatmul.mubr.bf16.gmra.mrb[0].mxu0 %v2776
        %v3490 = vpop.f32.mrb[0].mxu0
        %v3491 = vadd.f32 %v3430, %v3490
        %v3492 = vpop.f32.mrb[0].mxu0
        %v3493 = vpop.f32.mrb[0].mxu0
        %v3494 = vadd.f32 %v3430, %v3493
        %v3495 = vpop.f32.mrb[0].mxu0
        %3496 = vdwg.mxu0
        %s3497 = scalar_lea.vmem %s6, 192
        %v3498 = vld [vmem:[%s3497] sm:$0xf]
        %v3499 = vld [vmem:[%s3497 + $0x4] sm:$0xf]
        %v3500 = vld [vmem:[%s3497 + $0x8] sm:$0xf]
        %v3501 = vld [vmem:[%s3497 + $0xc] sm:$0xf]
        %v3502 = vld [vmem:[%s3497 + $0x10] sm:$0xf]
        %v3503 = vld [vmem:[%s3497 + $0x14] sm:$0xf]
        %v3504 = vld [vmem:[%s3497 + $0x18] sm:$0xf]
        %v3505 = vld [vmem:[%s3497 + $0x1c] sm:$0xf]
        %s3506 = scalar_lea.vmem %s9, 6
        %v3507 = vld [vmem:[%s3506] sm:$0x1]
        %v3509 = vlaneseq
        %v3510 = vshrl.u32 %v3509, 7
        %v3511 = vsub.s32 0, %v3510
        %v3512 = vrot.slane %v3507, %v3511
        %v3522 = vunpack.c.l.b16 %v3498
        %v3523 = vunpack.c.l.b16 %v3499
        %v3524 = vunpack.c.l.b16 %v3500
        %v3525 = vunpack.c.l.b16 %v3501
        %v3526 = vunpack.c.l.b16 %v3502
        %v3527 = vunpack.c.l.b16 %v3503
        %v3528 = vunpack.c.l.b16 %v3504
        %v3529 = vunpack.c.l.b16 %v3505
        %v3530 = vpack.c.b16 %v3523, %v3522
        %v3531 = vpack.c.b16 %v3525, %v3524
        %v3532 = vpack.c.b16 %v3527, %v3526
        %v3533 = vpack.c.b16 %v3529, %v3528
        %3538 = vmatprep.subr.bf16.mxu0 0
        %3539 = vmatpush1.bf16.msra.mxu0 %v3530
        %3540 = vmatprep.subr.bf16.mxu0 0
        %3541 = vmatpush1.bf16.msra.mxu0 %v3531
        %3542 = vmatprep.subr.bf16.mxu0 0
        %3543 = vmatpush1.bf16.msra.mxu0 %v3532
        %3544 = vmatprep.subr.bf16.mxu0 0
        %3545 = vmatpush1.bf16.msra.mxu0 %v3533
        %3546 = vmatprep.subr.bf16.mxu0 0
        %3547 = vmatpush1.bf16.msra.mxu0 0
        %3548 = vmatprep.subr.bf16.mxu0 0
        %3549 = vmatpush1.bf16.msra.mxu0 0
        %3550 = vmatprep.subr.bf16.mxu0 0
        %3551 = vmatpush1.bf16.msra.mxu0 0
        %3552 = vmatprep.subr.bf16.mxu0 0
        %3553 = vmatpush1.bf16.msra.mxu0 0
        %3554 = vmatprep.subr.bf16.mxu0 0
        %3555 = vmatpush1.bf16.msra.mxu0 0
        %3556 = vmatprep.subr.bf16.mxu0 0
        %3557 = vmatpush1.bf16.msra.mxu0 0
        %3558 = vmatprep.subr.bf16.mxu0 0
        %3559 = vmatpush1.bf16.msra.mxu0 0
        %3560 = vmatprep.subr.bf16.mxu0 0
        %3561 = vmatpush1.bf16.msra.mxu0 0
        %3562 = vmatprep.subr.bf16.mxu0 0
        %3563 = vmatpush1.bf16.msra.mxu0 0
        %3564 = vmatprep.subr.bf16.mxu0 0
        %3565 = vmatpush1.bf16.msra.mxu0 0
        %3566 = vmatprep.subr.bf16.mxu0 0
        %3567 = vmatpush1.bf16.msra.mxu0 0
        %3568 = vmatprep.subr.bf16.mxu0 0
        %3569 = vmatpush1.bf16.msra.mxu0 0
        %3570 = vmatprep.mubr.bf16.mxu0 0
        %3571 = vmatmul.mubr.bf16.gmra.mrb[0].mxu0 %v2776
        %v3572 = vpop.f32.mrb[0].mxu0
        %v3573 = vadd.f32 %v3512, %v3572
        %v3574 = vpop.f32.mrb[0].mxu0
        %v3575 = vpop.f32.mrb[0].mxu0
        %v3576 = vadd.f32 %v3512, %v3575
        %v3577 = vpop.f32.mrb[0].mxu0
        %3578 = vdwg.mxu0
        %v3579 = vmul.f32 %v3409, 0.25
        %v3580 = vmul.f32 %v3412, 0.25
        %v3581 = vpack.c.bf16 %v3580, %v3579
        %v3582 = vpack.c.bf16 %v3494, %v3491
        %v3584 = vsel %vm1049, %v3581, 0
        %v3587 = vsel %vm1049, %v3582, 0
        %3589 = vmatprep.subr.bf16.mxu0 0
        %3590 = vmatpush1.bf16.xpose.msra.mxu0 %v3587
        %3591 = vmatprep.subr.bf16.mxu0 0
        %3592 = vmatpush1.bf16.xpose.msra.mxu0 0
        %3593 = vmatprep.subr.bf16.mxu0 0
        %3594 = vmatpush1.bf16.xpose.msra.mxu0 0
        %3595 = vmatprep.subr.bf16.mxu0 0
        %3596 = vmatpush1.bf16.xpose.msra.mxu0 0
        %3597 = vmatprep.subr.bf16.mxu0 0
        %3598 = vmatpush1.bf16.xpose.msra.mxu0 0
        %3599 = vmatprep.subr.bf16.mxu0 0
        %3600 = vmatpush1.bf16.xpose.msra.mxu0 0
        %3601 = vmatprep.subr.bf16.mxu0 0
        %3602 = vmatpush1.bf16.xpose.msra.mxu0 0
        %3603 = vmatprep.subr.bf16.mxu0 0
        %3604 = vmatpush1.bf16.xpose.msra.mxu0 0
        %3605 = vmatprep.subr.bf16.mxu0 0
        %3606 = vmatpush1.bf16.xpose.msra.mxu0 0
        %3607 = vmatprep.subr.bf16.mxu0 0
        %3608 = vmatpush1.bf16.xpose.msra.mxu0 0
        %3609 = vmatprep.subr.bf16.mxu0 0
        %3610 = vmatpush1.bf16.xpose.msra.mxu0 0
        %3611 = vmatprep.subr.bf16.mxu0 0
        %3612 = vmatpush1.bf16.xpose.msra.mxu0 0
        %3613 = vmatprep.subr.bf16.mxu0 0
        %3614 = vmatpush1.bf16.xpose.msra.mxu0 0
        %3615 = vmatprep.subr.bf16.mxu0 0
        %3616 = vmatpush1.bf16.xpose.msra.mxu0 0
        %3617 = vmatprep.subr.bf16.mxu0 0
        %3618 = vmatpush1.bf16.xpose.msra.mxu0 0
        %3619 = vmatprep.subr.bf16.mxu0 0
        %3620 = vmatpush1.bf16.xpose.msra.mxu0 0
        %3621 = vmatprep.mubr.bf16.mxu0 0
        %3622 = vmatmul.mubr.bf16.gmra.mrb[0].mxu0 %v3584
        %v3623 = vpop.f32.mrb[0].mxu0
        %v3624 = vadd.f32 0.0, %v3623
        %v3625 = vpop.f32.mrb[0].mxu0
        %v3626 = vpop.f32.mrb[0].mxu0
        %v3627 = vadd.f32 0.0, %v3626
        %v3628 = vpop.f32.mrb[0].mxu0
        %3629 = vdwg.mxu0
        %v3630 = vpack.c.bf16 %v3576, %v3573
        %s3631 = scalar_lea.vmem %s4, 224
        %v3632 = vld [vmem:[%s3631] sm:$0xf]
        %v3633 = vld [vmem:[%s3631 + $0x4] sm:$0xf]
        %v3634 = vld [vmem:[%s3631 + $0x8] sm:$0xf]
        %v3635 = vld [vmem:[%s3631 + $0xc] sm:$0xf]
        %v3636 = vld [vmem:[%s3631 + $0x10] sm:$0xf]
        %v3637 = vld [vmem:[%s3631 + $0x14] sm:$0xf]
        %v3638 = vld [vmem:[%s3631 + $0x18] sm:$0xf]
        %v3639 = vld [vmem:[%s3631 + $0x1c] sm:$0xf]
        %s3640 = scalar_lea.vmem %s7, 7
        %v3641 = vld [vmem:[%s3640] sm:$0x1]
        %v3643 = vlaneseq
        %v3644 = vshrl.u32 %v3643, 7
        %v3645 = vsub.s32 0, %v3644
        %v3646 = vrot.slane %v3641, %v3645
        %v3656 = vunpack.c.l.b16 %v3632
        %v3657 = vunpack.c.l.b16 %v3633
        %v3658 = vunpack.c.l.b16 %v3634
        %v3659 = vunpack.c.l.b16 %v3635
        %v3660 = vunpack.c.l.b16 %v3636
        %v3661 = vunpack.c.l.b16 %v3637
        %v3662 = vunpack.c.l.b16 %v3638
        %v3663 = vunpack.c.l.b16 %v3639
        %v3664 = vpack.c.b16 %v3657, %v3656
        %v3665 = vpack.c.b16 %v3659, %v3658
        %v3666 = vpack.c.b16 %v3661, %v3660
        %v3667 = vpack.c.b16 %v3663, %v3662
        %3672 = vmatprep.subr.bf16.mxu0 0
        %3673 = vmatpush1.bf16.msra.mxu0 %v3664
        %3674 = vmatprep.subr.bf16.mxu0 0
        %3675 = vmatpush1.bf16.msra.mxu0 %v3665
        %3676 = vmatprep.subr.bf16.mxu0 0
        %3677 = vmatpush1.bf16.msra.mxu0 %v3666
        %3678 = vmatprep.subr.bf16.mxu0 0
        %3679 = vmatpush1.bf16.msra.mxu0 %v3667
        %3680 = vmatprep.subr.bf16.mxu0 0
        %3681 = vmatpush1.bf16.msra.mxu0 0
        %3682 = vmatprep.subr.bf16.mxu0 0
        %3683 = vmatpush1.bf16.msra.mxu0 0
        %3684 = vmatprep.subr.bf16.mxu0 0
        %3685 = vmatpush1.bf16.msra.mxu0 0
        %3686 = vmatprep.subr.bf16.mxu0 0
        %3687 = vmatpush1.bf16.msra.mxu0 0
        %3688 = vmatprep.subr.bf16.mxu0 0
        %3689 = vmatpush1.bf16.msra.mxu0 0
        %3690 = vmatprep.subr.bf16.mxu0 0
        %3691 = vmatpush1.bf16.msra.mxu0 0
        %3692 = vmatprep.subr.bf16.mxu0 0
        %3693 = vmatpush1.bf16.msra.mxu0 0
        %3694 = vmatprep.subr.bf16.mxu0 0
        %3695 = vmatpush1.bf16.msra.mxu0 0
        %3696 = vmatprep.subr.bf16.mxu0 0
        %3697 = vmatpush1.bf16.msra.mxu0 0
        %3698 = vmatprep.subr.bf16.mxu0 0
        %3699 = vmatpush1.bf16.msra.mxu0 0
        %3700 = vmatprep.subr.bf16.mxu0 0
        %3701 = vmatpush1.bf16.msra.mxu0 0
        %3702 = vmatprep.subr.bf16.mxu0 0
        %3703 = vmatpush1.bf16.msra.mxu0 0
        %3704 = vmatprep.mubr.bf16.mxu0 0
        %3705 = vmatmul.mubr.bf16.gmra.mrb[0].mxu0 %v2776
        %v3706 = vpop.f32.mrb[0].mxu0
        %v3707 = vadd.f32 %v3646, %v3706
        %v3708 = vpop.f32.mrb[0].mxu0
        %v3709 = vpop.f32.mrb[0].mxu0
        %v3710 = vadd.f32 %v3646, %v3709
        %v3711 = vpop.f32.mrb[0].mxu0
        %3712 = vdwg.mxu0
        %s3713 = scalar_lea.vmem %s5, 224
        %v3714 = vld [vmem:[%s3713] sm:$0xf]
        %v3715 = vld [vmem:[%s3713 + $0x4] sm:$0xf]
        %v3716 = vld [vmem:[%s3713 + $0x8] sm:$0xf]
        %v3717 = vld [vmem:[%s3713 + $0xc] sm:$0xf]
        %v3718 = vld [vmem:[%s3713 + $0x10] sm:$0xf]
        %v3719 = vld [vmem:[%s3713 + $0x14] sm:$0xf]
        %v3720 = vld [vmem:[%s3713 + $0x18] sm:$0xf]
        %v3721 = vld [vmem:[%s3713 + $0x1c] sm:$0xf]
        %s3722 = scalar_lea.vmem %s8, 7
        %v3723 = vld [vmem:[%s3722] sm:$0x1]
        %v3725 = vlaneseq
        %v3726 = vshrl.u32 %v3725, 7
        %v3727 = vsub.s32 0, %v3726
        %v3728 = vrot.slane %v3723, %v3727
        %v3738 = vunpack.c.l.b16 %v3714
        %v3739 = vunpack.c.l.b16 %v3715
        %v3740 = vunpack.c.l.b16 %v3716
        %v3741 = vunpack.c.l.b16 %v3717
        %v3742 = vunpack.c.l.b16 %v3718
        %v3743 = vunpack.c.l.b16 %v3719
        %v3744 = vunpack.c.l.b16 %v3720
        %v3745 = vunpack.c.l.b16 %v3721
        %v3746 = vpack.c.b16 %v3739, %v3738
        %v3747 = vpack.c.b16 %v3741, %v3740
        %v3748 = vpack.c.b16 %v3743, %v3742
        %v3749 = vpack.c.b16 %v3745, %v3744
        %3754 = vmatprep.subr.bf16.mxu0 0
        %3755 = vmatpush1.bf16.msra.mxu0 %v3746
        %3756 = vmatprep.subr.bf16.mxu0 0
        %3757 = vmatpush1.bf16.msra.mxu0 %v3747
        %3758 = vmatprep.subr.bf16.mxu0 0
        %3759 = vmatpush1.bf16.msra.mxu0 %v3748
        %3760 = vmatprep.subr.bf16.mxu0 0
        %3761 = vmatpush1.bf16.msra.mxu0 %v3749
        %3762 = vmatprep.subr.bf16.mxu0 0
        %3763 = vmatpush1.bf16.msra.mxu0 0
        %3764 = vmatprep.subr.bf16.mxu0 0
        %3765 = vmatpush1.bf16.msra.mxu0 0
        %3766 = vmatprep.subr.bf16.mxu0 0
        %3767 = vmatpush1.bf16.msra.mxu0 0
        %3768 = vmatprep.subr.bf16.mxu0 0
        %3769 = vmatpush1.bf16.msra.mxu0 0
        %3770 = vmatprep.subr.bf16.mxu0 0
        %3771 = vmatpush1.bf16.msra.mxu0 0
        %3772 = vmatprep.subr.bf16.mxu0 0
        %3773 = vmatpush1.bf16.msra.mxu0 0
        %3774 = vmatprep.subr.bf16.mxu0 0
        %3775 = vmatpush1.bf16.msra.mxu0 0
        %3776 = vmatprep.subr.bf16.mxu0 0
        %3777 = vmatpush1.bf16.msra.mxu0 0
        %3778 = vmatprep.subr.bf16.mxu0 0
        %3779 = vmatpush1.bf16.msra.mxu0 0
        %3780 = vmatprep.subr.bf16.mxu0 0
        %3781 = vmatpush1.bf16.msra.mxu0 0
        %3782 = vmatprep.subr.bf16.mxu0 0
        %3783 = vmatpush1.bf16.msra.mxu0 0
        %3784 = vmatprep.subr.bf16.mxu0 0
        %3785 = vmatpush1.bf16.msra.mxu0 0
        %3786 = vmatprep.mubr.bf16.mxu0 0
        %3787 = vmatmul.mubr.bf16.gmra.mrb[0].mxu0 %v2776
        %v3788 = vpop.f32.mrb[0].mxu0
        %v3789 = vadd.f32 %v3728, %v3788
        %v3790 = vpop.f32.mrb[0].mxu0
        %v3791 = vpop.f32.mrb[0].mxu0
        %v3792 = vadd.f32 %v3728, %v3791
        %v3793 = vpop.f32.mrb[0].mxu0
        %3794 = vdwg.mxu0
        %s3795 = scalar_lea.vmem %s6, 224
        %v3796 = vld [vmem:[%s3795] sm:$0xf]
        %v3797 = vld [vmem:[%s3795 + $0x4] sm:$0xf]
        %v3798 = vld [vmem:[%s3795 + $0x8] sm:$0xf]
        %v3799 = vld [vmem:[%s3795 + $0xc] sm:$0xf]
        %v3800 = vld [vmem:[%s3795 + $0x10] sm:$0xf]
        %v3801 = vld [vmem:[%s3795 + $0x14] sm:$0xf]
        %v3802 = vld [vmem:[%s3795 + $0x18] sm:$0xf]
        %v3803 = vld [vmem:[%s3795 + $0x1c] sm:$0xf]
        %s3804 = scalar_lea.vmem %s9, 7
        %v3805 = vld [vmem:[%s3804] sm:$0x1]
        %v3807 = vlaneseq
        %v3808 = vshrl.u32 %v3807, 7
        %v3809 = vsub.s32 0, %v3808
        %v3810 = vrot.slane %v3805, %v3809
        %v3820 = vunpack.c.l.b16 %v3796
        %v3821 = vunpack.c.l.b16 %v3797
        %v3822 = vunpack.c.l.b16 %v3798
        %v3823 = vunpack.c.l.b16 %v3799
        %v3824 = vunpack.c.l.b16 %v3800
        %v3825 = vunpack.c.l.b16 %v3801
        %v3826 = vunpack.c.l.b16 %v3802
        %v3827 = vunpack.c.l.b16 %v3803
        %v3828 = vpack.c.b16 %v3821, %v3820
        %v3829 = vpack.c.b16 %v3823, %v3822
        %v3830 = vpack.c.b16 %v3825, %v3824
        %v3831 = vpack.c.b16 %v3827, %v3826
        %3836 = vmatprep.subr.bf16.mxu0 0
        %3837 = vmatpush1.bf16.msra.mxu0 %v3828
        %3838 = vmatprep.subr.bf16.mxu0 0
        %3839 = vmatpush1.bf16.msra.mxu0 %v3829
        %3840 = vmatprep.subr.bf16.mxu0 0
        %3841 = vmatpush1.bf16.msra.mxu0 %v3830
        %3842 = vmatprep.subr.bf16.mxu0 0
        %3843 = vmatpush1.bf16.msra.mxu0 %v3831
        %3844 = vmatprep.subr.bf16.mxu0 0
        %3845 = vmatpush1.bf16.msra.mxu0 0
        %3846 = vmatprep.subr.bf16.mxu0 0
        %3847 = vmatpush1.bf16.msra.mxu0 0
        %3848 = vmatprep.subr.bf16.mxu0 0
        %3849 = vmatpush1.bf16.msra.mxu0 0
        %3850 = vmatprep.subr.bf16.mxu0 0
        %3851 = vmatpush1.bf16.msra.mxu0 0
        %3852 = vmatprep.subr.bf16.mxu0 0
        %3853 = vmatpush1.bf16.msra.mxu0 0
        %3854 = vmatprep.subr.bf16.mxu0 0
        %3855 = vmatpush1.bf16.msra.mxu0 0
        %3856 = vmatprep.subr.bf16.mxu0 0
        %3857 = vmatpush1.bf16.msra.mxu0 0
        %3858 = vmatprep.subr.bf16.mxu0 0
        %3859 = vmatpush1.bf16.msra.mxu0 0
        %3860 = vmatprep.subr.bf16.mxu0 0
        %3861 = vmatpush1.bf16.msra.mxu0 0
        %3862 = vmatprep.subr.bf16.mxu0 0
        %3863 = vmatpush1.bf16.msra.mxu0 0
        %3864 = vmatprep.subr.bf16.mxu0 0
        %3865 = vmatpush1.bf16.msra.mxu0 0
        %3866 = vmatprep.subr.bf16.mxu0 0
        %3867 = vmatpush1.bf16.msra.mxu0 0
        %3868 = vmatprep.mubr.bf16.mxu0 0
        %3869 = vmatmul.mubr.bf16.gmra.mrb[0].mxu0 %v2776
        %v3870 = vpop.f32.mrb[0].mxu0
        %v3871 = vadd.f32 %v3810, %v3870
        %v3872 = vpop.f32.mrb[0].mxu0
        %v3873 = vpop.f32.mrb[0].mxu0
        %v3874 = vadd.f32 %v3810, %v3873
        %v3875 = vpop.f32.mrb[0].mxu0
        %3876 = vdwg.mxu0
        %v3877 = vmul.f32 %v3707, 0.25
        %v3878 = vmul.f32 %v3710, 0.25
        %v3879 = vpack.c.bf16 %v3878, %v3877
        %v3880 = vpack.c.bf16 %v3792, %v3789
        %v3882 = vsel %vm1049, %v3879, 0
        %v3885 = vsel %vm1049, %v3880, 0
        %3887 = vmatprep.subr.bf16.mxu0 0
        %3888 = vmatpush1.bf16.xpose.msra.mxu0 %v3885
        %3889 = vmatprep.subr.bf16.mxu0 0
        %3890 = vmatpush1.bf16.xpose.msra.mxu0 0
        %3891 = vmatprep.subr.bf16.mxu0 0
        %3892 = vmatpush1.bf16.xpose.msra.mxu0 0
        %3893 = vmatprep.subr.bf16.mxu0 0
        %3894 = vmatpush1.bf16.xpose.msra.mxu0 0
        %3895 = vmatprep.subr.bf16.mxu0 0
        %3896 = vmatpush1.bf16.xpose.msra.mxu0 0
        %3897 = vmatprep.subr.bf16.mxu0 0
        %3898 = vmatpush1.bf16.xpose.msra.mxu0 0
        %3899 = vmatprep.subr.bf16.mxu0 0
        %3900 = vmatpush1.bf16.xpose.msra.mxu0 0
        %3901 = vmatprep.subr.bf16.mxu0 0
        %3902 = vmatpush1.bf16.xpose.msra.mxu0 0
        %3903 = vmatprep.subr.bf16.mxu0 0
        %3904 = vmatpush1.bf16.xpose.msra.mxu0 0
        %3905 = vmatprep.subr.bf16.mxu0 0
        %3906 = vmatpush1.bf16.xpose.msra.mxu0 0
        %3907 = vmatprep.subr.bf16.mxu0 0
        %3908 = vmatpush1.bf16.xpose.msra.mxu0 0
        %3909 = vmatprep.subr.bf16.mxu0 0
        %3910 = vmatpush1.bf16.xpose.msra.mxu0 0
        %3911 = vmatprep.subr.bf16.mxu0 0
        %3912 = vmatpush1.bf16.xpose.msra.mxu0 0
        %3913 = vmatprep.subr.bf16.mxu0 0
        %3914 = vmatpush1.bf16.xpose.msra.mxu0 0
        %3915 = vmatprep.subr.bf16.mxu0 0
        %3916 = vmatpush1.bf16.xpose.msra.mxu0 0
        %3917 = vmatprep.subr.bf16.mxu0 0
        %3918 = vmatpush1.bf16.xpose.msra.mxu0 0
        %3919 = vmatprep.mubr.bf16.mxu0 0
        %3920 = vmatmul.mubr.bf16.gmra.mrb[0].mxu0 %v3882
        %v3921 = vpop.f32.mrb[0].mxu0
        %v3922 = vadd.f32 0.0, %v3921
        %v3923 = vpop.f32.mrb[0].mxu0
        %v3924 = vpop.f32.mrb[0].mxu0
        %v3925 = vadd.f32 0.0, %v3924
        %v3926 = vpop.f32.mrb[0].mxu0
        %3927 = vdwg.mxu0
        %v3928 = vpack.c.bf16 %v3874, %v3871
        %v3929 = vadd.f32 %v3028, %v1996
        %v3930 = vadd.f32 %v3031, %v1996
        %v3931 = vadd.f32 %v3326, %v1996
        %v3932 = vadd.f32 %v3329, %v1996
        %v3933 = vadd.f32 %v3624, %v1996
        %v3934 = vadd.f32 %v3627, %v1996
        %v3935 = vadd.f32 %v3922, %v1996
        %v3936 = vadd.f32 %v3925, %v1996
        %v3937 = vsel %vm1049, %v3929, -inf
        %3938 = vmax.xlane.f32.xlu0 %v3937
        %v3939 = vpop.xlane.xlu0 %3938
        %v3940 = vsel %vm1049, %v3930, -inf
        %3941 = vmax.xlane.f32.xlu0 %v3940
        %v3942 = vpop.xlane.xlu0 %3941
        %v3943 = vsel %vm1049, %v3931, -inf
        %3944 = vmax.xlane.f32.xlu0 %v3943
        %v3945 = vpop.xlane.xlu0 %3944
        %v3946 = vsel %vm1049, %v3932, -inf
        %3947 = vmax.xlane.f32.xlu0 %v3946
        %v3948 = vpop.xlane.xlu0 %3947
        %v3949 = vsel %vm1049, %v3933, -inf
        %3950 = vmax.xlane.f32.xlu0 %v3949
        %v3951 = vpop.xlane.xlu0 %3950
        %v3952 = vsel %vm1049, %v3934, -inf
        %3953 = vmax.xlane.f32.xlu0 %v3952
        %v3954 = vpop.xlane.xlu0 %3953
        %v3955 = vsel %vm1049, %v3935, -inf
        %3956 = vmax.xlane.f32.xlu0 %v3955
        %v3957 = vpop.xlane.xlu0 %3956
        %v3958 = vsel %vm1049, %v3936, -inf
        %3959 = vmax.xlane.f32.xlu0 %v3958
        %v3960 = vpop.xlane.xlu0 %3959
        %v3961 = vsub.f32 %v3929, %v3939
        %v3962 = vsub.f32 %v3930, %v3942
        %v3963 = vsub.f32 %v3931, %v3945
        %v3964 = vsub.f32 %v3932, %v3948
        %v3965 = vsub.f32 %v3933, %v3951
        %v3966 = vsub.f32 %v3934, %v3954
        %v3967 = vsub.f32 %v3935, %v3957
        %v3968 = vsub.f32 %v3936, %v3960
        %v3969 = vmul.f32 %v3961, 1.442695
        %v3970 = vpow.pop %v3969
        %v3971 = vmul.f32 %v3962, 1.442695
        %v3972 = vpow.pop %v3971
        %v3973 = vmul.f32 %v3963, 1.442695
        %v3974 = vpow.pop %v3973
        %v3975 = vmul.f32 %v3964, 1.442695
        %v3976 = vpow.pop %v3975
        %v3977 = vmul.f32 %v3965, 1.442695
        %v3978 = vpow.pop %v3977
        %v3979 = vmul.f32 %v3966, 1.442695
        %v3980 = vpow.pop %v3979
        %v3981 = vmul.f32 %v3967, 1.442695
        %v3982 = vpow.pop %v3981
        %v3983 = vmul.f32 %v3968, 1.442695
        %v3984 = vpow.pop %v3983
        %v3985 = vsel %vm1049, %v3970, 0.0
        %3986 = vadd.xlane.f32.xlu0 %v3985
        %v3987 = vpop.xlane.xlu0 %3986
        %v3988 = vsel %vm1049, %v3972, 0.0
        %3989 = vadd.xlane.f32.xlu0 %v3988
        %v3990 = vpop.xlane.xlu0 %3989
        %v3991 = vsel %vm1049, %v3974, 0.0
        %3992 = vadd.xlane.f32.xlu0 %v3991
        %v3993 = vpop.xlane.xlu0 %3992
        %v3994 = vsel %vm1049, %v3976, 0.0
        %3995 = vadd.xlane.f32.xlu0 %v3994
        %v3996 = vpop.xlane.xlu0 %3995
        %v3997 = vsel %vm1049, %v3978, 0.0
        %3998 = vadd.xlane.f32.xlu0 %v3997
        %v3999 = vpop.xlane.xlu0 %3998
        %v4000 = vsel %vm1049, %v3980, 0.0
        %4001 = vadd.xlane.f32.xlu0 %v4000
        %v4002 = vpop.xlane.xlu0 %4001
        %v4003 = vsel %vm1049, %v3982, 0.0
        %4004 = vadd.xlane.f32.xlu0 %v4003
        %v4005 = vpop.xlane.xlu0 %4004
        %v4006 = vsel %vm1049, %v3984, 0.0
        %4007 = vadd.xlane.f32.xlu0 %v4006
        %v4008 = vpop.xlane.xlu0 %4007
        %v4009 = vrcp.pop %v3987
        %v4010 = vmul.f32 %v3970, %v4009
        %v4011 = vrcp.pop %v3990
        %v4012 = vmul.f32 %v3972, %v4011
        %v4013 = vrcp.pop %v3993
        %v4014 = vmul.f32 %v3974, %v4013
        %v4015 = vrcp.pop %v3996
        %v4016 = vmul.f32 %v3976, %v4015
        %v4017 = vrcp.pop %v3999
        %v4018 = vmul.f32 %v3978, %v4017
        %v4019 = vrcp.pop %v4002
        %v4020 = vmul.f32 %v3980, %v4019
        %v4021 = vrcp.pop %v4005
        %v4022 = vmul.f32 %v3982, %v4021
        %v4023 = vrcp.pop %v4008
        %v4024 = vmul.f32 %v3984, %v4023
        %v4025 = vpack.c.bf16 %v4012, %v4010
        %v4027 = vsel %vm1049, %v4025, 0
        %4029 = vmatprep.subr.bf16.mxu0 0
        %4030 = vmatpush1.bf16.msra.mxu0 %v3034
        %4031 = vmatprep.subr.bf16.mxu0 0
        %4032 = vmatpush1.bf16.msra.mxu0 0
        %4033 = vmatprep.subr.bf16.mxu0 0
        %4034 = vmatpush1.bf16.msra.mxu0 0
        %4035 = vmatprep.subr.bf16.mxu0 0
        %4036 = vmatpush1.bf16.msra.mxu0 0
        %4037 = vmatprep.subr.bf16.mxu0 0
        %4038 = vmatpush1.bf16.msra.mxu0 0
        %4039 = vmatprep.subr.bf16.mxu0 0
        %4040 = vmatpush1.bf16.msra.mxu0 0
        %4041 = vmatprep.subr.bf16.mxu0 0
        %4042 = vmatpush1.bf16.msra.mxu0 0
        %4043 = vmatprep.subr.bf16.mxu0 0
        %4044 = vmatpush1.bf16.msra.mxu0 0
        %4045 = vmatprep.subr.bf16.mxu0 0
        %4046 = vmatpush1.bf16.msra.mxu0 0
        %4047 = vmatprep.subr.bf16.mxu0 0
        %4048 = vmatpush1.bf16.msra.mxu0 0
        %4049 = vmatprep.subr.bf16.mxu0 0
        %4050 = vmatpush1.bf16.msra.mxu0 0
        %4051 = vmatprep.subr.bf16.mxu0 0
        %4052 = vmatpush1.bf16.msra.mxu0 0
        %4053 = vmatprep.subr.bf16.mxu0 0
        %4054 = vmatpush1.bf16.msra.mxu0 0
        %4055 = vmatprep.subr.bf16.mxu0 0
        %4056 = vmatpush1.bf16.msra.mxu0 0
        %4057 = vmatprep.subr.bf16.mxu0 0
        %4058 = vmatpush1.bf16.msra.mxu0 0
        %4059 = vmatprep.subr.bf16.mxu0 0
        %4060 = vmatpush1.bf16.msra.mxu0 0
        %4061 = vmatprep.mubr.bf16.mxu0 0
        %4062 = vmatmul.mubr.bf16.gmra.mrb[0].mxu0 %v4027
        %v4063 = vpop.f32.mrb[0].mxu0
        %v4064 = vadd.f32 0.0, %v4063
        %v4065 = vpop.f32.mrb[0].mxu0
        %v4066 = vpop.f32.mrb[0].mxu0
        %v4067 = vadd.f32 0.0, %v4066
        %v4068 = vpop.f32.mrb[0].mxu0
        %4069 = vdwg.mxu0
        %v4070 = vpack.c.bf16 %v4016, %v4014
        %v4072 = vsel %vm1049, %v4070, 0
        %4074 = vmatprep.subr.bf16.mxu0 0
        %4075 = vmatpush1.bf16.msra.mxu0 %v3332
        %4076 = vmatprep.subr.bf16.mxu0 0
        %4077 = vmatpush1.bf16.msra.mxu0 0
        %4078 = vmatprep.subr.bf16.mxu0 0
        %4079 = vmatpush1.bf16.msra.mxu0 0
        %4080 = vmatprep.subr.bf16.mxu0 0
        %4081 = vmatpush1.bf16.msra.mxu0 0
        %4082 = vmatprep.subr.bf16.mxu0 0
        %4083 = vmatpush1.bf16.msra.mxu0 0
        %4084 = vmatprep.subr.bf16.mxu0 0
        %4085 = vmatpush1.bf16.msra.mxu0 0
        %4086 = vmatprep.subr.bf16.mxu0 0
        %4087 = vmatpush1.bf16.msra.mxu0 0
        %4088 = vmatprep.subr.bf16.mxu0 0
        %4089 = vmatpush1.bf16.msra.mxu0 0
        %4090 = vmatprep.subr.bf16.mxu0 0
        %4091 = vmatpush1.bf16.msra.mxu0 0
        %4092 = vmatprep.subr.bf16.mxu0 0
        %4093 = vmatpush1.bf16.msra.mxu0 0
        %4094 = vmatprep.subr.bf16.mxu0 0
        %4095 = vmatpush1.bf16.msra.mxu0 0
        %4096 = vmatprep.subr.bf16.mxu0 0
        %4097 = vmatpush1.bf16.msra.mxu0 0
        %4098 = vmatprep.subr.bf16.mxu0 0
        %4099 = vmatpush1.bf16.msra.mxu0 0
        %4100 = vmatprep.subr.bf16.mxu0 0
        %4101 = vmatpush1.bf16.msra.mxu0 0
        %4102 = vmatprep.subr.bf16.mxu0 0
        %4103 = vmatpush1.bf16.msra.mxu0 0
        %4104 = vmatprep.subr.bf16.mxu0 0
        %4105 = vmatpush1.bf16.msra.mxu0 0
        %4106 = vmatprep.mubr.bf16.mxu0 0
        %4107 = vmatmul.mubr.bf16.gmra.mrb[0].mxu0 %v4072
        %v4108 = vpop.f32.mrb[0].mxu0
        %v4109 = vadd.f32 0.0, %v4108
        %v4110 = vpop.f32.mrb[0].mxu0
        %v4111 = vpop.f32.mrb[0].mxu0
        %v4112 = vadd.f32 0.0, %v4111
        %v4113 = vpop.f32.mrb[0].mxu0
        %4114 = vdwg.mxu0
        %v4115 = vpack.c.bf16 %v4020, %v4018
        %v4117 = vsel %vm1049, %v4115, 0
        %4119 = vmatprep.subr.bf16.mxu0 0
        %4120 = vmatpush1.bf16.msra.mxu0 %v3630
        %4121 = vmatprep.subr.bf16.mxu0 0
        %4122 = vmatpush1.bf16.msra.mxu0 0
        %4123 = vmatprep.subr.bf16.mxu0 0
        %4124 = vmatpush1.bf16.msra.mxu0 0
        %4125 = vmatprep.subr.bf16.mxu0 0
        %4126 = vmatpush1.bf16.msra.mxu0 0
        %4127 = vmatprep.subr.bf16.mxu0 0
        %4128 = vmatpush1.bf16.msra.mxu0 0
        %4129 = vmatprep.subr.bf16.mxu0 0
        %4130 = vmatpush1.bf16.msra.mxu0 0
        %4131 = vmatprep.subr.bf16.mxu0 0
        %4132 = vmatpush1.bf16.msra.mxu0 0
        %4133 = vmatprep.subr.bf16.mxu0 0
        %4134 = vmatpush1.bf16.msra.mxu0 0
        %4135 = vmatprep.subr.bf16.mxu0 0
        %4136 = vmatpush1.bf16.msra.mxu0 0
        %4137 = vmatprep.subr.bf16.mxu0 0
        %4138 = vmatpush1.bf16.msra.mxu0 0
        %4139 = vmatprep.subr.bf16.mxu0 0
        %4140 = vmatpush1.bf16.msra.mxu0 0
        %4141 = vmatprep.subr.bf16.mxu0 0
        %4142 = vmatpush1.bf16.msra.mxu0 0
        %4143 = vmatprep.subr.bf16.mxu0 0
        %4144 = vmatpush1.bf16.msra.mxu0 0
        %4145 = vmatprep.subr.bf16.mxu0 0
        %4146 = vmatpush1.bf16.msra.mxu0 0
        %4147 = vmatprep.subr.bf16.mxu0 0
        %4148 = vmatpush1.bf16.msra.mxu0 0
        %4149 = vmatprep.subr.bf16.mxu0 0
        %4150 = vmatpush1.bf16.msra.mxu0 0
        %4151 = vmatprep.mubr.bf16.mxu0 0
        %4152 = vmatmul.mubr.bf16.gmra.mrb[0].mxu0 %v4117
        %v4153 = vpop.f32.mrb[0].mxu0
        %v4154 = vadd.f32 0.0, %v4153
        %v4155 = vpop.f32.mrb[0].mxu0
        %v4156 = vpop.f32.mrb[0].mxu0
        %v4157 = vadd.f32 0.0, %v4156
        %v4158 = vpop.f32.mrb[0].mxu0
        %4159 = vdwg.mxu0
        %v4160 = vpack.c.bf16 %v4024, %v4022
        %v4162 = vsel %vm1049, %v4160, 0
        %4164 = vmatprep.subr.bf16.mxu0 0
        %4165 = vmatpush1.bf16.msra.mxu0 %v3928
        %4166 = vmatprep.subr.bf16.mxu0 0
        %4167 = vmatpush1.bf16.msra.mxu0 0
        %4168 = vmatprep.subr.bf16.mxu0 0
        %4169 = vmatpush1.bf16.msra.mxu0 0
        %4170 = vmatprep.subr.bf16.mxu0 0
        %4171 = vmatpush1.bf16.msra.mxu0 0
        %4172 = vmatprep.subr.bf16.mxu0 0
        %4173 = vmatpush1.bf16.msra.mxu0 0
        %4174 = vmatprep.subr.bf16.mxu0 0
        %4175 = vmatpush1.bf16.msra.mxu0 0
        %4176 = vmatprep.subr.bf16.mxu0 0
        %4177 = vmatpush1.bf16.msra.mxu0 0
        %4178 = vmatprep.subr.bf16.mxu0 0
        %4179 = vmatpush1.bf16.msra.mxu0 0
        %4180 = vmatprep.subr.bf16.mxu0 0
        %4181 = vmatpush1.bf16.msra.mxu0 0
        %4182 = vmatprep.subr.bf16.mxu0 0
        %4183 = vmatpush1.bf16.msra.mxu0 0
        %4184 = vmatprep.subr.bf16.mxu0 0
        %4185 = vmatpush1.bf16.msra.mxu0 0
        %4186 = vmatprep.subr.bf16.mxu0 0
        %4187 = vmatpush1.bf16.msra.mxu0 0
        %4188 = vmatprep.subr.bf16.mxu0 0
        %4189 = vmatpush1.bf16.msra.mxu0 0
        %4190 = vmatprep.subr.bf16.mxu0 0
        %4191 = vmatpush1.bf16.msra.mxu0 0
        %4192 = vmatprep.subr.bf16.mxu0 0
        %4193 = vmatpush1.bf16.msra.mxu0 0
        %4194 = vmatprep.subr.bf16.mxu0 0
        %4195 = vmatpush1.bf16.msra.mxu0 0
        %4196 = vmatprep.mubr.bf16.mxu0 0
        %4197 = vmatmul.mubr.bf16.gmra.mrb[0].mxu0 %v4162
        %v4198 = vpop.f32.mrb[0].mxu0
        %v4199 = vadd.f32 0.0, %v4198
        %v4200 = vpop.f32.mrb[0].mxu0
        %v4201 = vpop.f32.mrb[0].mxu0
        %v4202 = vadd.f32 0.0, %v4201
        %v4203 = vpop.f32.mrb[0].mxu0
        %4204 = vdwg.mxu0
        %4207 = vrot.lane.b32.xlu0 %v4109, 16
        %v4208 = vpop.permute.xlu0 %4207
        %4209 = vrot.lane.b32.xlu0 %v4112, 16
        %v4210 = vpop.permute.xlu0 %4209
        %4215 = vrot.lane.b32.xlu0 %v4154, 32
        %v4216 = vpop.permute.xlu0 %4215
        %4217 = vrot.lane.b32.xlu0 %v4157, 32
        %v4218 = vpop.permute.xlu0 %4217
        %4223 = vrot.lane.b32.xlu0 %v4199, 48
        %v4224 = vpop.permute.xlu0 %4223
        %4225 = vrot.lane.b32.xlu0 %v4202, 48
        %v4226 = vpop.permute.xlu0 %4225
        %v4229 = vsel %vm1049, %v4064, %v4208
        %v4230 = vsel %vm1049, %v4067, %v4210
        %v4231 = vsel %vm2300, %v4229, %v4216
        %v4232 = vsel %vm2300, %v4230, %v4218
        %v4233 = vsel %vm2303, %v4231, %v4224
        %v4234 = vsel %vm2303, %v4232, %v4226
        %v4235 = vpack.c.bf16 %v4234, %v4233
        %s4236 = scalar_lea.vmem %s10, 32
        %v4237 = vld [vmem:[%s4236] sm:$0xf]
        %v4238 = vld [vmem:[%s4236 + $0x4] sm:$0xf]
        %v4239 = vld [vmem:[%s4236 + $0x8] sm:$0xf]
        %v4240 = vld [vmem:[%s4236 + $0xc] sm:$0xf]
        %v4241 = vld [vmem:[%s4236 + $0x10] sm:$0xf]
        %v4242 = vld [vmem:[%s4236 + $0x14] sm:$0xf]
        %v4243 = vld [vmem:[%s4236 + $0x18] sm:$0xf]
        %v4244 = vld [vmem:[%s4236 + $0x1c] sm:$0xf]
        %s4245 = scalar_lea.vmem %s11, 1
        %v4246 = vld [vmem:[%s4245] sm:$0x1]
        %v4248 = vlaneseq
        %v4249 = vshrl.u32 %v4248, 7
        %v4250 = vsub.s32 0, %v4249
        %v4251 = vrot.slane %v4246, %v4250
        %v4261 = vunpack.c.l.b16 %v4237
        %v4262 = vunpack.c.l.b16 %v4238
        %v4263 = vunpack.c.l.b16 %v4239
        %v4264 = vunpack.c.l.b16 %v4240
        %v4265 = vunpack.c.l.b16 %v4241
        %v4266 = vunpack.c.l.b16 %v4242
        %v4267 = vunpack.c.l.b16 %v4243
        %v4268 = vunpack.c.l.b16 %v4244
        %v4269 = vpack.c.b16 %v4262, %v4261
        %v4270 = vpack.c.b16 %v4264, %v4263
        %v4271 = vpack.c.b16 %v4266, %v4265
        %v4272 = vpack.c.b16 %v4268, %v4267
        %v4278 = vsel %vm757, %v4235, 0
        %4280 = vmatprep.subr.bf16.mxu0 0
        %4281 = vmatpush1.bf16.msra.mxu0 %v4269
        %4282 = vmatprep.subr.bf16.mxu0 0
        %4283 = vmatpush1.bf16.msra.mxu0 %v4270
        %4284 = vmatprep.subr.bf16.mxu0 0
        %4285 = vmatpush1.bf16.msra.mxu0 %v4271
        %4286 = vmatprep.subr.bf16.mxu0 0
        %4287 = vmatpush1.bf16.msra.mxu0 %v4272
        %4288 = vmatprep.subr.bf16.mxu0 0
        %4289 = vmatpush1.bf16.msra.mxu0 0
        %4290 = vmatprep.subr.bf16.mxu0 0
        %4291 = vmatpush1.bf16.msra.mxu0 0
        %4292 = vmatprep.subr.bf16.mxu0 0
        %4293 = vmatpush1.bf16.msra.mxu0 0
        %4294 = vmatprep.subr.bf16.mxu0 0
        %4295 = vmatpush1.bf16.msra.mxu0 0
        %4296 = vmatprep.subr.bf16.mxu0 0
        %4297 = vmatpush1.bf16.msra.mxu0 0
        %4298 = vmatprep.subr.bf16.mxu0 0
        %4299 = vmatpush1.bf16.msra.mxu0 0
        %4300 = vmatprep.subr.bf16.mxu0 0
        %4301 = vmatpush1.bf16.msra.mxu0 0
        %4302 = vmatprep.subr.bf16.mxu0 0
        %4303 = vmatpush1.bf16.msra.mxu0 0
        %4304 = vmatprep.subr.bf16.mxu0 0
        %4305 = vmatpush1.bf16.msra.mxu0 0
        %4306 = vmatprep.subr.bf16.mxu0 0
        %4307 = vmatpush1.bf16.msra.mxu0 0
        %4308 = vmatprep.subr.bf16.mxu0 0
        %4309 = vmatpush1.bf16.msra.mxu0 0
        %4310 = vmatprep.subr.bf16.mxu0 0
        %4311 = vmatpush1.bf16.msra.mxu0 0
        %4312 = vmatprep.mubr.bf16.mxu0 0
        %4313 = vmatmul.mubr.bf16.gmra.mrb[0].mxu0 %v4278
        %v4314 = vpop.f32.mrb[0].mxu0
        %v4315 = vadd.f32 %v4251, %v4314
        %v4316 = vpop.f32.mrb[0].mxu0
        %v4317 = vpop.f32.mrb[0].mxu0
        %v4318 = vadd.f32 %v4251, %v4317
        %v4319 = vpop.f32.mrb[0].mxu0
        %4320 = vdwg.mxu0
        %v4321 = vadd.f32 %v4315, %v2731
        %v4322 = vadd.f32 %v4318, %v2732
        %s4323 = scalar_lea.vmem %s12, 1
        %v4324 = vld [vmem:[%s4323] sm:$0x1]
        %s4325 = scalar_lea.vmem %s13, 1
        %v4326 = vld [vmem:[%s4325] sm:$0x1]
        %v4327 = vsel %vm757, %v4321, 0.0
        %4328 = vadd.xlane.f32.xlu0 %v4327
        %v4329 = vpop.xlane.xlu0 %4328
        %v4330 = vsel %vm757, %v4322, 0.0
        %4331 = vadd.xlane.f32.xlu0 %v4330
        %v4332 = vpop.xlane.xlu0 %4331
        %v4333 = vmul.f32 %v4329, %v764
        %v4334 = vmul.f32 %v4332, %v764
        %v4335 = vsub.f32 %v4321, %v4333
        %v4336 = vsub.f32 %v4322, %v4334
        %v4337 = vmul.f32 %v4335, %v4335
        %v4338 = vmul.f32 %v4336, %v4336
        %v4339 = vsel %vm757, %v4337, 0.0
        %4340 = vadd.xlane.f32.xlu0 %v4339
        %v4341 = vpop.xlane.xlu0 %4340
        %v4342 = vsel %vm757, %v4338, 0.0
        %4343 = vadd.xlane.f32.xlu0 %v4342
        %v4344 = vpop.xlane.xlu0 %4343
        %v4345 = vmul.f32 %v4341, %v764
        %v4346 = vmul.f32 %v4344, %v764
        %v4347 = vadd.f32 %v4345, 1e-05
        %v4348 = vadd.f32 %v4346, 1e-05
        %v4349 = vrsqrt.pop %v4347
        %v4350 = vrsqrt.pop %v4348
        %v4351 = vmul.f32 %v4335, %v4349
        %v4352 = vmul.f32 %v4336, %v4350
        %v4354 = vlaneseq
        %v4355 = vshrl.u32 %v4354, 7
        %v4356 = vsub.s32 0, %v4355
        %v4357 = vrot.slane %v4324, %v4356
        %v4359 = vmul.f32 %v4351, %v4357
        %v4360 = vmul.f32 %v4352, %v4357
        %v4362 = vlaneseq
        %v4363 = vshrl.u32 %v4362, 7
        %v4364 = vsub.s32 0, %v4363
        %v4365 = vrot.slane %v4326, %v4364
        %v4367 = vadd.f32 %v4359, %v4365
        %v4368 = vadd.f32 %v4360, %v4365
        %v4369 = vpack.c.bf16 %v4368, %v4367
        %s4370 = scalar_lea.vmem %s14, 32
        %v4371 = vld [vmem:[%s4370] sm:$0xf]
        %v4372 = vld [vmem:[%s4370 + $0x4] sm:$0xf]
        %v4373 = vld [vmem:[%s4370 + $0x8] sm:$0xf]
        %v4374 = vld [vmem:[%s4370 + $0xc] sm:$0xf]
        %v4375 = vld [vmem:[%s4370 + $0x10] sm:$0xf]
        %v4376 = vld [vmem:[%s4370 + $0x14] sm:$0xf]
        %v4377 = vld [vmem:[%s4370 + $0x18] sm:$0xf]
        %v4378 = vld [vmem:[%s4370 + $0x1c] sm:$0xf]
        %s4379 = scalar_lea.vmem %s15, 1
        %v4380 = vld [vmem:[%s4379] sm:$0x1]
        %v4382 = vlaneseq
        %v4383 = vshrl.u32 %v4382, 7
        %v4384 = vsub.s32 0, %v4383
        %v4385 = vrot.slane %v4380, %v4384
        %v4395 = vunpack.c.l.b16 %v4371
        %v4396 = vunpack.c.l.b16 %v4372
        %v4397 = vunpack.c.l.b16 %v4373
        %v4398 = vunpack.c.l.b16 %v4374
        %v4399 = vunpack.c.l.b16 %v4375
        %v4400 = vunpack.c.l.b16 %v4376
        %v4401 = vunpack.c.l.b16 %v4377
        %v4402 = vunpack.c.l.b16 %v4378
        %v4403 = vpack.c.b16 %v4396, %v4395
        %v4404 = vpack.c.b16 %v4398, %v4397
        %v4405 = vpack.c.b16 %v4400, %v4399
        %v4406 = vpack.c.b16 %v4402, %v4401
        %v4412 = vsel %vm757, %v4369, 0
        %4414 = vmatprep.subr.bf16.mxu0 0
        %4415 = vmatpush1.bf16.msra.mxu0 %v4403
        %4416 = vmatprep.subr.bf16.mxu0 0
        %4417 = vmatpush1.bf16.msra.mxu0 %v4404
        %4418 = vmatprep.subr.bf16.mxu0 0
        %4419 = vmatpush1.bf16.msra.mxu0 %v4405
        %4420 = vmatprep.subr.bf16.mxu0 0
        %4421 = vmatpush1.bf16.msra.mxu0 %v4406
        %4422 = vmatprep.subr.bf16.mxu0 0
        %4423 = vmatpush1.bf16.msra.mxu0 0
        %4424 = vmatprep.subr.bf16.mxu0 0
        %4425 = vmatpush1.bf16.msra.mxu0 0
        %4426 = vmatprep.subr.bf16.mxu0 0
        %4427 = vmatpush1.bf16.msra.mxu0 0
        %4428 = vmatprep.subr.bf16.mxu0 0
        %4429 = vmatpush1.bf16.msra.mxu0 0
        %4430 = vmatprep.subr.bf16.mxu0 0
        %4431 = vmatpush1.bf16.msra.mxu0 0
        %4432 = vmatprep.subr.bf16.mxu0 0
        %4433 = vmatpush1.bf16.msra.mxu0 0
        %4434 = vmatprep.subr.bf16.mxu0 0
        %4435 = vmatpush1.bf16.msra.mxu0 0
        %4436 = vmatprep.subr.bf16.mxu0 0
        %4437 = vmatpush1.bf16.msra.mxu0 0
        %4438 = vmatprep.subr.bf16.mxu0 0
        %4439 = vmatpush1.bf16.msra.mxu0 0
        %4440 = vmatprep.subr.bf16.mxu0 0
        %4441 = vmatpush1.bf16.msra.mxu0 0
        %4442 = vmatprep.subr.bf16.mxu0 0
        %4443 = vmatpush1.bf16.msra.mxu0 0
        %4444 = vmatprep.subr.bf16.mxu0 0
        %4445 = vmatpush1.bf16.msra.mxu0 0
        %4446 = vmatprep.mubr.bf16.mxu0 0
        %4447 = vmatmul.mubr.bf16.gmra.mrb[0].mxu0 %v4412
        %v4448 = vpop.f32.mrb[0].mxu0
        %v4449 = vadd.f32 %v4385, %v4448
        %v4450 = vpop.f32.mrb[0].mxu0
        %v4451 = vpop.f32.mrb[0].mxu0
        %v4452 = vadd.f32 %v4385, %v4451
        %v4453 = vpop.f32.mrb[0].mxu0
        %4454 = vdwg.mxu0
        %v4455 = vmul.f32 %v4449, 0.70710677
        %v4456 = vmul.f32 %v4452, 0.70710677
        %v4457 = vand.u32 2147483647, %v4455
        %v4458 = vand.u32 2147483647, %v4456
        %v4459 = vmul.f32 %v4457, 0.3275911
        %v4460 = vmul.f32 %v4458, 0.3275911
        %v4461 = vadd.f32 %v4459, 1.0
        %v4462 = vadd.f32 %v4460, 1.0
        %v4463 = vrcp.pop %v4461
        %v4464 = vmul.f32 1.0, %v4463
        %v4465 = vrcp.pop %v4462
        %v4466 = vmul.f32 1.0, %v4465
        %v4467 = vmul.f32 %v4464, 1.0614054
        %v4468 = vmul.f32 %v4466, 1.0614054
        %v4469 = vsub.f32 %v4467, 1.4531521
        %v4470 = vsub.f32 %v4468, 1.4531521
        %v4471 = vmul.f32 %v4469, %v4464
        %v4472 = vmul.f32 %v4470, %v4466
        %v4473 = vadd.f32 %v4471, 1.4214138
        %v4474 = vadd.f32 %v4472, 1.4214138
        %v4475 = vmul.f32 %v4473, %v4464
        %v4476 = vmul.f32 %v4474, %v4466
        %v4477 = vsub.f32 %v4475, 0.28449672
        %v4478 = vsub.f32 %v4476, 0.28449672
        %v4479 = vmul.f32 %v4477, %v4464
        %v4480 = vmul.f32 %v4478, %v4466
        %v4481 = vadd.f32 %v4479, 0.2548296
        %v4482 = vadd.f32 %v4480, 0.2548296
        %v4483 = vmul.f32 %v4481, %v4464
        %v4484 = vmul.f32 %v4482, %v4466
        %v4485 = vsub.f32 0.0, %v4457
        %v4486 = vsub.f32 0.0, %v4458
        %v4487 = vmul.f32 %v4485, %v4457
        %v4488 = vmul.f32 %v4486, %v4458
        %v4489 = vmul.f32 %v4487, 1.442695
        %v4490 = vpow.pop %v4489
        %v4491 = vmul.f32 %v4488, 1.442695
        %v4492 = vpow.pop %v4491
        %v4493 = vmul.f32 %v4483, %v4490
        %v4494 = vmul.f32 %v4484, %v4492
        %v4495 = vsub.f32 1.0, %v4493
        %v4496 = vsub.f32 1.0, %v4494
        %vm4497 = vcmp.ge.f32.partialorder %v4455, 0.0
        %vm4498 = vcmp.ge.f32.partialorder %v4456, 0.0
        %v4499 = vsub.f32 0.0, %v4495
        %v4500 = vsub.f32 0.0, %v4496
        %v4501 = vsel %vm4497, %v4495, %v4499
        %v4502 = vsel %vm4498, %v4496, %v4500
        %v4503 = vmul.f32 %v4449, 0.5
        %v4504 = vmul.f32 %v4452, 0.5
        %v4505 = vadd.f32 %v4501, 1.0
        %v4506 = vadd.f32 %v4502, 1.0
        %v4507 = vmul.f32 %v4503, %v4505
        %v4508 = vmul.f32 %v4504, %v4506
        %v4509 = vpack.c.bf16 %v4508, %v4507
        %s4510 = scalar_lea.vmem %s16, 64
        %v4511 = vld [vmem:[%s4510] sm:$0xf]
        %v4512 = vld [vmem:[%s4510 + $0x4] sm:$0xf]
        %v4513 = vld [vmem:[%s4510 + $0x8] sm:$0xf]
        %v4514 = vld [vmem:[%s4510 + $0xc] sm:$0xf]
        %v4515 = vld [vmem:[%s4510 + $0x10] sm:$0xf]
        %v4516 = vld [vmem:[%s4510 + $0x14] sm:$0xf]
        %v4517 = vld [vmem:[%s4510 + $0x18] sm:$0xf]
        %v4518 = vld [vmem:[%s4510 + $0x1c] sm:$0xf]
        %v4519 = vld [vmem:[%s4510 + $0x20] sm:$0xf]
        %v4520 = vld [vmem:[%s4510 + $0x24] sm:$0xf]
        %v4521 = vld [vmem:[%s4510 + $0x28] sm:$0xf]
        %v4522 = vld [vmem:[%s4510 + $0x2c] sm:$0xf]
        %v4523 = vld [vmem:[%s4510 + $0x30] sm:$0xf]
        %v4524 = vld [vmem:[%s4510 + $0x34] sm:$0xf]
        %v4525 = vld [vmem:[%s4510 + $0x38] sm:$0xf]
        %v4526 = vld [vmem:[%s4510 + $0x3c] sm:$0xf]
        %s4527 = scalar_lea.vmem %s17, 1
        %v4528 = vld [vmem:[%s4527] sm:$0x1]
        %v4530 = vlaneseq
        %v4531 = vshrl.u32 %v4530, 7
        %v4532 = vsub.s32 0, %v4531
        %v4533 = vrot.slane %v4528, %v4532
        %v4551 = vunpack.c.l.b16 %v4511
        %v4552 = vunpack.c.l.b16 %v4512
        %v4553 = vunpack.c.l.b16 %v4513
        %v4554 = vunpack.c.l.b16 %v4514
        %v4555 = vunpack.c.l.b16 %v4515
        %v4556 = vunpack.c.l.b16 %v4516
        %v4557 = vunpack.c.l.b16 %v4517
        %v4558 = vunpack.c.l.b16 %v4518
        %v4559 = vunpack.c.l.b16 %v4519
        %v4560 = vunpack.c.l.b16 %v4520
        %v4561 = vunpack.c.l.b16 %v4521
        %v4562 = vunpack.c.l.b16 %v4522
        %v4563 = vunpack.c.l.b16 %v4523
        %v4564 = vunpack.c.l.b16 %v4524
        %v4565 = vunpack.c.l.b16 %v4525
        %v4566 = vunpack.c.l.b16 %v4526
        %v4567 = vpack.c.b16 %v4552, %v4551
        %v4568 = vpack.c.b16 %v4554, %v4553
        %v4569 = vpack.c.b16 %v4556, %v4555
        %v4570 = vpack.c.b16 %v4558, %v4557
        %v4571 = vpack.c.b16 %v4560, %v4559
        %v4572 = vpack.c.b16 %v4562, %v4561
        %v4573 = vpack.c.b16 %v4564, %v4563
        %v4574 = vpack.c.b16 %v4566, %v4565
        %4583 = vmatprep.subr.bf16.mxu0 0
        %4584 = vmatpush1.bf16.msra.mxu0 %v4567
        %4585 = vmatprep.subr.bf16.mxu0 0
        %4586 = vmatpush1.bf16.msra.mxu0 %v4568
        %4587 = vmatprep.subr.bf16.mxu0 0
        %4588 = vmatpush1.bf16.msra.mxu0 %v4569
        %4589 = vmatprep.subr.bf16.mxu0 0
        %4590 = vmatpush1.bf16.msra.mxu0 %v4570
        %4591 = vmatprep.subr.bf16.mxu0 0
        %4592 = vmatpush1.bf16.msra.mxu0 %v4571
        %4593 = vmatprep.subr.bf16.mxu0 0
        %4594 = vmatpush1.bf16.msra.mxu0 %v4572
        %4595 = vmatprep.subr.bf16.mxu0 0
        %4596 = vmatpush1.bf16.msra.mxu0 %v4573
        %4597 = vmatprep.subr.bf16.mxu0 0
        %4598 = vmatpush1.bf16.msra.mxu0 %v4574
        %4599 = vmatprep.subr.bf16.mxu0 0
        %4600 = vmatpush1.bf16.msra.mxu0 0
        %4601 = vmatprep.subr.bf16.mxu0 0
        %4602 = vmatpush1.bf16.msra.mxu0 0
        %4603 = vmatprep.subr.bf16.mxu0 0
        %4604 = vmatpush1.bf16.msra.mxu0 0
        %4605 = vmatprep.subr.bf16.mxu0 0
        %4606 = vmatpush1.bf16.msra.mxu0 0
        %4607 = vmatprep.subr.bf16.mxu0 0
        %4608 = vmatpush1.bf16.msra.mxu0 0
        %4609 = vmatprep.subr.bf16.mxu0 0
        %4610 = vmatpush1.bf16.msra.mxu0 0
        %4611 = vmatprep.subr.bf16.mxu0 0
        %4612 = vmatpush1.bf16.msra.mxu0 0
        %4613 = vmatprep.subr.bf16.mxu0 0
        %4614 = vmatpush1.bf16.msra.mxu0 0
        %4615 = vmatprep.mubr.bf16.mxu0 0
        %4616 = vmatmul.mubr.bf16.gmra.mrb[0].mxu0 %v4509
        %v4617 = vpop.f32.mrb[0].mxu0
        %v4618 = vadd.f32 %v4533, %v4617
        %v4619 = vpop.f32.mrb[0].mxu0
        %v4620 = vpop.f32.mrb[0].mxu0
        %v4621 = vpop.f32.mrb[0].mxu0
        %4622 = vdwg.mxu0
        %v4623 = vadd.f32 %v4618, %v4367
        %s4624 = scalar_lea.vmem %s18, 1
        %v4625 = vld [vmem:[%s4624] sm:$0x1]
        %s4626 = scalar_lea.vmem %s19, 1
        %v4627 = vld [vmem:[%s4626] sm:$0x1]
        %v4628 = vsel %vm757, %v4623, 0.0
        %4629 = vadd.xlane.f32.xlu0 %v4628
        %v4630 = vpop.xlane.xlu0 %4629
        %v4631 = vmul.f32 %v4630, %v764
        %v4632 = vsub.f32 %v4623, %v4631
        %v4633 = vmul.f32 %v4632, %v4632
        %v4634 = vsel %vm757, %v4633, 0.0
        %4635 = vadd.xlane.f32.xlu0 %v4634
        %v4636 = vpop.xlane.xlu0 %4635
        %v4637 = vmul.f32 %v4636, %v764
        %v4638 = vadd.f32 %v4637, 1e-05
        %v4639 = vrsqrt.pop %v4638
        %v4640 = vmul.f32 %v4632, %v4639
        %v4642 = vlaneseq
        %v4643 = vshrl.u32 %v4642, 7
        %v4644 = vsub.s32 0, %v4643
        %v4645 = vrot.slane %v4625, %v4644
        %v4647 = vmul.f32 %v4640, %v4645
        %v4649 = vlaneseq
        %v4650 = vshrl.u32 %v4649, 7
        %v4651 = vsub.s32 0, %v4650
        %v4652 = vrot.slane %v4627, %v4651
        %v4654 = vadd.f32 %v4647, %v4652
        %v4655 = vpack.c.bf16 %v4654, %v4654
        %v4656 = vld [vmem:[%s20] sm:$0xf]
        %v4657 = vld [vmem:[%s20 + $0x4] sm:$0xf]
        %v4658 = vld [vmem:[%s20 + $0x8] sm:$0xf]
        %v4659 = vld [vmem:[%s20 + $0xc] sm:$0xf]
        %v4660 = vld [vmem:[%s20 + $0x10] sm:$0xf]
        %v4661 = vld [vmem:[%s20 + $0x14] sm:$0xf]
        %v4662 = vld [vmem:[%s20 + $0x18] sm:$0xf]
        %v4663 = vld [vmem:[%s20 + $0x1c] sm:$0xf]
        %v4664 = vld [vmem:[%s21] sm:$0x1]
        %v4673 = vunpack.c.l.b16 %v4656
        %v4674 = vunpack.c.l.b16 %v4657
        %v4675 = vunpack.c.l.b16 %v4658
        %v4676 = vunpack.c.l.b16 %v4659
        %v4677 = vunpack.c.l.b16 %v4660
        %v4678 = vunpack.c.l.b16 %v4661
        %v4679 = vunpack.c.l.b16 %v4662
        %v4680 = vunpack.c.l.b16 %v4663
        %v4681 = vpack.c.b16 %v4674, %v4673
        %v4682 = vpack.c.b16 %v4676, %v4675
        %v4683 = vpack.c.b16 %v4678, %v4677
        %v4684 = vpack.c.b16 %v4680, %v4679
        %v4690 = vsel %vm757, %v4655, 0
        %4692 = vmatprep.subr.bf16.mxu0 0
        %4693 = vmatpush1.bf16.msra.mxu0 %v4681
        %4694 = vmatprep.subr.bf16.mxu0 0
        %4695 = vmatpush1.bf16.msra.mxu0 %v4682
        %4696 = vmatprep.subr.bf16.mxu0 0
        %4697 = vmatpush1.bf16.msra.mxu0 %v4683
        %4698 = vmatprep.subr.bf16.mxu0 0
        %4699 = vmatpush1.bf16.msra.mxu0 %v4684
        %4700 = vmatprep.subr.bf16.mxu0 0
        %4701 = vmatpush1.bf16.msra.mxu0 0
        %4702 = vmatprep.subr.bf16.mxu0 0
        %4703 = vmatpush1.bf16.msra.mxu0 0
        %4704 = vmatprep.subr.bf16.mxu0 0
        %4705 = vmatpush1.bf16.msra.mxu0 0
        %4706 = vmatprep.subr.bf16.mxu0 0
        %4707 = vmatpush1.bf16.msra.mxu0 0
        %4708 = vmatprep.subr.bf16.mxu0 0
        %4709 = vmatpush1.bf16.msra.mxu0 0
        %4710 = vmatprep.subr.bf16.mxu0 0
        %4711 = vmatpush1.bf16.msra.mxu0 0
        %4712 = vmatprep.subr.bf16.mxu0 0
        %4713 = vmatpush1.bf16.msra.mxu0 0
        %4714 = vmatprep.subr.bf16.mxu0 0
        %4715 = vmatpush1.bf16.msra.mxu0 0
        %4716 = vmatprep.subr.bf16.mxu0 0
        %4717 = vmatpush1.bf16.msra.mxu0 0
        %4718 = vmatprep.subr.bf16.mxu0 0
        %4719 = vmatpush1.bf16.msra.mxu0 0
        %4720 = vmatprep.subr.bf16.mxu0 0
        %4721 = vmatpush1.bf16.msra.mxu0 0
        %4722 = vmatprep.subr.bf16.mxu0 0
        %4723 = vmatpush1.bf16.msra.mxu0 0
        %4724 = vmatprep.mubr.bf16.mxu0 0
        %4725 = vmatmul.mubr.bf16.gmra.mrb[0].mxu0 %v4690
        %v4726 = vpop.f32.mrb[0].mxu0
        %v4727 = vadd.f32 %v4664, %v4726
        %v4728 = vpop.f32.mrb[0].mxu0
        %v4729 = vpop.f32.mrb[0].mxu0
        %v4730 = vpop.f32.mrb[0].mxu0
        %4731 = vdwg.mxu0
        %v4732 = vtanh.pop %v4727
        %v4733 = vpack.c.bf16 %v4732, %v4732
        %v4734 = vld [vmem:[%s22] sm:$0xf]
        %v4735 = vld [vmem:[%s22 + $0x4] sm:$0xf]
        %v4736 = vld [vmem:[%s22 + $0x8] sm:$0xf]
        %v4737 = vld [vmem:[%s22 + $0xc] sm:$0xf]
        %v4738 = vld [vmem:[%s22 + $0x10] sm:$0xf]
        %v4739 = vld [vmem:[%s22 + $0x14] sm:$0xf]
        %v4740 = vld [vmem:[%s22 + $0x18] sm:$0xf]
        %v4741 = vld [vmem:[%s22 + $0x1c] sm:$0xf]
        %v4742 = vld [vmem:[%s23] sm:$0x1]
        %v4751 = vunpack.c.l.b16 %v4734
        %v4752 = vunpack.c.l.b16 %v4735
        %v4753 = vunpack.c.l.b16 %v4736
        %v4754 = vunpack.c.l.b16 %v4737
        %v4755 = vunpack.c.l.b16 %v4738
        %v4756 = vunpack.c.l.b16 %v4739
        %v4757 = vunpack.c.l.b16 %v4740
        %v4758 = vunpack.c.l.b16 %v4741
        %v4759 = vpack.c.b16 %v4752, %v4751
        %v4760 = vpack.c.b16 %v4754, %v4753
        %v4761 = vpack.c.b16 %v4756, %v4755
        %v4762 = vpack.c.b16 %v4758, %v4757
        %v4768 = vsel %vm757, %v4733, 0
        %4770 = vmatprep.subr.bf16.mxu0 0
        %4771 = vmatpush1.bf16.msra.mxu0 %v4759
        %4772 = vmatprep.subr.bf16.mxu0 0
        %4773 = vmatpush1.bf16.msra.mxu0 %v4760
        %4774 = vmatprep.subr.bf16.mxu0 0
        %4775 = vmatpush1.bf16.msra.mxu0 %v4761
        %4776 = vmatprep.subr.bf16.mxu0 0
        %4777 = vmatpush1.bf16.msra.mxu0 %v4762
        %4778 = vmatprep.subr.bf16.mxu0 0
        %4779 = vmatpush1.bf16.msra.mxu0 0
        %4780 = vmatprep.subr.bf16.mxu0 0
        %4781 = vmatpush1.bf16.msra.mxu0 0
        %4782 = vmatprep.subr.bf16.mxu0 0
        %4783 = vmatpush1.bf16.msra.mxu0 0
        %4784 = vmatprep.subr.bf16.mxu0 0
        %4785 = vmatpush1.bf16.msra.mxu0 0
        %4786 = vmatprep.subr.bf16.mxu0 0
        %4787 = vmatpush1.bf16.msra.mxu0 0
        %4788 = vmatprep.subr.bf16.mxu0 0
        %4789 = vmatpush1.bf16.msra.mxu0 0
        %4790 = vmatprep.subr.bf16.mxu0 0
        %4791 = vmatpush1.bf16.msra.mxu0 0
        %4792 = vmatprep.subr.bf16.mxu0 0
        %4793 = vmatpush1.bf16.msra.mxu0 0
        %4794 = vmatprep.subr.bf16.mxu0 0
        %4795 = vmatpush1.bf16.msra.mxu0 0
        %4796 = vmatprep.subr.bf16.mxu0 0
        %4797 = vmatpush1.bf16.msra.mxu0 0
        %4798 = vmatprep.subr.bf16.mxu0 0
        %4799 = vmatpush1.bf16.msra.mxu0 0
        %4800 = vmatprep.subr.bf16.mxu0 0
        %4801 = vmatpush1.bf16.msra.mxu0 0
        %4802 = vmatprep.mubr.bf16.mxu0 0
        %4803 = vmatmul.mubr.bf16.gmra.mrb[0].mxu0 %v4768
        %v4804 = vpop.f32.mrb[0].mxu0
        %v4805 = vadd.f32 %v4742, %v4804
        %v4806 = vpop.f32.mrb[0].mxu0
        %v4807 = vpop.f32.mrb[0].mxu0
        %v4808 = vpop.f32.mrb[0].mxu0
        %4809 = vdwg.mxu0
        %vm4810 = vcmask 16384
        %4811 = vst.msk [vmem:[%s740] sm:$0x1] %vm4810, %v4805
        %s4812 = sand.u32 %s560, 1
        %s4813 = scalar_lea.sflag [#allocation3], %s4812
        %s4814 = sand.u32 %s560, 1
        %s4815 = scalar_lea.vmem [#allocation2], %s4814
        // Predicated region
        $region117: #{xlmr_forward.1} parent=115 // pred_check
          %p4816 = pneg %p570
        $region118: #{xlmr_forward.1} parent=115 // pred_check_branch
          %4818 = sbr.rel (%p4816) target = $region120
        $region119: #{xlmr_forward.1} parent=115 // pred_region
          %s4820 = ssub.s32 16, 16
          %4821 = vsyncadd %s4813, %s4820
          %s4822 = smul.addr %s38, 16
          %s4823 = scalar_lea.hbm %s24, %s4822
          %s4825 = sshll.u32 %s4815, 4
          %s4826 = int_to_ptr.vmem [resolvable:$true] %s4825
          %4828 = dma.vmem_to_hbm [thread:$0]  %s4826, 16, %s4823, %s4813
        $region120: #{xlmr_forward.1} parent=115 // pred_fallthru
          _
      $region116: #{xlmr_forward.1} parent=5 // pred_fallthru
        _
      %p4829 = scmp.le.s32.totalorder 2, %s33
      // Predicated region
      $region121: #{xlmr_forward.1} parent=5 // pred_check
        %p4830 = pneg %p4829
      $region122: #{xlmr_forward.1} parent=5 // pred_check_branch
        %4832 = sbr.rel (%p4830) target = $region124
      $region123: #{xlmr_forward.1} parent=5 // pred_region
        %s4833 = ssub.s32 %s33, 2
        // Predicated region
        $region125: #{xlmr_forward.1} parent=123 // pred_check
          %p4834 = pneg %p576
        $region126: #{xlmr_forward.1} parent=123 // pred_check_branch
          %4836 = sbr.rel (%p4834) target = $region128
        $region127: #{xlmr_forward.1} parent=123 // pred_region
          %s4837 = sand.u32 %s561, 1
          %s4838 = scalar_lea.sflag [#allocation3], %s4837
          %s4839 = sand.u32 %s561, 1
          %s4840 = scalar_lea.vmem [#allocation2], %s4839
          %4841 = dma.done %s4838, 16
        $region128: #{xlmr_forward.1} parent=123 // pred_fallthru
          _
      $region124: #{xlmr_forward.1} parent=5 // pred_fallthru
        _
    $region6: #{xlmr_forward.1} parent=1 // loop_footer
      %s37 = sadd.s32 1, %s33
    $region7: #{xlmr_forward.1} parent=1 // loop_footer_branch
      %32 = sbr.rel target = $region3
    $region8: #{xlmr_forward.1} parent=1 // loop_exit
      _
    %4842 = vsyncpa [#allocation3], 1
    %s4843 = scalar_lea.sflag [#allocation3], 1
    %4844 = vsyncpa %s4843, 1

</llo_original>
